<compile_context>
chip_gen: v7x
topology: tpu7x:2x2x1
jax: 0.10.0
libtpu: 0.0.40
codegen_flags: <defaults>
</compile_context>

<pallas_src>
import jax
import jax.numpy as jnp
from jax.experimental import pallas as pl
from jax.experimental.pallas import tpu as pltpu


def decoder_kernel(z_ref, w1_ref, b1_ref, w2_ref, b2_ref, out_ref):
    # fc1: bf16 operands on the MXU, f32 accumulation.
    h = jnp.dot(z_ref[...], w1_ref[...], preferred_element_type=jnp.float32)
    # bias + ReLU in f32 (VPU); b1 is (1, H) and broadcasts over the batch tile.
    h = jnp.maximum(h + b1_ref[...], 0.0)
    # fc2: cast activation to bf16 for the MXU, keep f32 accumulation.
    o = jnp.dot(h.astype(jnp.bfloat16), w2_ref[...],
                preferred_element_type=jnp.float32)
    o = o + b2_ref[...]                       # b2 is (1, O), f32
    out_ref[...] = jax.nn.sigmoid(o).astype(out_ref.dtype)


def decoder_forward(z, w1, b1, w2, b2, *, block_b=128):
    """z: (B, latent) bf16, w1: (latent, hidden) bf16, b1: (1, hidden) f32,
    w2: (hidden, out) bf16, b2: (1, out) f32 -> (B, out) f32."""
    B, latent = z.shape
    hidden = w1.shape[1]
    out_dim = w2.shape[1]
    tb = min(block_b, B)
    grid = (pl.cdiv(B, tb),)

    # Advisory cost hint for XLA's scheduler.
    flops = 2 * B * (latent * hidden + hidden * out_dim)
    bytes_accessed = (z.size * z.dtype.itemsize
                      + w1.size * w1.dtype.itemsize
                      + b1.size * b1.dtype.itemsize
                      + w2.size * w2.dtype.itemsize
                      + b2.size * b2.dtype.itemsize
                      + B * out_dim * 4)
    cost = pl.CostEstimate(flops=flops,
                           transcendentals=B * out_dim,   # sigmoid exp
                           bytes_accessed=bytes_accessed)

    return pl.pallas_call(
        decoder_kernel,
        out_shape=jax.ShapeDtypeStruct((B, out_dim), jnp.float32),
        grid=grid,
        in_specs=[
            pl.BlockSpec((tb, latent), lambda i: (i, 0)),      # z: batch-tiled
            pl.BlockSpec((latent, hidden), lambda i: (0, 0)),  # W1: resident
            pl.BlockSpec((1, hidden), lambda i: (0, 0)),       # b1: resident
            pl.BlockSpec((hidden, out_dim), lambda i: (0, 0)), # W2: resident
            pl.BlockSpec((1, out_dim), lambda i: (0, 0)),      # b2: resident
        ],
        out_specs=pl.BlockSpec((tb, out_dim), lambda i: (i, 0)),
        compiler_params=pltpu.CompilerParams(
            dimension_semantics=("parallel",)),
        cost_estimate=cost,
    )(z, w1, b1, w2, b2)


def init_decoder_params(key, latent_dim, hidden_dim, output_dim):
    """Deterministic init mimicking nn.Linear's U(-1/sqrt(fan_in), 1/sqrt(fan_in))."""
    k1, k2, k3, k4 = jax.random.split(key, 4)
    s1 = 1.0 / jnp.sqrt(latent_dim)
    s2 = 1.0 / jnp.sqrt(hidden_dim)
    w1 = jax.random.uniform(k1, (latent_dim, hidden_dim), jnp.float32, -s1, s1)
    b1 = jax.random.uniform(k2, (1, hidden_dim), jnp.float32, -s1, s1)
    w2 = jax.random.uniform(k3, (hidden_dim, output_dim), jnp.float32, -s2, s2)
    b2 = jax.random.uniform(k4, (1, output_dim), jnp.float32, -s2, s2)
    return w1, b1, w2, b2


if __name__ == "__main__":
    # Module-faithful sizes: latent_dim=300, hidden_dim=512 (from the spec),
    # output_dim=784 (MNIST-style VAE reconstruction). Batch sized so the grid
    # has >= 2 steps (pipelining + v7x core-parallel split).
    batch, latent_dim_, hidden_dim_, output_dim = 256, 300, 512, 784

    key = jax.random.PRNGKey(0)
    kz, kp = jax.random.split(key)
    z = jax.random.normal(kz, (batch, latent_dim_), jnp.float32)
    w1, b1, w2, b2 = init_decoder_params(kp, latent_dim_, hidden_dim_, output_dim)

    # bf16 operands feed the MXU (halves DMA bytes); biases stay f32.
    z_b = z.astype(jnp.bfloat16)
    w1_b = w1.astype(jnp.bfloat16)
    w2_b = w2.astype(jnp.bfloat16)

    out = decoder_forward(z_b, w1_b, b1, w2_b, b2)
    out = jax.block_until_ready(out)

    # Pure-JAX reference mirroring the kernel's bf16-operand / f32-accumulate
    # numerics (bf16 inputs -> loosened tolerance vs. the pure-f32 path).
    h_ref = jnp.maximum(
        z_b.astype(jnp.float32) @ w1_b.astype(jnp.float32) + b1, 0.0)
    o_ref = (h_ref.astype(jnp.bfloat16).astype(jnp.float32)
             @ w2_b.astype(jnp.float32) + b2)
    ref = jax.nn.sigmoid(o_ref)

    assert out.shape == (batch, output_dim)
    assert jnp.allclose(out, ref, atol=2e-3, rtol=2e-3), "mismatch vs reference"

    print("KERNEL_OK")
</pallas_src>

<mosaic_0001>
module attributes {stable_mosaic.version = 11 : i64} {
  func.func @decoder_kernel(%arg0: i32, %arg1: memref<128x300xbf16, #tpu.memory_space<vmem>>, %arg2: memref<300x512xbf16, #tpu.memory_space<vmem>>, %arg3: memref<1x512xf32, #tpu.memory_space<vmem>>, %arg4: memref<512x784xbf16, #tpu.memory_space<vmem>>, %arg5: memref<1x784xf32, #tpu.memory_space<vmem>>, %arg6: memref<128x784xf32, #tpu.memory_space<vmem>>) attributes {dimension_semantics = [#tpu.dimension_semantics<parallel>], iteration_bounds = array<i64: 2>, scalar_prefetch = 0 : i64, scratch_operands = 0 : i64, tpu.core_type = #tpu.core_type<tc>, window_params = [{transform_indices = @transform_0, window_bounds = array<i64: 128, 300>}, {pipeline_mode = #tpu.pipeline_mode<synchronous>, transform_indices = @transform_1, window_bounds = array<i64: 300, 512>}, {pipeline_mode = #tpu.pipeline_mode<synchronous>, transform_indices = @transform_2, window_bounds = array<i64: 1, 512>}, {pipeline_mode = #tpu.pipeline_mode<synchronous>, transform_indices = @transform_3, window_bounds = array<i64: 512, 784>}, {pipeline_mode = #tpu.pipeline_mode<synchronous>, transform_indices = @transform_4, window_bounds = array<i64: 1, 784>}, {transform_indices = @transform_5, window_bounds = array<i64: 128, 784>}]} {
    %c0 = arith.constant 0 : index
    %c0_0 = arith.constant 0 : index
    %0 = vector.load %arg1[%c0, %c0_0] : memref<128x300xbf16, #tpu.memory_space<vmem>>, vector<128x300xbf16>
    %c0_1 = arith.constant 0 : index
    %c0_2 = arith.constant 0 : index
    %1 = vector.load %arg2[%c0_1, %c0_2] : memref<300x512xbf16, #tpu.memory_space<vmem>>, vector<300x512xbf16>
    %cst = arith.constant dense<0.000000e+00> : vector<128x512xf32>
    %2 = tpu.matmul %0, %1, %cst {dimension_numbers = #tpu.dot_dimension_numbers<[1], [0], [0], [1], [0, 0, 1, 1], [], []>} : vector<128x300xbf16>, vector<300x512xbf16>, vector<128x512xf32> -> vector<128x512xf32>
    %c0_3 = arith.constant 0 : index
    %c0_4 = arith.constant 0 : index
    %3 = vector.load %arg3[%c0_3, %c0_4] : memref<1x512xf32, #tpu.memory_space<vmem>>, vector<1x512xf32>
    %4 = vector.broadcast %3 : vector<1x512xf32> to vector<128x512xf32>
    %5 = arith.addf %2, %4 : vector<128x512xf32>
    %cst_5 = arith.constant 0.000000e+00 : f32
    %6 = vector.broadcast %cst_5 : f32 to vector<128x512xf32>
    %7 = arith.maximumf %5, %6 : vector<128x512xf32>
    %8 = arith.truncf %7 : vector<128x512xf32> to vector<128x512xbf16>
    %c0_6 = arith.constant 0 : index
    %c0_7 = arith.constant 0 : index
    %9 = vector.load %arg4[%c0_6, %c0_7] : memref<512x784xbf16, #tpu.memory_space<vmem>>, vector<512x784xbf16>
    %cst_8 = arith.constant dense<0.000000e+00> : vector<128x784xf32>
    %10 = tpu.matmul %8, %9, %cst_8 {dimension_numbers = #tpu.dot_dimension_numbers<[1], [0], [0], [1], [0, 0, 1, 1], [], []>} : vector<128x512xbf16>, vector<512x784xbf16>, vector<128x784xf32> -> vector<128x784xf32>
    %c0_9 = arith.constant 0 : index
    %c0_10 = arith.constant 0 : index
    %11 = vector.load %arg5[%c0_9, %c0_10] : memref<1x784xf32, #tpu.memory_space<vmem>>, vector<1x784xf32>
    %12 = vector.broadcast %11 : vector<1x784xf32> to vector<128x784xf32>
    %13 = arith.addf %10, %12 : vector<128x784xf32>
    %14 = arith.negf %13 : vector<128x784xf32>
    %15 = math.exp %14 : vector<128x784xf32>
    %cst_11 = arith.constant 1.000000e+00 : f32
    %16 = vector.broadcast %cst_11 : f32 to vector<128x784xf32>
    %17 = arith.addf %16, %15 : vector<128x784xf32>
    %18 = arith.divf %16, %17 : vector<128x784xf32>
    %c0_12 = arith.constant 0 : index
    %c0_13 = arith.constant 0 : index
    %19 = vector.load %arg6[%c0_12, %c0_13] : memref<128x784xf32, #tpu.memory_space<vmem>>, vector<128x784xf32>
    tpu.vector_store %arg6[%c0_12, %c0_13], %18 {strides = array<i32>} : memref<128x784xf32, #tpu.memory_space<vmem>>, vector<128x784xf32>,
    return
  }
  func.func @transform_0(%arg0: i32) -> (i32, i32) {
    %c0_i32 = arith.constant 0 : i32
    %c0_i32_0 = arith.constant 0 : i32
    return %arg0, %c0_i32 : i32, i32
  }
  func.func @transform_1(%arg0: i32) -> (i32, i32) {
    %c0_i32 = arith.constant 0 : i32
    %c0_i32_0 = arith.constant 0 : i32
    %c0_i32_1 = arith.constant 0 : i32
    return %c0_i32, %c0_i32_0 : i32, i32
  }
  func.func @transform_2(%arg0: i32) -> (i32, i32) {
    %c0_i32 = arith.constant 0 : i32
    %c0_i32_0 = arith.constant 0 : i32
    %c0_i32_1 = arith.constant 0 : i32
    return %c0_i32, %c0_i32_0 : i32, i32
  }
  func.func @transform_3(%arg0: i32) -> (i32, i32) {
    %c0_i32 = arith.constant 0 : i32
    %c0_i32_0 = arith.constant 0 : i32
    %c0_i32_1 = arith.constant 0 : i32
    return %c0_i32, %c0_i32_0 : i32, i32
  }
  func.func @transform_4(%arg0: i32) -> (i32, i32) {
    %c0_i32 = arith.constant 0 : i32
    %c0_i32_0 = arith.constant 0 : i32
    %c0_i32_1 = arith.constant 0 : i32
    return %c0_i32, %c0_i32_0 : i32, i32
  }
  func.func @transform_5(%arg0: i32) -> (i32, i32) {
    %c0_i32 = arith.constant 0 : i32
    %c0_i32_0 = arith.constant 0 : i32
    return %arg0, %c0_i32 : i32, i32
  }
}

</mosaic_0001>

<llo_original>
// kernel: tpu_custom_call.1
$region0: #{tpu_custom_call.1}
  #allocation0 [shape = 'u32[]', space=smem, size = 0x4, offset = 0x4, fixed_abs, tag = 'smem constant byte address 0x4 - core index']
  #allocation1 [shape = 'u32[144,128]{1,0:T(1,128)}', space=vmem, size = 0x12000, scoped, tag = 'internal scratch']
  %s0 = inlined_call_operand.vmem [shape: bf16[256,300], index: 0, kind: input, shape index: {}]
  %s1 = inlined_call_operand.vmem [shape: bf16[300,512], index: 1, kind: input, shape index: {}]
  %s2 = inlined_call_operand.vmem [shape: f32[1,512], index: 2, kind: input, shape index: {}]
  %s3 = inlined_call_operand.vmem [shape: bf16[512,784], index: 3, kind: input, shape index: {}]
  %s4 = inlined_call_operand.vmem [shape: f32[1,784], index: 4, kind: input, shape index: {}]
  %s5 = inlined_call_operand.vmem [shape: f32[256,784], index: 5, kind: output, shape index: {}]
  %s6 = sld [smem:[#allocation0]]
  $region53: #{tpu_custom_call.1} parent=0
    _
  %s8 = ssub.s32 1, %s6
  %s9 = scalar_select 0, %s8, %s6
  loop: start=0, step=1, limit=4
  $region2: #{tpu_custom_call.1} parent=0 // loop_pre_header
    _
  $region3: #{tpu_custom_call.1} parent=0 // loop_header
    %s11 = sphi 0, %s15
    %p12 = scmp.ge.s32.totalorder %s11, 4
    %s21 = sphi 0, %s23
    %s24 = sphi 0, %s21
    %s25 = sphi 0, %s24
    %s41 = sphi 0, %s25
    %s45 = sphi 0, %s45
    %s47 = sphi 0, %s45
    %s48 = sphi 0, %s47
    %s62 = sphi 0, %s48
    %s66 = sphi 0, %s66
    %s68 = sphi 0, %s66
    %s69 = sphi 0, %s68
    %s83 = sphi 0, %s69
    %s87 = sphi 0, %s87
    %s89 = sphi 0, %s87
    %s90 = sphi 0, %s89
    %s104 = sphi 0, %s90
    %s108 = sphi 0, %s108
    %s110 = sphi 0, %s108
    %s111 = sphi 0, %s110
    %s125 = sphi 0, %s111
    %s131 = sphi 0, %s133
    %s134 = sphi 0, %s131
    %s135 = sphi 0, %s134
    %s151 = sphi 0, %s135
  $region4: #{tpu_custom_call.1} parent=0 // loop_header_branch
    %14 = sbr.rel (%p12) target = $region8
  $region5: #{tpu_custom_call.1} parent=0 // loop_body
    %s16 = ssub.s32 %s11, 1
    %s17 = ssub.s32 %s11, 2
    %s18 = sadd.s32 %s11, 1
    %s19 = ssub.s32 %s11, %s18
    %p20 = scmp.eq.s32.totalorder %s19, 0
    %s22 = sadd.s32 %s21, 1
    %s23 = scalar_select %p20, %s21, %s22
    %p26 = pneg %p20
    %p27 = scmp.eq.s32.totalorder %s11, 1
    %p28 = por %p26, %p27
    %p29 = scmp.ne.s32.totalorder %s21, %s24
    %p30 = scmp.eq.s32.totalorder %s11, 0
    %p31 = por %p29, %p30
    %p32 = scmp.ne.s32.totalorder %s21, %s24
    %p33 = scmp.eq.s32.totalorder %s16, 1
    %p34 = por %p32, %p33
    %p35 = scmp.ne.s32.totalorder %s24, %s25
    %p36 = scmp.eq.s32.totalorder %s16, 0
    %p37 = por %p35, %p36
    %p38 = scmp.ne.s32.totalorder %s24, %s25
    %p39 = scmp.eq.s32.totalorder %s17, 1
    %p40 = por %p38, %p39
    %p42 = scmp.ne.s32.totalorder %s25, %s41
    %p43 = scmp.eq.s32.totalorder %s17, 0
    %p44 = por %p42, %p43
    %s46 = sadd.s32 %s45, 1
    %p49 = scmp.eq.s32.totalorder %s11, 1
    %p50 = scmp.ne.s32.totalorder %s45, %s47
    %p51 = scmp.eq.s32.totalorder %s11, 0
    %p52 = por %p50, %p51
    %p53 = scmp.ne.s32.totalorder %s45, %s47
    %p54 = scmp.eq.s32.totalorder %s16, 1
    %p55 = por %p53, %p54
    %p56 = scmp.ne.s32.totalorder %s47, %s48
    %p57 = scmp.eq.s32.totalorder %s16, 0
    %p58 = por %p56, %p57
    %p59 = scmp.ne.s32.totalorder %s47, %s48
    %p60 = scmp.eq.s32.totalorder %s17, 1
    %p61 = por %p59, %p60
    %p63 = scmp.ne.s32.totalorder %s48, %s62
    %p64 = scmp.eq.s32.totalorder %s17, 0
    %p65 = por %p63, %p64
    %s67 = sadd.s32 %s66, 1
    %p70 = scmp.eq.s32.totalorder %s11, 1
    %p71 = scmp.ne.s32.totalorder %s66, %s68
    %p72 = scmp.eq.s32.totalorder %s11, 0
    %p73 = por %p71, %p72
    %p74 = scmp.ne.s32.totalorder %s66, %s68
    %p75 = scmp.eq.s32.totalorder %s16, 1
    %p76 = por %p74, %p75
    %p77 = scmp.ne.s32.totalorder %s68, %s69
    %p78 = scmp.eq.s32.totalorder %s16, 0
    %p79 = por %p77, %p78
    %p80 = scmp.ne.s32.totalorder %s68, %s69
    %p81 = scmp.eq.s32.totalorder %s17, 1
    %p82 = por %p80, %p81
    %p84 = scmp.ne.s32.totalorder %s69, %s83
    %p85 = scmp.eq.s32.totalorder %s17, 0
    %p86 = por %p84, %p85
    %s88 = sadd.s32 %s87, 1
    %p91 = scmp.eq.s32.totalorder %s11, 1
    %p92 = scmp.ne.s32.totalorder %s87, %s89
    %p93 = scmp.eq.s32.totalorder %s11, 0
    %p94 = por %p92, %p93
    %p95 = scmp.ne.s32.totalorder %s87, %s89
    %p96 = scmp.eq.s32.totalorder %s16, 1
    %p97 = por %p95, %p96
    %p98 = scmp.ne.s32.totalorder %s89, %s90
    %p99 = scmp.eq.s32.totalorder %s16, 0
    %p100 = por %p98, %p99
    %p101 = scmp.ne.s32.totalorder %s89, %s90
    %p102 = scmp.eq.s32.totalorder %s17, 1
    %p103 = por %p101, %p102
    %p105 = scmp.ne.s32.totalorder %s90, %s104
    %p106 = scmp.eq.s32.totalorder %s17, 0
    %p107 = por %p105, %p106
    %s109 = sadd.s32 %s108, 1
    %p112 = scmp.eq.s32.totalorder %s11, 1
    %p113 = scmp.ne.s32.totalorder %s108, %s110
    %p114 = scmp.eq.s32.totalorder %s11, 0
    %p115 = por %p113, %p114
    %p116 = scmp.ne.s32.totalorder %s108, %s110
    %p117 = scmp.eq.s32.totalorder %s16, 1
    %p118 = por %p116, %p117
    %p119 = scmp.ne.s32.totalorder %s110, %s111
    %p120 = scmp.eq.s32.totalorder %s16, 0
    %p121 = por %p119, %p120
    %p122 = scmp.ne.s32.totalorder %s110, %s111
    %p123 = scmp.eq.s32.totalorder %s17, 1
    %p124 = por %p122, %p123
    %p126 = scmp.ne.s32.totalorder %s111, %s125
    %p127 = scmp.eq.s32.totalorder %s17, 0
    %p128 = por %p126, %p127
    %s129 = ssub.s32 %s11, %s18
    %p130 = scmp.eq.s32.totalorder %s129, 0
    %s132 = sadd.s32 %s131, 1
    %s133 = scalar_select %p130, %s131, %s132
    %p136 = pneg %p130
    %p137 = scmp.eq.s32.totalorder %s11, 1
    %p138 = por %p136, %p137
    %p139 = scmp.ne.s32.totalorder %s131, %s134
    %p140 = scmp.eq.s32.totalorder %s11, 0
    %p141 = por %p139, %p140
    %p142 = scmp.ne.s32.totalorder %s131, %s134
    %p143 = scmp.eq.s32.totalorder %s16, 1
    %p144 = por %p142, %p143
    %p145 = scmp.ne.s32.totalorder %s134, %s135
    %p146 = scmp.eq.s32.totalorder %s16, 0
    %p147 = por %p145, %p146
    %p148 = scmp.ne.s32.totalorder %s134, %s135
    %p149 = scmp.eq.s32.totalorder %s17, 1
    %p150 = por %p148, %p149
    %p152 = scmp.ne.s32.totalorder %s135, %s151
    %p153 = scmp.eq.s32.totalorder %s17, 0
    %p154 = por %p152, %p153
    %p155 = scmp.le.s32.totalorder 1, %s11
    %p156 = scmp.lt.s32.totalorder %s11, 3
    %p157 = pnand %p155, %p156
    %p158 = pneg %p157
    // Predicated region
    $region9: #{tpu_custom_call.1} parent=5 // pred_check
      _
    $region10: #{tpu_custom_call.1} parent=5 // pred_check_branch
      %160 = sbr.rel (%p157) target = $region12
    $region11: #{tpu_custom_call.1} parent=5 // pred_region
      %s161 = ssub.s32 %s11, 1
      // Predicated region
      $region13: #{tpu_custom_call.1} parent=11 // pred_check
        %p162 = pneg %p58
      $region14: #{tpu_custom_call.1} parent=11 // pred_check_branch
        %164 = sbr.rel (%p162) target = $region16
      $region15: #{tpu_custom_call.1} parent=11 // pred_region
        _
      $region16: #{tpu_custom_call.1} parent=11 // pred_fallthru
        _
      // Predicated region
      $region17: #{tpu_custom_call.1} parent=11 // pred_check
        %p165 = pneg %p79
      $region18: #{tpu_custom_call.1} parent=11 // pred_check_branch
        %167 = sbr.rel (%p165) target = $region20
      $region19: #{tpu_custom_call.1} parent=11 // pred_region
        _
      $region20: #{tpu_custom_call.1} parent=11 // pred_fallthru
        _
      // Predicated region
      $region21: #{tpu_custom_call.1} parent=11 // pred_check
        %p168 = pneg %p100
      $region22: #{tpu_custom_call.1} parent=11 // pred_check_branch
        %170 = sbr.rel (%p168) target = $region24
      $region23: #{tpu_custom_call.1} parent=11 // pred_region
        _
      $region24: #{tpu_custom_call.1} parent=11 // pred_fallthru
        _
      // Predicated region
      $region25: #{tpu_custom_call.1} parent=11 // pred_check
        %p171 = pneg %p121
      $region26: #{tpu_custom_call.1} parent=11 // pred_check_branch
        %173 = sbr.rel (%p171) target = $region28
      $region27: #{tpu_custom_call.1} parent=11 // pred_region
        _
      $region28: #{tpu_custom_call.1} parent=11 // pred_fallthru
        _
    $region12: #{tpu_custom_call.1} parent=5 // pred_fallthru
      _
    %p174 = scmp.lt.s32.totalorder %s11, 2
    // Predicated region
    $region29: #{tpu_custom_call.1} parent=5 // pred_check
      %p175 = pneg %p174
    $region30: #{tpu_custom_call.1} parent=5 // pred_check_branch
      %177 = sbr.rel (%p175) target = $region32
    $region31: #{tpu_custom_call.1} parent=5 // pred_region
      // Predicated region
      $region33: #{tpu_custom_call.1} parent=31 // pred_check
        %p178 = pneg %p31
      $region34: #{tpu_custom_call.1} parent=31 // pred_check_branch
        %180 = sbr.rel (%p178) target = $region36
      $region35: #{tpu_custom_call.1} parent=31 // pred_region
        %s181 = smul.u32 16, %s11
        %p182 = scmp.lt.s32.totalorder %s181, 31
        %s183 = scalar_select %p182, %s181, 31
        %s184 = smul.addr %s183, 3
        %s185 = smul.addr %s184, 4
        %s186 = scalar_lea.vmem %s0, %s185
        %s187 = smul.u32 16, %s11
      $region36: #{tpu_custom_call.1} parent=31 // pred_fallthru
        _
    $region32: #{tpu_custom_call.1} parent=5 // pred_fallthru
      _
    %p188 = scmp.le.s32.totalorder 1, %s11
    %p189 = scmp.lt.s32.totalorder %s11, 3
    %p190 = pnand %p188, %p189
    %p191 = pneg %p190
    // Predicated region
    $region37: #{tpu_custom_call.1} parent=5 // pred_check
      _
    $region38: #{tpu_custom_call.1} parent=5 // pred_check_branch
      %193 = sbr.rel (%p190) target = $region40
    $region39: #{tpu_custom_call.1} parent=5 // pred_region
      %s194 = ssub.s32 %s11, 1
      %s195 = smul.u32 16, %s16
      %p196 = scmp.lt.s32.totalorder %s195, 31
      %s197 = scalar_select %p196, %s195, 31
      %s198 = smul.addr %s197, 3
      %s199 = smul.addr %s198, 4
      %s200 = scalar_lea.vmem %s0, %s199
      %p201 = pneg %p37
      %p202 = pneg %p34
      %p203 = pneg %p58
      %p204 = pneg %p55
      %p205 = pneg %p79
      %p206 = pneg %p76
      %p207 = pneg %p100
      %p208 = pneg %p97
      %p209 = pneg %p121
      %p210 = pneg %p118
      %p211 = pneg %p147
      %p212 = pneg %p144
      %s213 = smul.u32 16, %s16
      %p214 = scmp.lt.s32.totalorder %s213, 31
      %s215 = scalar_select %p214, %s213, 31
      %s216 = smul.addr %s215, 7
      %s217 = smul.addr %s216, 8
      %s218 = scalar_lea.vmem %s5, %s217
      %s219 = smul.u32 16, %s16
      %p220 = scmp.lt.s32.totalorder %s219, 31
      %s221 = scalar_select %p220, %s219, 31
      %s222 = smul.addr %s221, 3
      %s223 = smul.addr %s222, 4
      %s224 = scalar_lea.vmem %s0, %s223
      %s225 = smul.u32 16, %s16
      %s226 = smul.u32 16, %s16
      %p227 = scmp.lt.s32.totalorder %s226, 31
      %s228 = scalar_select %p227, %s226, 31
      %s229 = smul.addr %s228, 7
      %s230 = smul.addr %s229, 8
      %s231 = scalar_lea.vmem %s5, %s230
      %s232 = smul.u32 16, %s16
      %v234 = vld [vmem:[%s224] sm:$0xff]
      %v235 = vld [vmem:[%s224 + $0x8] sm:$0xf]
      %v236 = vld [vmem:[%s224 + $0xc] sm:$0xff]
      %v237 = vld [vmem:[%s224 + $0x14] sm:$0xf]
      %v238 = vld [vmem:[%s224 + $0x18] sm:$0xff]
      %v239 = vld [vmem:[%s224 + $0x20] sm:$0xf]
      %v240 = vld [vmem:[%s224 + $0x24] sm:$0xff]
      %v241 = vld [vmem:[%s224 + $0x2c] sm:$0xf]
      %v242 = vld [vmem:[%s224 + $0x30] sm:$0xff]
      %v243 = vld [vmem:[%s224 + $0x38] sm:$0xf]
      %v244 = vld [vmem:[%s224 + $0x3c] sm:$0xff]
      %v245 = vld [vmem:[%s224 + $0x44] sm:$0xf]
      %v246 = vld [vmem:[%s224 + $0x48] sm:$0xff]
      %v247 = vld [vmem:[%s224 + $0x50] sm:$0xf]
      %v248 = vld [vmem:[%s224 + $0x54] sm:$0xff]
      %v249 = vld [vmem:[%s224 + $0x5c] sm:$0xf]
      %v250 = vld [vmem:[%s224 + $0x60] sm:$0xff]
      %v251 = vld [vmem:[%s224 + $0x68] sm:$0xf]
      %v252 = vld [vmem:[%s224 + $0x6c] sm:$0xff]
      %v253 = vld [vmem:[%s224 + $0x74] sm:$0xf]
      %v254 = vld [vmem:[%s224 + $0x78] sm:$0xff]
      %v255 = vld [vmem:[%s224 + $0x80] sm:$0xf]
      %v256 = vld [vmem:[%s224 + $0x84] sm:$0xff]
      %v257 = vld [vmem:[%s224 + $0x8c] sm:$0xf]
      %v258 = vld [vmem:[%s224 + $0x90] sm:$0xff]
      %v259 = vld [vmem:[%s224 + $0x98] sm:$0xf]
      %v260 = vld [vmem:[%s224 + $0x9c] sm:$0xff]
      %v261 = vld [vmem:[%s224 + $0xa4] sm:$0xf]
      %v262 = vld [vmem:[%s224 + $0xa8] sm:$0xff]
      %v263 = vld [vmem:[%s224 + $0xb0] sm:$0xf]
      %v264 = vld [vmem:[%s224 + $0xb4] sm:$0xff]
      %v265 = vld [vmem:[%s224 + $0xbc] sm:$0xf]
      %v266 = vld [vmem:[%s1] sm:$0xff]
      %v267 = vld [vmem:[%s1 + $0x8] sm:$0xff]
      %v268 = vld [vmem:[%s1 + $0x10] sm:$0xff]
      %v269 = vld [vmem:[%s1 + $0x18] sm:$0xff]
      %v270 = vld [vmem:[%s1 + $0x20] sm:$0xff]
      %v271 = vld [vmem:[%s1 + $0x28] sm:$0xff]
      %v272 = vld [vmem:[%s1 + $0x30] sm:$0xff]
      %v273 = vld [vmem:[%s1 + $0x38] sm:$0xff]
      %v274 = vld [vmem:[%s1 + $0x40] sm:$0xff]
      %v275 = vld [vmem:[%s1 + $0x48] sm:$0xff]
      %v276 = vld [vmem:[%s1 + $0x50] sm:$0xff]
      %v277 = vld [vmem:[%s1 + $0x58] sm:$0xff]
      %v278 = vld [vmem:[%s1 + $0x60] sm:$0xff]
      %v279 = vld [vmem:[%s1 + $0x68] sm:$0xff]
      %v280 = vld [vmem:[%s1 + $0x70] sm:$0xff]
      %v281 = vld [vmem:[%s1 + $0x78] sm:$0xff]
      %v282 = vld [vmem:[%s1 + $0x80] sm:$0xff]
      %v283 = vld [vmem:[%s1 + $0x88] sm:$0xff]
      %v284 = vld [vmem:[%s1 + $0x90] sm:$0xff]
      %v285 = vld [vmem:[%s1 + $0x98] sm:$0xff]
      %v286 = vld [vmem:[%s1 + $0xa0] sm:$0xff]
      %v287 = vld [vmem:[%s1 + $0xa8] sm:$0xff]
      %v288 = vld [vmem:[%s1 + $0xb0] sm:$0xff]
      %v289 = vld [vmem:[%s1 + $0xb8] sm:$0xff]
      %v290 = vld [vmem:[%s1 + $0xc0] sm:$0xff]
      %v291 = vld [vmem:[%s1 + $0xc8] sm:$0xff]
      %v292 = vld [vmem:[%s1 + $0xd0] sm:$0xff]
      %v293 = vld [vmem:[%s1 + $0xd8] sm:$0xff]
      %v294 = vld [vmem:[%s1 + $0xe0] sm:$0xff]
      %v295 = vld [vmem:[%s1 + $0xe8] sm:$0xff]
      %v296 = vld [vmem:[%s1 + $0xf0] sm:$0xff]
      %v297 = vld [vmem:[%s1 + $0xf8] sm:$0xff]
      %v298 = vld [vmem:[%s1 + $0x100] sm:$0xff]
      %v299 = vld [vmem:[%s1 + $0x108] sm:$0xff]
      %v300 = vld [vmem:[%s1 + $0x110] sm:$0xff]
      %v301 = vld [vmem:[%s1 + $0x118] sm:$0xff]
      %v302 = vld [vmem:[%s1 + $0x120] sm:$0xff]
      %v303 = vld [vmem:[%s1 + $0x128] sm:$0xff]
      %v304 = vld [vmem:[%s1 + $0x130] sm:$0xff]
      %v305 = vld [vmem:[%s1 + $0x138] sm:$0xff]
      %v306 = vld [vmem:[%s1 + $0x140] sm:$0xff]
      %v307 = vld [vmem:[%s1 + $0x148] sm:$0xff]
      %v308 = vld [vmem:[%s1 + $0x150] sm:$0xff]
      %v309 = vld [vmem:[%s1 + $0x158] sm:$0xff]
      %v310 = vld [vmem:[%s1 + $0x160] sm:$0xff]
      %v311 = vld [vmem:[%s1 + $0x168] sm:$0xff]
      %v312 = vld [vmem:[%s1 + $0x170] sm:$0xff]
      %v313 = vld [vmem:[%s1 + $0x178] sm:$0xff]
      %v314 = vld [vmem:[%s1 + $0x180] sm:$0xff]
      %v315 = vld [vmem:[%s1 + $0x188] sm:$0xff]
      %v316 = vld [vmem:[%s1 + $0x190] sm:$0xff]
      %v317 = vld [vmem:[%s1 + $0x198] sm:$0xff]
      %v318 = vld [vmem:[%s1 + $0x1a0] sm:$0xff]
      %v319 = vld [vmem:[%s1 + $0x1a8] sm:$0xff]
      %v320 = vld [vmem:[%s1 + $0x1b0] sm:$0xff]
      %v321 = vld [vmem:[%s1 + $0x1b8] sm:$0xff]
      %v322 = vld [vmem:[%s1 + $0x1c0] sm:$0xff]
      %v323 = vld [vmem:[%s1 + $0x1c8] sm:$0xff]
      %v324 = vld [vmem:[%s1 + $0x1d0] sm:$0xff]
      %v325 = vld [vmem:[%s1 + $0x1d8] sm:$0xff]
      %v326 = vld [vmem:[%s1 + $0x1e0] sm:$0xff]
      %v327 = vld [vmem:[%s1 + $0x1e8] sm:$0xff]
      %v328 = vld [vmem:[%s1 + $0x1f0] sm:$0xff]
      %v329 = vld [vmem:[%s1 + $0x1f8] sm:$0xff]
      %v330 = vld [vmem:[%s1 + $0x200] sm:$0xff]
      %v331 = vld [vmem:[%s1 + $0x208] sm:$0xff]
      %v332 = vld [vmem:[%s1 + $0x210] sm:$0xff]
      %v333 = vld [vmem:[%s1 + $0x218] sm:$0xff]
      %v334 = vld [vmem:[%s1 + $0x220] sm:$0xff]
      %v335 = vld [vmem:[%s1 + $0x228] sm:$0xff]
      %v336 = vld [vmem:[%s1 + $0x230] sm:$0xff]
      %v337 = vld [vmem:[%s1 + $0x238] sm:$0xff]
      %v338 = vld [vmem:[%s1 + $0x240] sm:$0xff]
      %v339 = vld [vmem:[%s1 + $0x248] sm:$0xff]
      %v340 = vld [vmem:[%s1 + $0x250] sm:$0x33]
      %v341 = vld [vmem:[%s1 + $0x258] sm:$0x33]
      %v342 = vld [vmem:[%s2] sm:$0xf]
      %v344 = vlaneseq
      %v345 = vshrl.u32 %v344, 7
      %v346 = vsub.s32 0, %v345
      %v347 = vrot.slane %v342, %v346
      %v348 = vlaneseq
      %v349 = vshrl.u32 %v348, 7
      %v350 = vsub.s32 1, %v349
      %v351 = vrot.slane %v342, %v350
      %v352 = vlaneseq
      %v353 = vshrl.u32 %v352, 7
      %v354 = vsub.s32 2, %v353
      %v355 = vrot.slane %v342, %v354
      %v356 = vlaneseq
      %v357 = vshrl.u32 %v356, 7
      %v358 = vsub.s32 3, %v357
      %v359 = vrot.slane %v342, %v358
      %v396 = vunpack.c.l.b16 %v234
      %v397 = vunpack.c.h.b16 %v234
      %v398 = vunpack.c.l.b16 %v235
      %v399 = vunpack.c.l.b16 %v236
      %v400 = vunpack.c.h.b16 %v236
      %v401 = vunpack.c.l.b16 %v237
      %v402 = vunpack.c.l.b16 %v238
      %v403 = vunpack.c.h.b16 %v238
      %v404 = vunpack.c.l.b16 %v239
      %v405 = vunpack.c.l.b16 %v240
      %v406 = vunpack.c.h.b16 %v240
      %v407 = vunpack.c.l.b16 %v241
      %v408 = vunpack.c.l.b16 %v242
      %v409 = vunpack.c.h.b16 %v242
      %v410 = vunpack.c.l.b16 %v243
      %v411 = vunpack.c.l.b16 %v244
      %v412 = vunpack.c.h.b16 %v244
      %v413 = vunpack.c.l.b16 %v245
      %v414 = vunpack.c.l.b16 %v246
      %v415 = vunpack.c.h.b16 %v246
      %v416 = vunpack.c.l.b16 %v247
      %v417 = vunpack.c.l.b16 %v248
      %v418 = vunpack.c.h.b16 %v248
      %v419 = vunpack.c.l.b16 %v249
      %v420 = vunpack.c.l.b16 %v250
      %v421 = vunpack.c.h.b16 %v250
      %v422 = vunpack.c.l.b16 %v251
      %v423 = vunpack.c.l.b16 %v252
      %v424 = vunpack.c.h.b16 %v252
      %v425 = vunpack.c.l.b16 %v253
      %v426 = vunpack.c.l.b16 %v254
      %v427 = vunpack.c.h.b16 %v254
      %v428 = vunpack.c.l.b16 %v255
      %v429 = vunpack.c.l.b16 %v256
      %v430 = vunpack.c.h.b16 %v256
      %v431 = vunpack.c.l.b16 %v257
      %v432 = vunpack.c.l.b16 %v258
      %v433 = vunpack.c.h.b16 %v258
      %v434 = vunpack.c.l.b16 %v259
      %v435 = vunpack.c.l.b16 %v260
      %v436 = vunpack.c.h.b16 %v260
      %v437 = vunpack.c.l.b16 %v261
      %v438 = vunpack.c.l.b16 %v262
      %v439 = vunpack.c.h.b16 %v262
      %v440 = vunpack.c.l.b16 %v263
      %v441 = vunpack.c.l.b16 %v264
      %v442 = vunpack.c.h.b16 %v264
      %v443 = vunpack.c.l.b16 %v265
      %v444 = vpack.c.b16 %v399, %v396
      %v445 = vpack.c.b16 %v400, %v397
      %v446 = vpack.c.b16 %v401, %v398
      %v447 = vpack.c.b16 %v405, %v402
      %v448 = vpack.c.b16 %v406, %v403
      %v449 = vpack.c.b16 %v407, %v404
      %v450 = vpack.c.b16 %v411, %v408
      %v451 = vpack.c.b16 %v412, %v409
      %v452 = vpack.c.b16 %v413, %v410
      %v453 = vpack.c.b16 %v417, %v414
      %v454 = vpack.c.b16 %v418, %v415
      %v455 = vpack.c.b16 %v419, %v416
      %v456 = vpack.c.b16 %v423, %v420
      %v457 = vpack.c.b16 %v424, %v421
      %v458 = vpack.c.b16 %v425, %v422
      %v459 = vpack.c.b16 %v429, %v426
      %v460 = vpack.c.b16 %v430, %v427
      %v461 = vpack.c.b16 %v431, %v428
      %v462 = vpack.c.b16 %v435, %v432
      %v463 = vpack.c.b16 %v436, %v433
      %v464 = vpack.c.b16 %v437, %v434
      %v465 = vpack.c.b16 %v441, %v438
      %v466 = vpack.c.b16 %v442, %v439
      %v467 = vpack.c.b16 %v443, %v440
      %v560 = vunpack.c.l.b16 %v266
      %v561 = vunpack.c.h.b16 %v266
      %v562 = vunpack.c.l.b16 %v267
      %v563 = vunpack.c.h.b16 %v267
      %v564 = vunpack.c.l.b16 %v268
      %v565 = vunpack.c.h.b16 %v268
      %v566 = vunpack.c.l.b16 %v269
      %v567 = vunpack.c.h.b16 %v269
      %v568 = vunpack.c.l.b16 %v270
      %v569 = vunpack.c.h.b16 %v270
      %v570 = vunpack.c.l.b16 %v271
      %v571 = vunpack.c.h.b16 %v271
      %v572 = vunpack.c.l.b16 %v272
      %v573 = vunpack.c.h.b16 %v272
      %v574 = vunpack.c.l.b16 %v273
      %v575 = vunpack.c.h.b16 %v273
      %v576 = vunpack.c.l.b16 %v274
      %v577 = vunpack.c.h.b16 %v274
      %v578 = vunpack.c.l.b16 %v275
      %v579 = vunpack.c.h.b16 %v275
      %v580 = vunpack.c.l.b16 %v276
      %v581 = vunpack.c.h.b16 %v276
      %v582 = vunpack.c.l.b16 %v277
      %v583 = vunpack.c.h.b16 %v277
      %v584 = vunpack.c.l.b16 %v278
      %v585 = vunpack.c.h.b16 %v278
      %v586 = vunpack.c.l.b16 %v279
      %v587 = vunpack.c.h.b16 %v279
      %v588 = vunpack.c.l.b16 %v280
      %v589 = vunpack.c.h.b16 %v280
      %v590 = vunpack.c.l.b16 %v281
      %v591 = vunpack.c.h.b16 %v281
      %v592 = vunpack.c.l.b16 %v282
      %v593 = vunpack.c.h.b16 %v282
      %v594 = vunpack.c.l.b16 %v283
      %v595 = vunpack.c.h.b16 %v283
      %v596 = vunpack.c.l.b16 %v284
      %v597 = vunpack.c.h.b16 %v284
      %v598 = vunpack.c.l.b16 %v285
      %v599 = vunpack.c.h.b16 %v285
      %v600 = vunpack.c.l.b16 %v286
      %v601 = vunpack.c.h.b16 %v286
      %v602 = vunpack.c.l.b16 %v287
      %v603 = vunpack.c.h.b16 %v287
      %v604 = vunpack.c.l.b16 %v288
      %v605 = vunpack.c.h.b16 %v288
      %v606 = vunpack.c.l.b16 %v289
      %v607 = vunpack.c.h.b16 %v289
      %v608 = vunpack.c.l.b16 %v290
      %v609 = vunpack.c.h.b16 %v290
      %v610 = vunpack.c.l.b16 %v291
      %v611 = vunpack.c.h.b16 %v291
      %v612 = vunpack.c.l.b16 %v292
      %v613 = vunpack.c.h.b16 %v292
      %v614 = vunpack.c.l.b16 %v293
      %v615 = vunpack.c.h.b16 %v293
      %v616 = vunpack.c.l.b16 %v294
      %v617 = vunpack.c.h.b16 %v294
      %v618 = vunpack.c.l.b16 %v295
      %v619 = vunpack.c.h.b16 %v295
      %v620 = vunpack.c.l.b16 %v296
      %v621 = vunpack.c.h.b16 %v296
      %v622 = vunpack.c.l.b16 %v297
      %v623 = vunpack.c.h.b16 %v297
      %v624 = vunpack.c.l.b16 %v298
      %v625 = vunpack.c.h.b16 %v298
      %v626 = vunpack.c.l.b16 %v299
      %v627 = vunpack.c.h.b16 %v299
      %v628 = vunpack.c.l.b16 %v300
      %v629 = vunpack.c.h.b16 %v300
      %v630 = vunpack.c.l.b16 %v301
      %v631 = vunpack.c.h.b16 %v301
      %v632 = vunpack.c.l.b16 %v302
      %v633 = vunpack.c.h.b16 %v302
      %v634 = vunpack.c.l.b16 %v303
      %v635 = vunpack.c.h.b16 %v303
      %v636 = vunpack.c.l.b16 %v304
      %v637 = vunpack.c.h.b16 %v304
      %v638 = vunpack.c.l.b16 %v305
      %v639 = vunpack.c.h.b16 %v305
      %v640 = vunpack.c.l.b16 %v306
      %v641 = vunpack.c.h.b16 %v306
      %v642 = vunpack.c.l.b16 %v307
      %v643 = vunpack.c.h.b16 %v307
      %v644 = vunpack.c.l.b16 %v308
      %v645 = vunpack.c.h.b16 %v308
      %v646 = vunpack.c.l.b16 %v309
      %v647 = vunpack.c.h.b16 %v309
      %v648 = vunpack.c.l.b16 %v310
      %v649 = vunpack.c.h.b16 %v310
      %v650 = vunpack.c.l.b16 %v311
      %v651 = vunpack.c.h.b16 %v311
      %v652 = vunpack.c.l.b16 %v312
      %v653 = vunpack.c.h.b16 %v312
      %v654 = vunpack.c.l.b16 %v313
      %v655 = vunpack.c.h.b16 %v313
      %v656 = vunpack.c.l.b16 %v314
      %v657 = vunpack.c.h.b16 %v314
      %v658 = vunpack.c.l.b16 %v315
      %v659 = vunpack.c.h.b16 %v315
      %v660 = vunpack.c.l.b16 %v316
      %v661 = vunpack.c.h.b16 %v316
      %v662 = vunpack.c.l.b16 %v317
      %v663 = vunpack.c.h.b16 %v317
      %v664 = vunpack.c.l.b16 %v318
      %v665 = vunpack.c.h.b16 %v318
      %v666 = vunpack.c.l.b16 %v319
      %v667 = vunpack.c.h.b16 %v319
      %v668 = vunpack.c.l.b16 %v320
      %v669 = vunpack.c.h.b16 %v320
      %v670 = vunpack.c.l.b16 %v321
      %v671 = vunpack.c.h.b16 %v321
      %v672 = vunpack.c.l.b16 %v322
      %v673 = vunpack.c.h.b16 %v322
      %v674 = vunpack.c.l.b16 %v323
      %v675 = vunpack.c.h.b16 %v323
      %v676 = vunpack.c.l.b16 %v324
      %v677 = vunpack.c.h.b16 %v324
      %v678 = vunpack.c.l.b16 %v325
      %v679 = vunpack.c.h.b16 %v325
      %v680 = vunpack.c.l.b16 %v326
      %v681 = vunpack.c.h.b16 %v326
      %v682 = vunpack.c.l.b16 %v327
      %v683 = vunpack.c.h.b16 %v327
      %v684 = vunpack.c.l.b16 %v328
      %v685 = vunpack.c.h.b16 %v328
      %v686 = vunpack.c.l.b16 %v329
      %v687 = vunpack.c.h.b16 %v329
      %v688 = vunpack.c.l.b16 %v330
      %v689 = vunpack.c.h.b16 %v330
      %v690 = vunpack.c.l.b16 %v331
      %v691 = vunpack.c.h.b16 %v331
      %v692 = vunpack.c.l.b16 %v332
      %v693 = vunpack.c.h.b16 %v332
      %v694 = vunpack.c.l.b16 %v333
      %v695 = vunpack.c.h.b16 %v333
      %v696 = vunpack.c.l.b16 %v334
      %v697 = vunpack.c.h.b16 %v334
      %v698 = vunpack.c.l.b16 %v335
      %v699 = vunpack.c.h.b16 %v335
      %v700 = vunpack.c.l.b16 %v336
      %v701 = vunpack.c.h.b16 %v336
      %v702 = vunpack.c.l.b16 %v337
      %v703 = vunpack.c.h.b16 %v337
      %v704 = vunpack.c.l.b16 %v338
      %v705 = vunpack.c.h.b16 %v338
      %v706 = vunpack.c.l.b16 %v339
      %v707 = vunpack.c.h.b16 %v339
      %v708 = vunpack.c.l.b16 %v340
      %v709 = vunpack.c.h.b16 %v340
      %v710 = vunpack.c.l.b16 %v341
      %v711 = vunpack.c.h.b16 %v341
      %v712 = vpack.c.b16 %v564, %v560
      %v713 = vpack.c.b16 %v565, %v561
      %v714 = vpack.c.b16 %v566, %v562
      %v715 = vpack.c.b16 %v567, %v563
      %v716 = vpack.c.b16 %v572, %v568
      %v717 = vpack.c.b16 %v573, %v569
      %v718 = vpack.c.b16 %v574, %v570
      %v719 = vpack.c.b16 %v575, %v571
      %v720 = vpack.c.b16 %v580, %v576
      %v721 = vpack.c.b16 %v581, %v577
      %v722 = vpack.c.b16 %v582, %v578
      %v723 = vpack.c.b16 %v583, %v579
      %v724 = vpack.c.b16 %v588, %v584
      %v725 = vpack.c.b16 %v589, %v585
      %v726 = vpack.c.b16 %v590, %v586
      %v727 = vpack.c.b16 %v591, %v587
      %v728 = vpack.c.b16 %v596, %v592
      %v729 = vpack.c.b16 %v597, %v593
      %v730 = vpack.c.b16 %v598, %v594
      %v731 = vpack.c.b16 %v599, %v595
      %v732 = vpack.c.b16 %v604, %v600
      %v733 = vpack.c.b16 %v605, %v601
      %v734 = vpack.c.b16 %v606, %v602
      %v735 = vpack.c.b16 %v607, %v603
      %v736 = vpack.c.b16 %v612, %v608
      %v737 = vpack.c.b16 %v613, %v609
      %v738 = vpack.c.b16 %v614, %v610
      %v739 = vpack.c.b16 %v615, %v611
      %v740 = vpack.c.b16 %v620, %v616
      %v741 = vpack.c.b16 %v621, %v617
      %v742 = vpack.c.b16 %v622, %v618
      %v743 = vpack.c.b16 %v623, %v619
      %v744 = vpack.c.b16 %v628, %v624
      %v745 = vpack.c.b16 %v629, %v625
      %v746 = vpack.c.b16 %v630, %v626
      %v747 = vpack.c.b16 %v631, %v627
      %v748 = vpack.c.b16 %v636, %v632
      %v749 = vpack.c.b16 %v637, %v633
      %v750 = vpack.c.b16 %v638, %v634
      %v751 = vpack.c.b16 %v639, %v635
      %v752 = vpack.c.b16 %v644, %v640
      %v753 = vpack.c.b16 %v645, %v641
      %v754 = vpack.c.b16 %v646, %v642
      %v755 = vpack.c.b16 %v647, %v643
      %v756 = vpack.c.b16 %v652, %v648
      %v757 = vpack.c.b16 %v653, %v649
      %v758 = vpack.c.b16 %v654, %v650
      %v759 = vpack.c.b16 %v655, %v651
      %v760 = vpack.c.b16 %v660, %v656
      %v761 = vpack.c.b16 %v661, %v657
      %v762 = vpack.c.b16 %v662, %v658
      %v763 = vpack.c.b16 %v663, %v659
      %v764 = vpack.c.b16 %v668, %v664
      %v765 = vpack.c.b16 %v669, %v665
      %v766 = vpack.c.b16 %v670, %v666
      %v767 = vpack.c.b16 %v671, %v667
      %v768 = vpack.c.b16 %v676, %v672
      %v769 = vpack.c.b16 %v677, %v673
      %v770 = vpack.c.b16 %v678, %v674
      %v771 = vpack.c.b16 %v679, %v675
      %v772 = vpack.c.b16 %v684, %v680
      %v773 = vpack.c.b16 %v685, %v681
      %v774 = vpack.c.b16 %v686, %v682
      %v775 = vpack.c.b16 %v687, %v683
      %v776 = vpack.c.b16 %v692, %v688
      %v777 = vpack.c.b16 %v693, %v689
      %v778 = vpack.c.b16 %v694, %v690
      %v779 = vpack.c.b16 %v695, %v691
      %v780 = vpack.c.b16 %v700, %v696
      %v781 = vpack.c.b16 %v701, %v697
      %v782 = vpack.c.b16 %v702, %v698
      %v783 = vpack.c.b16 %v703, %v699
      %v784 = vpack.c.b16 %v708, %v704
      %v785 = vpack.c.b16 %v709, %v705
      %v786 = vpack.c.b16 %v710, %v706
      %v787 = vpack.c.b16 %v711, %v707
      %vm860 = vcmask 359424
      %v862 = vsel %vm860, %v446, 0
      %v865 = vsel %vm860, %v449, 0
      %v868 = vsel %vm860, %v452, 0
      %v871 = vsel %vm860, %v455, 0
      %v874 = vsel %vm860, %v458, 0
      %v877 = vsel %vm860, %v461, 0
      %v880 = vsel %vm860, %v464, 0
      %v883 = vsel %vm860, %v467, 0
      %vm885 = vcmask 1045504
      %v887 = vsel %vm885, %v784, 0
      %v890 = vsel %vm885, %v785, 0
      %v893 = vsel %vm885, %v786, 0
      %v896 = vsel %vm885, %v787, 0
      %898 = vmatprep.subr.bf16.mxu0 %v713
      %899 = vmatpush1.bf16.msra.mxu0 %v712
      %900 = vmatprep.subr.bf16.mxu0 %v717
      %901 = vmatpush1.bf16.msra.mxu0 %v716
      %902 = vmatprep.subr.bf16.mxu0 %v721
      %903 = vmatpush1.bf16.msra.mxu0 %v720
      %904 = vmatprep.subr.bf16.mxu0 %v725
      %905 = vmatpush1.bf16.msra.mxu0 %v724
      %906 = vmatprep.subr.bf16.mxu0 %v729
      %907 = vmatpush1.bf16.msra.mxu0 %v728
      %908 = vmatprep.subr.bf16.mxu0 %v733
      %909 = vmatpush1.bf16.msra.mxu0 %v732
      %910 = vmatprep.subr.bf16.mxu0 %v737
      %911 = vmatpush1.bf16.msra.mxu0 %v736
      %912 = vmatprep.subr.bf16.mxu0 %v741
      %913 = vmatpush1.bf16.msra.mxu0 %v740
      %914 = vmatprep.subr.bf16.mxu0 %v745
      %915 = vmatpush1.bf16.msra.mxu0 %v744
      %916 = vmatprep.subr.bf16.mxu0 %v749
      %917 = vmatpush1.bf16.msra.mxu0 %v748
      %918 = vmatprep.subr.bf16.mxu0 %v753
      %919 = vmatpush1.bf16.msra.mxu0 %v752
      %920 = vmatprep.subr.bf16.mxu0 %v757
      %921 = vmatpush1.bf16.msra.mxu0 %v756
      %922 = vmatprep.subr.bf16.mxu0 %v761
      %923 = vmatpush1.bf16.msra.mxu0 %v760
      %924 = vmatprep.subr.bf16.mxu0 %v765
      %925 = vmatpush1.bf16.msra.mxu0 %v764
      %926 = vmatprep.subr.bf16.mxu0 %v769
      %927 = vmatpush1.bf16.msra.mxu0 %v768
      %928 = vmatprep.subr.bf16.mxu0 %v773
      %929 = vmatpush1.bf16.msra.mxu0 %v772
      %930 = vmatprep.mubr.bf16.mxu0 %v445
      %931 = vmatmul.mubr.bf16.gmra.mrb[0].mxu0 %v444
      %v932 = vpop.f32.mrb[0].mxu0
      %v933 = vadd.f32 %v347, %v932
      %v934 = vpop.f32.mrb[0].mxu0
      %v935 = vadd.f32 %v351, %v934
      %v936 = vpop.f32.mrb[0].mxu0
      %v937 = vadd.f32 %v347, %v936
      %v938 = vpop.f32.mrb[0].mxu0
      %v939 = vadd.f32 %v351, %v938
      %940 = vmatprep.mubr.bf16.mxu0 %v448
      %941 = vmatmul.mubr.bf16.gmra.mrb[0].mxu0 %v447
      %v942 = vpop.f32.mrb[0].mxu0
      %v943 = vadd.f32 %v347, %v942
      %v944 = vpop.f32.mrb[0].mxu0
      %v945 = vadd.f32 %v351, %v944
      %v946 = vpop.f32.mrb[0].mxu0
      %v947 = vadd.f32 %v347, %v946
      %v948 = vpop.f32.mrb[0].mxu0
      %v949 = vadd.f32 %v351, %v948
      %950 = vmatprep.mubr.bf16.mxu0 %v451
      %951 = vmatmul.mubr.bf16.gmra.mrb[0].mxu0 %v450
      %v952 = vpop.f32.mrb[0].mxu0
      %v953 = vadd.f32 %v347, %v952
      %v954 = vpop.f32.mrb[0].mxu0
      %v955 = vadd.f32 %v351, %v954
      %v956 = vpop.f32.mrb[0].mxu0
      %v957 = vadd.f32 %v347, %v956
      %v958 = vpop.f32.mrb[0].mxu0
      %v959 = vadd.f32 %v351, %v958
      %960 = vmatprep.mubr.bf16.mxu0 %v454
      %961 = vmatmul.mubr.bf16.gmra.mrb[0].mxu0 %v453
      %v962 = vpop.f32.mrb[0].mxu0
      %v963 = vadd.f32 %v347, %v962
      %v964 = vpop.f32.mrb[0].mxu0
      %v965 = vadd.f32 %v351, %v964
      %v966 = vpop.f32.mrb[0].mxu0
      %v967 = vadd.f32 %v347, %v966
      %v968 = vpop.f32.mrb[0].mxu0
      %v969 = vadd.f32 %v351, %v968
      %970 = vmatprep.mubr.bf16.mxu0 %v457
      %971 = vmatmul.mubr.bf16.gmra.mrb[0].mxu0 %v456
      %v972 = vpop.f32.mrb[0].mxu0
      %v973 = vadd.f32 %v347, %v972
      %v974 = vpop.f32.mrb[0].mxu0
      %v975 = vadd.f32 %v351, %v974
      %v976 = vpop.f32.mrb[0].mxu0
      %v977 = vadd.f32 %v347, %v976
      %v978 = vpop.f32.mrb[0].mxu0
      %v979 = vadd.f32 %v351, %v978
      %980 = vmatprep.mubr.bf16.mxu0 %v460
      %981 = vmatmul.mubr.bf16.gmra.mrb[0].mxu0 %v459
      %v982 = vpop.f32.mrb[0].mxu0
      %v983 = vadd.f32 %v347, %v982
      %v984 = vpop.f32.mrb[0].mxu0
      %v985 = vadd.f32 %v351, %v984
      %v986 = vpop.f32.mrb[0].mxu0
      %v987 = vadd.f32 %v347, %v986
      %v988 = vpop.f32.mrb[0].mxu0
      %v989 = vadd.f32 %v351, %v988
      %990 = vmatprep.mubr.bf16.mxu0 %v463
      %991 = vmatmul.mubr.bf16.gmra.mrb[0].mxu0 %v462
      %v992 = vpop.f32.mrb[0].mxu0
      %v993 = vadd.f32 %v347, %v992
      %v994 = vpop.f32.mrb[0].mxu0
      %v995 = vadd.f32 %v351, %v994
      %v996 = vpop.f32.mrb[0].mxu0
      %v997 = vadd.f32 %v347, %v996
      %v998 = vpop.f32.mrb[0].mxu0
      %v999 = vadd.f32 %v351, %v998
      %1000 = vmatprep.mubr.bf16.mxu0 %v466
      %1001 = vmatmul.mubr.bf16.gmra.mrb[0].mxu0 %v465
      %v1002 = vpop.f32.mrb[0].mxu0
      %v1003 = vadd.f32 %v347, %v1002
      %v1004 = vpop.f32.mrb[0].mxu0
      %v1005 = vadd.f32 %v351, %v1004
      %v1006 = vpop.f32.mrb[0].mxu0
      %v1007 = vadd.f32 %v347, %v1006
      %v1008 = vpop.f32.mrb[0].mxu0
      %v1009 = vadd.f32 %v351, %v1008
      %1010 = vdwg.mxu0
      %1011 = vmatprep.subr.bf16.mxu0 %v777
      %1012 = vmatpush1.bf16.msra.mxu0 %v776
      %1013 = vmatprep.subr.bf16.mxu0 %v781
      %1014 = vmatpush1.bf16.msra.mxu0 %v780
      %1015 = vmatprep.subr.bf16.mxu0 %v890
      %1016 = vmatpush1.bf16.msra.mxu0 %v887
      %1017 = vmatprep.subr.bf16.mxu0 0
      %1018 = vmatpush1.bf16.msra.mxu0 0
      %1019 = vmatprep.subr.bf16.mxu0 0
      %1020 = vmatpush1.bf16.msra.mxu0 0
      %1021 = vmatprep.subr.bf16.mxu0 0
      %1022 = vmatpush1.bf16.msra.mxu0 0
      %1023 = vmatprep.subr.bf16.mxu0 0
      %1024 = vmatpush1.bf16.msra.mxu0 0
      %1025 = vmatprep.subr.bf16.mxu0 0
      %1026 = vmatpush1.bf16.msra.mxu0 0
      %1027 = vmatprep.subr.bf16.mxu0 0
      %1028 = vmatpush1.bf16.msra.mxu0 0
      %1029 = vmatprep.subr.bf16.mxu0 0
      %1030 = vmatpush1.bf16.msra.mxu0 0
      %1031 = vmatprep.subr.bf16.mxu0 0
      %1032 = vmatpush1.bf16.msra.mxu0 0
      %1033 = vmatprep.subr.bf16.mxu0 0
      %1034 = vmatpush1.bf16.msra.mxu0 0
      %1035 = vmatprep.subr.bf16.mxu0 0
      %1036 = vmatpush1.bf16.msra.mxu0 0
      %1037 = vmatprep.subr.bf16.mxu0 0
      %1038 = vmatpush1.bf16.msra.mxu0 0
      %1039 = vmatprep.subr.bf16.mxu0 0
      %1040 = vmatpush1.bf16.msra.mxu0 0
      %1041 = vmatprep.subr.bf16.mxu0 0
      %1042 = vmatpush1.bf16.msra.mxu0 0
      %1043 = vmatprep.mubr.bf16.mxu0 0
      %1044 = vmatmul.mubr.bf16.gmra.mrb[0].mxu0 %v862
      %v1045 = vpop.f32.mrb[0].mxu0
      %v1046 = vadd.f32 %v933, %v1045
      %v1047 = vpop.f32.mrb[0].mxu0
      %v1048 = vadd.f32 %v935, %v1047
      %v1049 = vpop.f32.mrb[0].mxu0
      %v1050 = vadd.f32 %v937, %v1049
      %v1051 = vpop.f32.mrb[0].mxu0
      %v1052 = vadd.f32 %v939, %v1051
      %1053 = vmatprep.mubr.bf16.mxu0 0
      %1054 = vmatmul.mubr.bf16.gmra.mrb[0].mxu0 %v865
      %v1055 = vpop.f32.mrb[0].mxu0
      %v1056 = vadd.f32 %v943, %v1055
      %v1057 = vpop.f32.mrb[0].mxu0
      %v1058 = vadd.f32 %v945, %v1057
      %v1059 = vpop.f32.mrb[0].mxu0
      %v1060 = vadd.f32 %v947, %v1059
      %v1061 = vpop.f32.mrb[0].mxu0
      %v1062 = vadd.f32 %v949, %v1061
      %1063 = vmatprep.mubr.bf16.mxu0 0
      %1064 = vmatmul.mubr.bf16.gmra.mrb[0].mxu0 %v868
      %v1065 = vpop.f32.mrb[0].mxu0
      %v1066 = vadd.f32 %v953, %v1065
      %v1067 = vpop.f32.mrb[0].mxu0
      %v1068 = vadd.f32 %v955, %v1067
      %v1069 = vpop.f32.mrb[0].mxu0
      %v1070 = vadd.f32 %v957, %v1069
      %v1071 = vpop.f32.mrb[0].mxu0
      %v1072 = vadd.f32 %v959, %v1071
      %1073 = vmatprep.mubr.bf16.mxu0 0
      %1074 = vmatmul.mubr.bf16.gmra.mrb[0].mxu0 %v871
      %v1075 = vpop.f32.mrb[0].mxu0
      %v1076 = vadd.f32 %v963, %v1075
      %v1077 = vpop.f32.mrb[0].mxu0
      %v1078 = vadd.f32 %v965, %v1077
      %v1079 = vpop.f32.mrb[0].mxu0
      %v1080 = vadd.f32 %v967, %v1079
      %v1081 = vpop.f32.mrb[0].mxu0
      %v1082 = vadd.f32 %v969, %v1081
      %1083 = vmatprep.mubr.bf16.mxu0 0
      %1084 = vmatmul.mubr.bf16.gmra.mrb[0].mxu0 %v874
      %v1085 = vpop.f32.mrb[0].mxu0
      %v1086 = vadd.f32 %v973, %v1085
      %v1087 = vpop.f32.mrb[0].mxu0
      %v1088 = vadd.f32 %v975, %v1087
      %v1089 = vpop.f32.mrb[0].mxu0
      %v1090 = vadd.f32 %v977, %v1089
      %v1091 = vpop.f32.mrb[0].mxu0
      %v1092 = vadd.f32 %v979, %v1091
      %1093 = vmatprep.mubr.bf16.mxu0 0
      %1094 = vmatmul.mubr.bf16.gmra.mrb[0].mxu0 %v877
      %v1095 = vpop.f32.mrb[0].mxu0
      %v1096 = vadd.f32 %v983, %v1095
      %v1097 = vpop.f32.mrb[0].mxu0
      %v1098 = vadd.f32 %v985, %v1097
      %v1099 = vpop.f32.mrb[0].mxu0
      %v1100 = vadd.f32 %v987, %v1099
      %v1101 = vpop.f32.mrb[0].mxu0
      %v1102 = vadd.f32 %v989, %v1101
      %1103 = vmatprep.mubr.bf16.mxu0 0
      %1104 = vmatmul.mubr.bf16.gmra.mrb[0].mxu0 %v880
      %v1105 = vpop.f32.mrb[0].mxu0
      %v1106 = vadd.f32 %v993, %v1105
      %v1107 = vpop.f32.mrb[0].mxu0
      %v1108 = vadd.f32 %v995, %v1107
      %v1109 = vpop.f32.mrb[0].mxu0
      %v1110 = vadd.f32 %v997, %v1109
      %v1111 = vpop.f32.mrb[0].mxu0
      %v1112 = vadd.f32 %v999, %v1111
      %1113 = vmatprep.mubr.bf16.mxu0 0
      %1114 = vmatmul.mubr.bf16.gmra.mrb[0].mxu0 %v883
      %v1115 = vpop.f32.mrb[0].mxu0
      %v1116 = vadd.f32 %v1003, %v1115
      %v1117 = vpop.f32.mrb[0].mxu0
      %v1118 = vadd.f32 %v1005, %v1117
      %v1119 = vpop.f32.mrb[0].mxu0
      %v1120 = vadd.f32 %v1007, %v1119
      %v1121 = vpop.f32.mrb[0].mxu0
      %v1122 = vadd.f32 %v1009, %v1121
      %1123 = vdwg.mxu0
      %1124 = vmatprep.subr.bf16.mxu0 %v715
      %1125 = vmatpush1.bf16.msra.mxu0 %v714
      %1126 = vmatprep.subr.bf16.mxu0 %v719
      %1127 = vmatpush1.bf16.msra.mxu0 %v718
      %1128 = vmatprep.subr.bf16.mxu0 %v723
      %1129 = vmatpush1.bf16.msra.mxu0 %v722
      %1130 = vmatprep.subr.bf16.mxu0 %v727
      %1131 = vmatpush1.bf16.msra.mxu0 %v726
      %1132 = vmatprep.subr.bf16.mxu0 %v731
      %1133 = vmatpush1.bf16.msra.mxu0 %v730
      %1134 = vmatprep.subr.bf16.mxu0 %v735
      %1135 = vmatpush1.bf16.msra.mxu0 %v734
      %1136 = vmatprep.subr.bf16.mxu0 %v739
      %1137 = vmatpush1.bf16.msra.mxu0 %v738
      %1138 = vmatprep.subr.bf16.mxu0 %v743
      %1139 = vmatpush1.bf16.msra.mxu0 %v742
      %1140 = vmatprep.subr.bf16.mxu0 %v747
      %1141 = vmatpush1.bf16.msra.mxu0 %v746
      %1142 = vmatprep.subr.bf16.mxu0 %v751
      %1143 = vmatpush1.bf16.msra.mxu0 %v750
      %1144 = vmatprep.subr.bf16.mxu0 %v755
      %1145 = vmatpush1.bf16.msra.mxu0 %v754
      %1146 = vmatprep.subr.bf16.mxu0 %v759
      %1147 = vmatpush1.bf16.msra.mxu0 %v758
      %1148 = vmatprep.subr.bf16.mxu0 %v763
      %1149 = vmatpush1.bf16.msra.mxu0 %v762
      %1150 = vmatprep.subr.bf16.mxu0 %v767
      %1151 = vmatpush1.bf16.msra.mxu0 %v766
      %1152 = vmatprep.subr.bf16.mxu0 %v771
      %1153 = vmatpush1.bf16.msra.mxu0 %v770
      %1154 = vmatprep.subr.bf16.mxu0 %v775
      %1155 = vmatpush1.bf16.msra.mxu0 %v774
      %1156 = vmatprep.mubr.bf16.mxu0 %v445
      %1157 = vmatmul.mubr.bf16.gmra.mrb[0].mxu0 %v444
      %v1158 = vpop.f32.mrb[0].mxu0
      %v1159 = vadd.f32 %v355, %v1158
      %v1160 = vpop.f32.mrb[0].mxu0
      %v1161 = vadd.f32 %v359, %v1160
      %v1162 = vpop.f32.mrb[0].mxu0
      %v1163 = vadd.f32 %v355, %v1162
      %v1164 = vpop.f32.mrb[0].mxu0
      %v1165 = vadd.f32 %v359, %v1164
      %1166 = vmatprep.mubr.bf16.mxu0 %v448
      %1167 = vmatmul.mubr.bf16.gmra.mrb[0].mxu0 %v447
      %v1168 = vpop.f32.mrb[0].mxu0
      %v1169 = vadd.f32 %v355, %v1168
      %v1170 = vpop.f32.mrb[0].mxu0
      %v1171 = vadd.f32 %v359, %v1170
      %v1172 = vpop.f32.mrb[0].mxu0
      %v1173 = vadd.f32 %v355, %v1172
      %v1174 = vpop.f32.mrb[0].mxu0
      %v1175 = vadd.f32 %v359, %v1174
      %1176 = vmatprep.mubr.bf16.mxu0 %v451
      %1177 = vmatmul.mubr.bf16.gmra.mrb[0].mxu0 %v450
      %v1178 = vpop.f32.mrb[0].mxu0
      %v1179 = vadd.f32 %v355, %v1178
      %v1180 = vpop.f32.mrb[0].mxu0
      %v1181 = vadd.f32 %v359, %v1180
      %v1182 = vpop.f32.mrb[0].mxu0
      %v1183 = vadd.f32 %v355, %v1182
      %v1184 = vpop.f32.mrb[0].mxu0
      %v1185 = vadd.f32 %v359, %v1184
      %1186 = vmatprep.mubr.bf16.mxu0 %v454
      %1187 = vmatmul.mubr.bf16.gmra.mrb[0].mxu0 %v453
      %v1188 = vpop.f32.mrb[0].mxu0
      %v1189 = vadd.f32 %v355, %v1188
      %v1190 = vpop.f32.mrb[0].mxu0
      %v1191 = vadd.f32 %v359, %v1190
      %v1192 = vpop.f32.mrb[0].mxu0
      %v1193 = vadd.f32 %v355, %v1192
      %v1194 = vpop.f32.mrb[0].mxu0
      %v1195 = vadd.f32 %v359, %v1194
      %1196 = vmatprep.mubr.bf16.mxu0 %v457
      %1197 = vmatmul.mubr.bf16.gmra.mrb[0].mxu0 %v456
      %v1198 = vpop.f32.mrb[0].mxu0
      %v1199 = vadd.f32 %v355, %v1198
      %v1200 = vpop.f32.mrb[0].mxu0
      %v1201 = vadd.f32 %v359, %v1200
      %v1202 = vpop.f32.mrb[0].mxu0
      %v1203 = vadd.f32 %v355, %v1202
      %v1204 = vpop.f32.mrb[0].mxu0
      %v1205 = vadd.f32 %v359, %v1204
      %1206 = vmatprep.mubr.bf16.mxu0 %v460
      %1207 = vmatmul.mubr.bf16.gmra.mrb[0].mxu0 %v459
      %v1208 = vpop.f32.mrb[0].mxu0
      %v1209 = vadd.f32 %v355, %v1208
      %v1210 = vpop.f32.mrb[0].mxu0
      %v1211 = vadd.f32 %v359, %v1210
      %v1212 = vpop.f32.mrb[0].mxu0
      %v1213 = vadd.f32 %v355, %v1212
      %v1214 = vpop.f32.mrb[0].mxu0
      %v1215 = vadd.f32 %v359, %v1214
      %1216 = vmatprep.mubr.bf16.mxu0 %v463
      %1217 = vmatmul.mubr.bf16.gmra.mrb[0].mxu0 %v462
      %v1218 = vpop.f32.mrb[0].mxu0
      %v1219 = vadd.f32 %v355, %v1218
      %v1220 = vpop.f32.mrb[0].mxu0
      %v1221 = vadd.f32 %v359, %v1220
      %v1222 = vpop.f32.mrb[0].mxu0
      %v1223 = vadd.f32 %v355, %v1222
      %v1224 = vpop.f32.mrb[0].mxu0
      %v1225 = vadd.f32 %v359, %v1224
      %1226 = vmatprep.mubr.bf16.mxu0 %v466
      %1227 = vmatmul.mubr.bf16.gmra.mrb[0].mxu0 %v465
      %v1228 = vpop.f32.mrb[0].mxu0
      %v1229 = vadd.f32 %v355, %v1228
      %v1230 = vpop.f32.mrb[0].mxu0
      %v1231 = vadd.f32 %v359, %v1230
      %v1232 = vpop.f32.mrb[0].mxu0
      %v1233 = vadd.f32 %v355, %v1232
      %v1234 = vpop.f32.mrb[0].mxu0
      %v1235 = vadd.f32 %v359, %v1234
      %1236 = vdwg.mxu0
      %1237 = vmatprep.subr.bf16.mxu0 %v779
      %1238 = vmatpush1.bf16.msra.mxu0 %v778
      %1239 = vmatprep.subr.bf16.mxu0 %v783
      %1240 = vmatpush1.bf16.msra.mxu0 %v782
      %1241 = vmatprep.subr.bf16.mxu0 %v896
      %1242 = vmatpush1.bf16.msra.mxu0 %v893
      %1243 = vmatprep.subr.bf16.mxu0 0
      %1244 = vmatpush1.bf16.msra.mxu0 0
      %1245 = vmatprep.subr.bf16.mxu0 0
      %1246 = vmatpush1.bf16.msra.mxu0 0
      %1247 = vmatprep.subr.bf16.mxu0 0
      %1248 = vmatpush1.bf16.msra.mxu0 0
      %1249 = vmatprep.subr.bf16.mxu0 0
      %1250 = vmatpush1.bf16.msra.mxu0 0
      %1251 = vmatprep.subr.bf16.mxu0 0
      %1252 = vmatpush1.bf16.msra.mxu0 0
      %1253 = vmatprep.subr.bf16.mxu0 0
      %1254 = vmatpush1.bf16.msra.mxu0 0
      %1255 = vmatprep.subr.bf16.mxu0 0
      %1256 = vmatpush1.bf16.msra.mxu0 0
      %1257 = vmatprep.subr.bf16.mxu0 0
      %1258 = vmatpush1.bf16.msra.mxu0 0
      %1259 = vmatprep.subr.bf16.mxu0 0
      %1260 = vmatpush1.bf16.msra.mxu0 0
      %1261 = vmatprep.subr.bf16.mxu0 0
      %1262 = vmatpush1.bf16.msra.mxu0 0
      %1263 = vmatprep.subr.bf16.mxu0 0
      %1264 = vmatpush1.bf16.msra.mxu0 0
      %1265 = vmatprep.subr.bf16.mxu0 0
      %1266 = vmatpush1.bf16.msra.mxu0 0
      %1267 = vmatprep.subr.bf16.mxu0 0
      %1268 = vmatpush1.bf16.msra.mxu0 0
      %1269 = vmatprep.mubr.bf16.mxu0 0
      %1270 = vmatmul.mubr.bf16.gmra.mrb[0].mxu0 %v862
      %v1271 = vpop.f32.mrb[0].mxu0
      %v1272 = vadd.f32 %v1159, %v1271
      %v1273 = vpop.f32.mrb[0].mxu0
      %v1274 = vadd.f32 %v1161, %v1273
      %v1275 = vpop.f32.mrb[0].mxu0
      %v1276 = vadd.f32 %v1163, %v1275
      %v1277 = vpop.f32.mrb[0].mxu0
      %v1278 = vadd.f32 %v1165, %v1277
      %1279 = vmatprep.mubr.bf16.mxu0 0
      %1280 = vmatmul.mubr.bf16.gmra.mrb[0].mxu0 %v865
      %v1281 = vpop.f32.mrb[0].mxu0
      %v1282 = vadd.f32 %v1169, %v1281
      %v1283 = vpop.f32.mrb[0].mxu0
      %v1284 = vadd.f32 %v1171, %v1283
      %v1285 = vpop.f32.mrb[0].mxu0
      %v1286 = vadd.f32 %v1173, %v1285
      %v1287 = vpop.f32.mrb[0].mxu0
      %v1288 = vadd.f32 %v1175, %v1287
      %1289 = vmatprep.mubr.bf16.mxu0 0
      %1290 = vmatmul.mubr.bf16.gmra.mrb[0].mxu0 %v868
      %v1291 = vpop.f32.mrb[0].mxu0
      %v1292 = vadd.f32 %v1179, %v1291
      %v1293 = vpop.f32.mrb[0].mxu0
      %v1294 = vadd.f32 %v1181, %v1293
      %v1295 = vpop.f32.mrb[0].mxu0
      %v1296 = vadd.f32 %v1183, %v1295
      %v1297 = vpop.f32.mrb[0].mxu0
      %v1298 = vadd.f32 %v1185, %v1297
      %1299 = vmatprep.mubr.bf16.mxu0 0
      %1300 = vmatmul.mubr.bf16.gmra.mrb[0].mxu0 %v871
      %v1301 = vpop.f32.mrb[0].mxu0
      %v1302 = vadd.f32 %v1189, %v1301
      %v1303 = vpop.f32.mrb[0].mxu0
      %v1304 = vadd.f32 %v1191, %v1303
      %v1305 = vpop.f32.mrb[0].mxu0
      %v1306 = vadd.f32 %v1193, %v1305
      %v1307 = vpop.f32.mrb[0].mxu0
      %v1308 = vadd.f32 %v1195, %v1307
      %1309 = vmatprep.mubr.bf16.mxu0 0
      %1310 = vmatmul.mubr.bf16.gmra.mrb[0].mxu0 %v874
      %v1311 = vpop.f32.mrb[0].mxu0
      %v1312 = vadd.f32 %v1199, %v1311
      %v1313 = vpop.f32.mrb[0].mxu0
      %v1314 = vadd.f32 %v1201, %v1313
      %v1315 = vpop.f32.mrb[0].mxu0
      %v1316 = vadd.f32 %v1203, %v1315
      %v1317 = vpop.f32.mrb[0].mxu0
      %v1318 = vadd.f32 %v1205, %v1317
      %1319 = vmatprep.mubr.bf16.mxu0 0
      %1320 = vmatmul.mubr.bf16.gmra.mrb[0].mxu0 %v877
      %v1321 = vpop.f32.mrb[0].mxu0
      %v1322 = vadd.f32 %v1209, %v1321
      %v1323 = vpop.f32.mrb[0].mxu0
      %v1324 = vadd.f32 %v1211, %v1323
      %v1325 = vpop.f32.mrb[0].mxu0
      %v1326 = vadd.f32 %v1213, %v1325
      %v1327 = vpop.f32.mrb[0].mxu0
      %v1328 = vadd.f32 %v1215, %v1327
      %1329 = vmatprep.mubr.bf16.mxu0 0
      %1330 = vmatmul.mubr.bf16.gmra.mrb[0].mxu0 %v880
      %v1331 = vpop.f32.mrb[0].mxu0
      %v1332 = vadd.f32 %v1219, %v1331
      %v1333 = vpop.f32.mrb[0].mxu0
      %v1334 = vadd.f32 %v1221, %v1333
      %v1335 = vpop.f32.mrb[0].mxu0
      %v1336 = vadd.f32 %v1223, %v1335
      %v1337 = vpop.f32.mrb[0].mxu0
      %v1338 = vadd.f32 %v1225, %v1337
      %1339 = vmatprep.mubr.bf16.mxu0 0
      %1340 = vmatmul.mubr.bf16.gmra.mrb[0].mxu0 %v883
      %v1341 = vpop.f32.mrb[0].mxu0
      %v1342 = vadd.f32 %v1229, %v1341
      %v1343 = vpop.f32.mrb[0].mxu0
      %v1344 = vadd.f32 %v1231, %v1343
      %v1345 = vpop.f32.mrb[0].mxu0
      %v1346 = vadd.f32 %v1233, %v1345
      %v1347 = vpop.f32.mrb[0].mxu0
      %v1348 = vadd.f32 %v1235, %v1347
      %1349 = vdwg.mxu0
      %v1350 = vmax.f32 %v1046, 0.0
      %v1351 = vmax.f32 %v1048, 0.0
      %v1352 = vmax.f32 %v1272, 0.0
      %v1353 = vmax.f32 %v1274, 0.0
      %v1354 = vmax.f32 %v1050, 0.0
      %v1355 = vmax.f32 %v1052, 0.0
      %v1356 = vmax.f32 %v1276, 0.0
      %v1357 = vmax.f32 %v1278, 0.0
      %v1358 = vmax.f32 %v1056, 0.0
      %v1359 = vmax.f32 %v1058, 0.0
      %v1360 = vmax.f32 %v1282, 0.0
      %v1361 = vmax.f32 %v1284, 0.0
      %v1362 = vmax.f32 %v1060, 0.0
      %v1363 = vmax.f32 %v1062, 0.0
      %v1364 = vmax.f32 %v1286, 0.0
      %v1365 = vmax.f32 %v1288, 0.0
      %v1366 = vmax.f32 %v1066, 0.0
      %v1367 = vmax.f32 %v1068, 0.0
      %v1368 = vmax.f32 %v1292, 0.0
      %v1369 = vmax.f32 %v1294, 0.0
      %v1370 = vmax.f32 %v1070, 0.0
      %v1371 = vmax.f32 %v1072, 0.0
      %v1372 = vmax.f32 %v1296, 0.0
      %v1373 = vmax.f32 %v1298, 0.0
      %v1374 = vmax.f32 %v1076, 0.0
      %v1375 = vmax.f32 %v1078, 0.0
      %v1376 = vmax.f32 %v1302, 0.0
      %v1377 = vmax.f32 %v1304, 0.0
      %v1378 = vmax.f32 %v1080, 0.0
      %v1379 = vmax.f32 %v1082, 0.0
      %v1380 = vmax.f32 %v1306, 0.0
      %v1381 = vmax.f32 %v1308, 0.0
      %v1382 = vmax.f32 %v1086, 0.0
      %v1383 = vmax.f32 %v1088, 0.0
      %v1384 = vmax.f32 %v1312, 0.0
      %v1385 = vmax.f32 %v1314, 0.0
      %v1386 = vmax.f32 %v1090, 0.0
      %v1387 = vmax.f32 %v1092, 0.0
      %v1388 = vmax.f32 %v1316, 0.0
      %v1389 = vmax.f32 %v1318, 0.0
      %v1390 = vmax.f32 %v1096, 0.0
      %v1391 = vmax.f32 %v1098, 0.0
      %v1392 = vmax.f32 %v1322, 0.0
      %v1393 = vmax.f32 %v1324, 0.0
      %v1394 = vmax.f32 %v1100, 0.0
      %v1395 = vmax.f32 %v1102, 0.0
      %v1396 = vmax.f32 %v1326, 0.0
      %v1397 = vmax.f32 %v1328, 0.0
      %v1398 = vmax.f32 %v1106, 0.0
      %v1399 = vmax.f32 %v1108, 0.0
      %v1400 = vmax.f32 %v1332, 0.0
      %v1401 = vmax.f32 %v1334, 0.0
      %v1402 = vmax.f32 %v1110, 0.0
      %v1403 = vmax.f32 %v1112, 0.0
      %v1404 = vmax.f32 %v1336, 0.0
      %v1405 = vmax.f32 %v1338, 0.0
      %v1406 = vmax.f32 %v1116, 0.0
      %v1407 = vmax.f32 %v1118, 0.0
      %v1408 = vmax.f32 %v1342, 0.0
      %v1409 = vmax.f32 %v1344, 0.0
      %v1410 = vmax.f32 %v1120, 0.0
      %v1411 = vmax.f32 %v1122, 0.0
      %v1412 = vmax.f32 %v1346, 0.0
      %v1413 = vmax.f32 %v1348, 0.0
      %v1414 = vpack.c.bf16 %v1354, %v1350
      %v1415 = vpack.c.bf16 %v1355, %v1351
      %v1416 = vpack.c.bf16 %v1356, %v1352
      %v1417 = vpack.c.bf16 %v1357, %v1353
      %v1418 = vpack.c.bf16 %v1362, %v1358
      %v1419 = vpack.c.bf16 %v1363, %v1359
      %v1420 = vpack.c.bf16 %v1364, %v1360
      %v1421 = vpack.c.bf16 %v1365, %v1361
      %v1422 = vpack.c.bf16 %v1370, %v1366
      %v1423 = vpack.c.bf16 %v1371, %v1367
      %v1424 = vpack.c.bf16 %v1372, %v1368
      %v1425 = vpack.c.bf16 %v1373, %v1369
      %v1426 = vpack.c.bf16 %v1378, %v1374
      %v1427 = vpack.c.bf16 %v1379, %v1375
      %v1428 = vpack.c.bf16 %v1380, %v1376
      %v1429 = vpack.c.bf16 %v1381, %v1377
      %v1430 = vpack.c.bf16 %v1386, %v1382
      %v1431 = vpack.c.bf16 %v1387, %v1383
      %v1432 = vpack.c.bf16 %v1388, %v1384
      %v1433 = vpack.c.bf16 %v1389, %v1385
      %v1434 = vpack.c.bf16 %v1394, %v1390
      %v1435 = vpack.c.bf16 %v1395, %v1391
      %v1436 = vpack.c.bf16 %v1396, %v1392
      %v1437 = vpack.c.bf16 %v1397, %v1393
      %v1438 = vpack.c.bf16 %v1402, %v1398
      %v1439 = vpack.c.bf16 %v1403, %v1399
      %v1440 = vpack.c.bf16 %v1404, %v1400
      %v1441 = vpack.c.bf16 %v1405, %v1401
      %v1442 = vpack.c.bf16 %v1410, %v1406
      %v1443 = vpack.c.bf16 %v1411, %v1407
      %v1444 = vpack.c.bf16 %v1412, %v1408
      %v1445 = vpack.c.bf16 %v1413, %v1409
      %v1446 = vld [vmem:[%s3] sm:$0xff]
      %v1447 = vld [vmem:[%s3 + $0x8] sm:$0xff]
      %v1448 = vld [vmem:[%s3 + $0x10] sm:$0xff]
      %v1449 = vld [vmem:[%s3 + $0x18] sm:$0xf]
      %v1450 = vld [vmem:[%s3 + $0x1c] sm:$0xff]
      %v1451 = vld [vmem:[%s3 + $0x24] sm:$0xff]
      %v1452 = vld [vmem:[%s3 + $0x2c] sm:$0xff]
      %v1453 = vld [vmem:[%s3 + $0x34] sm:$0xf]
      %v1454 = vld [vmem:[%s3 + $0x38] sm:$0xff]
      %v1455 = vld [vmem:[%s3 + $0x40] sm:$0xff]
      %v1456 = vld [vmem:[%s3 + $0x48] sm:$0xff]
      %v1457 = vld [vmem:[%s3 + $0x50] sm:$0xf]
      %v1458 = vld [vmem:[%s3 + $0x54] sm:$0xff]
      %v1459 = vld [vmem:[%s3 + $0x5c] sm:$0xff]
      %v1460 = vld [vmem:[%s3 + $0x64] sm:$0xff]
      %v1461 = vld [vmem:[%s3 + $0x6c] sm:$0xf]
      %v1462 = vld [vmem:[%s3 + $0x70] sm:$0xff]
      %v1463 = vld [vmem:[%s3 + $0x78] sm:$0xff]
      %v1464 = vld [vmem:[%s3 + $0x80] sm:$0xff]
      %v1465 = vld [vmem:[%s3 + $0x88] sm:$0xf]
      %v1466 = vld [vmem:[%s3 + $0x8c] sm:$0xff]
      %v1467 = vld [vmem:[%s3 + $0x94] sm:$0xff]
      %v1468 = vld [vmem:[%s3 + $0x9c] sm:$0xff]
      %v1469 = vld [vmem:[%s3 + $0xa4] sm:$0xf]
      %v1470 = vld [vmem:[%s3 + $0xa8] sm:$0xff]
      %v1471 = vld [vmem:[%s3 + $0xb0] sm:$0xff]
      %v1472 = vld [vmem:[%s3 + $0xb8] sm:$0xff]
      %v1473 = vld [vmem:[%s3 + $0xc0] sm:$0xf]
      %v1474 = vld [vmem:[%s3 + $0xc4] sm:$0xff]
      %v1475 = vld [vmem:[%s3 + $0xcc] sm:$0xff]
      %v1476 = vld [vmem:[%s3 + $0xd4] sm:$0xff]
      %v1477 = vld [vmem:[%s3 + $0xdc] sm:$0xf]
      %v1478 = vld [vmem:[%s3 + $0xe0] sm:$0xff]
      %v1479 = vld [vmem:[%s3 + $0xe8] sm:$0xff]
      %v1480 = vld [vmem:[%s3 + $0xf0] sm:$0xff]
      %v1481 = vld [vmem:[%s3 + $0xf8] sm:$0xf]
      %v1482 = vld [vmem:[%s3 + $0xfc] sm:$0xff]
      %v1483 = vld [vmem:[%s3 + $0x104] sm:$0xff]
      %v1484 = vld [vmem:[%s3 + $0x10c] sm:$0xff]
      %v1485 = vld [vmem:[%s3 + $0x114] sm:$0xf]
      %v1486 = vld [vmem:[%s3 + $0x118] sm:$0xff]
      %v1487 = vld [vmem:[%s3 + $0x120] sm:$0xff]
      %v1488 = vld [vmem:[%s3 + $0x128] sm:$0xff]
      %v1489 = vld [vmem:[%s3 + $0x130] sm:$0xf]
      %v1490 = vld [vmem:[%s3 + $0x134] sm:$0xff]
      %v1491 = vld [vmem:[%s3 + $0x13c] sm:$0xff]
      %v1492 = vld [vmem:[%s3 + $0x144] sm:$0xff]
      %v1493 = vld [vmem:[%s3 + $0x14c] sm:$0xf]
      %v1494 = vld [vmem:[%s3 + $0x150] sm:$0xff]
      %v1495 = vld [vmem:[%s3 + $0x158] sm:$0xff]
      %v1496 = vld [vmem:[%s3 + $0x160] sm:$0xff]
      %v1497 = vld [vmem:[%s3 + $0x168] sm:$0xf]
      %v1498 = vld [vmem:[%s3 + $0x16c] sm:$0xff]
      %v1499 = vld [vmem:[%s3 + $0x174] sm:$0xff]
      %v1500 = vld [vmem:[%s3 + $0x17c] sm:$0xff]
      %v1501 = vld [vmem:[%s3 + $0x184] sm:$0xf]
      %v1502 = vld [vmem:[%s3 + $0x188] sm:$0xff]
      %v1503 = vld [vmem:[%s3 + $0x190] sm:$0xff]
      %v1504 = vld [vmem:[%s3 + $0x198] sm:$0xff]
      %v1505 = vld [vmem:[%s3 + $0x1a0] sm:$0xf]
      %v1506 = vld [vmem:[%s3 + $0x1a4] sm:$0xff]
      %v1507 = vld [vmem:[%s3 + $0x1ac] sm:$0xff]
      %v1508 = vld [vmem:[%s3 + $0x1b4] sm:$0xff]
      %v1509 = vld [vmem:[%s3 + $0x1bc] sm:$0xf]
      %v1510 = vld [vmem:[%s3 + $0x1c0] sm:$0xff]
      %v1511 = vld [vmem:[%s3 + $0x1c8] sm:$0xff]
      %v1512 = vld [vmem:[%s3 + $0x1d0] sm:$0xff]
      %v1513 = vld [vmem:[%s3 + $0x1d8] sm:$0xf]
      %v1514 = vld [vmem:[%s3 + $0x1dc] sm:$0xff]
      %v1515 = vld [vmem:[%s3 + $0x1e4] sm:$0xff]
      %v1516 = vld [vmem:[%s3 + $0x1ec] sm:$0xff]
      %v1517 = vld [vmem:[%s3 + $0x1f4] sm:$0xf]
      %v1518 = vld [vmem:[%s3 + $0x1f8] sm:$0xff]
      %v1519 = vld [vmem:[%s3 + $0x200] sm:$0xff]
      %v1520 = vld [vmem:[%s3 + $0x208] sm:$0xff]
      %v1521 = vld [vmem:[%s3 + $0x210] sm:$0xf]
      %v1522 = vld [vmem:[%s3 + $0x214] sm:$0xff]
      %v1523 = vld [vmem:[%s3 + $0x21c] sm:$0xff]
      %v1524 = vld [vmem:[%s3 + $0x224] sm:$0xff]
      %v1525 = vld [vmem:[%s3 + $0x22c] sm:$0xf]
      %v1526 = vld [vmem:[%s3 + $0x230] sm:$0xff]
      %v1527 = vld [vmem:[%s3 + $0x238] sm:$0xff]
      %v1528 = vld [vmem:[%s3 + $0x240] sm:$0xff]
      %v1529 = vld [vmem:[%s3 + $0x248] sm:$0xf]
      %v1530 = vld [vmem:[%s3 + $0x24c] sm:$0xff]
      %v1531 = vld [vmem:[%s3 + $0x254] sm:$0xff]
      %v1532 = vld [vmem:[%s3 + $0x25c] sm:$0xff]
      %v1533 = vld [vmem:[%s3 + $0x264] sm:$0xf]
      %v1534 = vld [vmem:[%s3 + $0x268] sm:$0xff]
      %v1535 = vld [vmem:[%s3 + $0x270] sm:$0xff]
      %v1536 = vld [vmem:[%s3 + $0x278] sm:$0xff]
      %v1537 = vld [vmem:[%s3 + $0x280] sm:$0xf]
      %v1538 = vld [vmem:[%s3 + $0x284] sm:$0xff]
      %v1539 = vld [vmem:[%s3 + $0x28c] sm:$0xff]
      %v1540 = vld [vmem:[%s3 + $0x294] sm:$0xff]
      %v1541 = vld [vmem:[%s3 + $0x29c] sm:$0xf]
      %v1542 = vld [vmem:[%s3 + $0x2a0] sm:$0xff]
      %v1543 = vld [vmem:[%s3 + $0x2a8] sm:$0xff]
      %v1544 = vld [vmem:[%s3 + $0x2b0] sm:$0xff]
      %v1545 = vld [vmem:[%s3 + $0x2b8] sm:$0xf]
      %v1546 = vld [vmem:[%s3 + $0x2bc] sm:$0xff]
      %v1547 = vld [vmem:[%s3 + $0x2c4] sm:$0xff]
      %v1548 = vld [vmem:[%s3 + $0x2cc] sm:$0xff]
      %v1549 = vld [vmem:[%s3 + $0x2d4] sm:$0xf]
      %v1550 = vld [vmem:[%s3 + $0x2d8] sm:$0xff]
      %v1551 = vld [vmem:[%s3 + $0x2e0] sm:$0xff]
      %v1552 = vld [vmem:[%s3 + $0x2e8] sm:$0xff]
      %v1553 = vld [vmem:[%s3 + $0x2f0] sm:$0xf]
      %v1554 = vld [vmem:[%s3 + $0x2f4] sm:$0xff]
      %v1555 = vld [vmem:[%s3 + $0x2fc] sm:$0xff]
      %v1556 = vld [vmem:[%s3 + $0x304] sm:$0xff]
      %v1557 = vld [vmem:[%s3 + $0x30c] sm:$0xf]
      %v1558 = vld [vmem:[%s3 + $0x310] sm:$0xff]
      %v1559 = vld [vmem:[%s3 + $0x318] sm:$0xff]
      %v1560 = vld [vmem:[%s3 + $0x320] sm:$0xff]
      %v1561 = vld [vmem:[%s3 + $0x328] sm:$0xf]
      %v1562 = vld [vmem:[%s3 + $0x32c] sm:$0xff]
      %v1563 = vld [vmem:[%s3 + $0x334] sm:$0xff]
      %v1564 = vld [vmem:[%s3 + $0x33c] sm:$0xff]
      %v1565 = vld [vmem:[%s3 + $0x344] sm:$0xf]
      %v1566 = vld [vmem:[%s3 + $0x348] sm:$0xff]
      %v1567 = vld [vmem:[%s3 + $0x350] sm:$0xff]
      %v1568 = vld [vmem:[%s3 + $0x358] sm:$0xff]
      %v1569 = vld [vmem:[%s3 + $0x360] sm:$0xf]
      %v1570 = vld [vmem:[%s3 + $0x364] sm:$0xff]
      %v1571 = vld [vmem:[%s3 + $0x36c] sm:$0xff]
      %v1572 = vld [vmem:[%s3 + $0x374] sm:$0xff]
      %v1573 = vld [vmem:[%s3 + $0x37c] sm:$0xf]
      %v1574 = vld [vmem:[%s3 + $0x380] sm:$0xff]
      %v1575 = vld [vmem:[%s3 + $0x388] sm:$0xff]
      %v1576 = vld [vmem:[%s3 + $0x390] sm:$0xff]
      %v1577 = vld [vmem:[%s3 + $0x398] sm:$0xf]
      %v1578 = vld [vmem:[%s3 + $0x39c] sm:$0xff]
      %v1579 = vld [vmem:[%s3 + $0x3a4] sm:$0xff]
      %v1580 = vld [vmem:[%s3 + $0x3ac] sm:$0xff]
      %v1581 = vld [vmem:[%s3 + $0x3b4] sm:$0xf]
      %v1582 = vld [vmem:[%s3 + $0x3b8] sm:$0xff]
      %v1583 = vld [vmem:[%s3 + $0x3c0] sm:$0xff]
      %v1584 = vld [vmem:[%s3 + $0x3c8] sm:$0xff]
      %v1585 = vld [vmem:[%s3 + $0x3d0] sm:$0xf]
      %v1586 = vld [vmem:[%s3 + $0x3d4] sm:$0xff]
      %v1587 = vld [vmem:[%s3 + $0x3dc] sm:$0xff]
      %v1588 = vld [vmem:[%s3 + $0x3e4] sm:$0xff]
      %v1589 = vld [vmem:[%s3 + $0x3ec] sm:$0xf]
      %v1590 = vld [vmem:[%s3 + $0x3f0] sm:$0xff]
      %v1591 = vld [vmem:[%s3 + $0x3f8] sm:$0xff]
      %v1592 = vld [vmem:[%s3 + $0x400] sm:$0xff]
      %v1593 = vld [vmem:[%s3 + $0x408] sm:$0xf]
      %v1594 = vld [vmem:[%s3 + $0x40c] sm:$0xff]
      %v1595 = vld [vmem:[%s3 + $0x414] sm:$0xff]
      %v1596 = vld [vmem:[%s3 + $0x41c] sm:$0xff]
      %v1597 = vld [vmem:[%s3 + $0x424] sm:$0xf]
      %v1598 = vld [vmem:[%s3 + $0x428] sm:$0xff]
      %v1599 = vld [vmem:[%s3 + $0x430] sm:$0xff]
      %v1600 = vld [vmem:[%s3 + $0x438] sm:$0xff]
      %v1601 = vld [vmem:[%s3 + $0x440] sm:$0xf]
      %v1602 = vld [vmem:[%s3 + $0x444] sm:$0xff]
      %v1603 = vld [vmem:[%s3 + $0x44c] sm:$0xff]
      %v1604 = vld [vmem:[%s3 + $0x454] sm:$0xff]
      %v1605 = vld [vmem:[%s3 + $0x45c] sm:$0xf]
      %v1606 = vld [vmem:[%s3 + $0x460] sm:$0xff]
      %v1607 = vld [vmem:[%s3 + $0x468] sm:$0xff]
      %v1608 = vld [vmem:[%s3 + $0x470] sm:$0xff]
      %v1609 = vld [vmem:[%s3 + $0x478] sm:$0xf]
      %v1610 = vld [vmem:[%s3 + $0x47c] sm:$0xff]
      %v1611 = vld [vmem:[%s3 + $0x484] sm:$0xff]
      %v1612 = vld [vmem:[%s3 + $0x48c] sm:$0xff]
      %v1613 = vld [vmem:[%s3 + $0x494] sm:$0xf]
      %v1614 = vld [vmem:[%s3 + $0x498] sm:$0xff]
      %v1615 = vld [vmem:[%s3 + $0x4a0] sm:$0xff]
      %v1616 = vld [vmem:[%s3 + $0x4a8] sm:$0xff]
      %v1617 = vld [vmem:[%s3 + $0x4b0] sm:$0xf]
      %v1618 = vld [vmem:[%s3 + $0x4b4] sm:$0xff]
      %v1619 = vld [vmem:[%s3 + $0x4bc] sm:$0xff]
      %v1620 = vld [vmem:[%s3 + $0x4c4] sm:$0xff]
      %v1621 = vld [vmem:[%s3 + $0x4cc] sm:$0xf]
      %v1622 = vld [vmem:[%s3 + $0x4d0] sm:$0xff]
      %v1623 = vld [vmem:[%s3 + $0x4d8] sm:$0xff]
      %v1624 = vld [vmem:[%s3 + $0x4e0] sm:$0xff]
      %v1625 = vld [vmem:[%s3 + $0x4e8] sm:$0xf]
      %v1626 = vld [vmem:[%s3 + $0x4ec] sm:$0xff]
      %v1627 = vld [vmem:[%s3 + $0x4f4] sm:$0xff]
      %v1628 = vld [vmem:[%s3 + $0x4fc] sm:$0xff]
      %v1629 = vld [vmem:[%s3 + $0x504] sm:$0xf]
      %v1630 = vld [vmem:[%s3 + $0x508] sm:$0xff]
      %v1631 = vld [vmem:[%s3 + $0x510] sm:$0xff]
      %v1632 = vld [vmem:[%s3 + $0x518] sm:$0xff]
      %v1633 = vld [vmem:[%s3 + $0x520] sm:$0xf]
      %v1634 = vld [vmem:[%s3 + $0x524] sm:$0xff]
      %v1635 = vld [vmem:[%s3 + $0x52c] sm:$0xff]
      %v1636 = vld [vmem:[%s3 + $0x534] sm:$0xff]
      %v1637 = vld [vmem:[%s3 + $0x53c] sm:$0xf]
      %v1638 = vld [vmem:[%s3 + $0x540] sm:$0xff]
      %v1639 = vld [vmem:[%s3 + $0x548] sm:$0xff]
      %v1640 = vld [vmem:[%s3 + $0x550] sm:$0xff]
      %v1641 = vld [vmem:[%s3 + $0x558] sm:$0xf]
      %v1642 = vld [vmem:[%s3 + $0x55c] sm:$0xff]
      %v1643 = vld [vmem:[%s3 + $0x564] sm:$0xff]
      %v1644 = vld [vmem:[%s3 + $0x56c] sm:$0xff]
      %v1645 = vld [vmem:[%s3 + $0x574] sm:$0xf]
      %v1646 = vld [vmem:[%s3 + $0x578] sm:$0xff]
      %v1647 = vld [vmem:[%s3 + $0x580] sm:$0xff]
      %v1648 = vld [vmem:[%s3 + $0x588] sm:$0xff]
      %v1649 = vld [vmem:[%s3 + $0x590] sm:$0xf]
      %v1650 = vld [vmem:[%s3 + $0x594] sm:$0xff]
      %v1651 = vld [vmem:[%s3 + $0x59c] sm:$0xff]
      %v1652 = vld [vmem:[%s3 + $0x5a4] sm:$0xff]
      %v1653 = vld [vmem:[%s3 + $0x5ac] sm:$0xf]
      %v1654 = vld [vmem:[%s3 + $0x5b0] sm:$0xff]
      %v1655 = vld [vmem:[%s3 + $0x5b8] sm:$0xff]
      %v1656 = vld [vmem:[%s3 + $0x5c0] sm:$0xff]
      %v1657 = vld [vmem:[%s3 + $0x5c8] sm:$0xf]
      %v1658 = vld [vmem:[%s3 + $0x5cc] sm:$0xff]
      %v1659 = vld [vmem:[%s3 + $0x5d4] sm:$0xff]
      %v1660 = vld [vmem:[%s3 + $0x5dc] sm:$0xff]
      %v1661 = vld [vmem:[%s3 + $0x5e4] sm:$0xf]
      %v1662 = vld [vmem:[%s3 + $0x5e8] sm:$0xff]
      %v1663 = vld [vmem:[%s3 + $0x5f0] sm:$0xff]
      %v1664 = vld [vmem:[%s3 + $0x5f8] sm:$0xff]
      %v1665 = vld [vmem:[%s3 + $0x600] sm:$0xf]
      %v1666 = vld [vmem:[%s3 + $0x604] sm:$0xff]
      %v1667 = vld [vmem:[%s3 + $0x60c] sm:$0xff]
      %v1668 = vld [vmem:[%s3 + $0x614] sm:$0xff]
      %v1669 = vld [vmem:[%s3 + $0x61c] sm:$0xf]
      %v1670 = vld [vmem:[%s3 + $0x620] sm:$0xff]
      %v1671 = vld [vmem:[%s3 + $0x628] sm:$0xff]
      %v1672 = vld [vmem:[%s3 + $0x630] sm:$0xff]
      %v1673 = vld [vmem:[%s3 + $0x638] sm:$0xf]
      %v1674 = vld [vmem:[%s3 + $0x63c] sm:$0xff]
      %v1675 = vld [vmem:[%s3 + $0x644] sm:$0xff]
      %v1676 = vld [vmem:[%s3 + $0x64c] sm:$0xff]
      %v1677 = vld [vmem:[%s3 + $0x654] sm:$0xf]
      %v1678 = vld [vmem:[%s3 + $0x658] sm:$0xff]
      %v1679 = vld [vmem:[%s3 + $0x660] sm:$0xff]
      %v1680 = vld [vmem:[%s3 + $0x668] sm:$0xff]
      %v1681 = vld [vmem:[%s3 + $0x670] sm:$0xf]
      %v1682 = vld [vmem:[%s3 + $0x674] sm:$0xff]
      %v1683 = vld [vmem:[%s3 + $0x67c] sm:$0xff]
      %v1684 = vld [vmem:[%s3 + $0x684] sm:$0xff]
      %v1685 = vld [vmem:[%s3 + $0x68c] sm:$0xf]
      %v1686 = vld [vmem:[%s3 + $0x690] sm:$0xff]
      %v1687 = vld [vmem:[%s3 + $0x698] sm:$0xff]
      %v1688 = vld [vmem:[%s3 + $0x6a0] sm:$0xff]
      %v1689 = vld [vmem:[%s3 + $0x6a8] sm:$0xf]
      %v1690 = vld [vmem:[%s3 + $0x6ac] sm:$0xff]
      %v1691 = vld [vmem:[%s3 + $0x6b4] sm:$0xff]
      %v1692 = vld [vmem:[%s3 + $0x6bc] sm:$0xff]
      %v1693 = vld [vmem:[%s3 + $0x6c4] sm:$0xf]
      %v1694 = vld [vmem:[%s3 + $0x6c8] sm:$0xff]
      %v1695 = vld [vmem:[%s3 + $0x6d0] sm:$0xff]
      %v1696 = vld [vmem:[%s3 + $0x6d8] sm:$0xff]
      %v1697 = vld [vmem:[%s3 + $0x6e0] sm:$0xf]
      %v1698 = vld [vmem:[%s3 + $0x6e4] sm:$0xff]
      %v1699 = vld [vmem:[%s3 + $0x6ec] sm:$0xff]
      %v1700 = vld [vmem:[%s3 + $0x6f4] sm:$0xff]
      %v1701 = vld [vmem:[%s3 + $0x6fc] sm:$0xf]
      %v1702 = vld [vmem:[%s4] sm:$0x7f]
      %v1704 = vlaneseq
      %v1705 = vshrl.u32 %v1704, 7
      %v1706 = vsub.s32 0, %v1705
      %v1707 = vrot.slane %v1702, %v1706
      %v1708 = vlaneseq
      %v1709 = vshrl.u32 %v1708, 7
      %v1710 = vsub.s32 1, %v1709
      %v1711 = vrot.slane %v1702, %v1710
      %v1712 = vlaneseq
      %v1713 = vshrl.u32 %v1712, 7
      %v1714 = vsub.s32 2, %v1713
      %v1715 = vrot.slane %v1702, %v1714
      %v1716 = vlaneseq
      %v1717 = vshrl.u32 %v1716, 7
      %v1718 = vsub.s32 3, %v1717
      %v1719 = vrot.slane %v1702, %v1718
      %v1720 = vlaneseq
      %v1721 = vshrl.u32 %v1720, 7
      %v1722 = vsub.s32 4, %v1721
      %v1723 = vrot.slane %v1702, %v1722
      %v1724 = vlaneseq
      %v1725 = vshrl.u32 %v1724, 7
      %v1726 = vsub.s32 5, %v1725
      %v1727 = vrot.slane %v1702, %v1726
      %v1728 = vlaneseq
      %v1729 = vshrl.u32 %v1728, 7
      %v1730 = vsub.s32 6, %v1729
      %v1731 = vrot.slane %v1702, %v1730
      %v1995 = vunpack.c.l.b16 %v1446
      %v1996 = vunpack.c.h.b16 %v1446
      %v1997 = vunpack.c.l.b16 %v1447
      %v1998 = vunpack.c.h.b16 %v1447
      %v1999 = vunpack.c.l.b16 %v1448
      %v2000 = vunpack.c.h.b16 %v1448
      %v2001 = vunpack.c.l.b16 %v1449
      %v2002 = vunpack.c.l.b16 %v1450
      %v2003 = vunpack.c.h.b16 %v1450
      %v2004 = vunpack.c.l.b16 %v1451
      %v2005 = vunpack.c.h.b16 %v1451
      %v2006 = vunpack.c.l.b16 %v1452
      %v2007 = vunpack.c.h.b16 %v1452
      %v2008 = vunpack.c.l.b16 %v1453
      %v2009 = vunpack.c.l.b16 %v1454
      %v2010 = vunpack.c.h.b16 %v1454
      %v2011 = vunpack.c.l.b16 %v1455
      %v2012 = vunpack.c.h.b16 %v1455
      %v2013 = vunpack.c.l.b16 %v1456
      %v2014 = vunpack.c.h.b16 %v1456
      %v2015 = vunpack.c.l.b16 %v1457
      %v2016 = vunpack.c.l.b16 %v1458
      %v2017 = vunpack.c.h.b16 %v1458
      %v2018 = vunpack.c.l.b16 %v1459
      %v2019 = vunpack.c.h.b16 %v1459
      %v2020 = vunpack.c.l.b16 %v1460
      %v2021 = vunpack.c.h.b16 %v1460
      %v2022 = vunpack.c.l.b16 %v1461
      %v2023 = vunpack.c.l.b16 %v1462
      %v2024 = vunpack.c.h.b16 %v1462
      %v2025 = vunpack.c.l.b16 %v1463
      %v2026 = vunpack.c.h.b16 %v1463
      %v2027 = vunpack.c.l.b16 %v1464
      %v2028 = vunpack.c.h.b16 %v1464
      %v2029 = vunpack.c.l.b16 %v1465
      %v2030 = vunpack.c.l.b16 %v1466
      %v2031 = vunpack.c.h.b16 %v1466
      %v2032 = vunpack.c.l.b16 %v1467
      %v2033 = vunpack.c.h.b16 %v1467
      %v2034 = vunpack.c.l.b16 %v1468
      %v2035 = vunpack.c.h.b16 %v1468
      %v2036 = vunpack.c.l.b16 %v1469
      %v2037 = vunpack.c.l.b16 %v1470
      %v2038 = vunpack.c.h.b16 %v1470
      %v2039 = vunpack.c.l.b16 %v1471
      %v2040 = vunpack.c.h.b16 %v1471
      %v2041 = vunpack.c.l.b16 %v1472
      %v2042 = vunpack.c.h.b16 %v1472
      %v2043 = vunpack.c.l.b16 %v1473
      %v2044 = vunpack.c.l.b16 %v1474
      %v2045 = vunpack.c.h.b16 %v1474
      %v2046 = vunpack.c.l.b16 %v1475
      %v2047 = vunpack.c.h.b16 %v1475
      %v2048 = vunpack.c.l.b16 %v1476
      %v2049 = vunpack.c.h.b16 %v1476
      %v2050 = vunpack.c.l.b16 %v1477
      %v2051 = vunpack.c.l.b16 %v1478
      %v2052 = vunpack.c.h.b16 %v1478
      %v2053 = vunpack.c.l.b16 %v1479
      %v2054 = vunpack.c.h.b16 %v1479
      %v2055 = vunpack.c.l.b16 %v1480
      %v2056 = vunpack.c.h.b16 %v1480
      %v2057 = vunpack.c.l.b16 %v1481
      %v2058 = vunpack.c.l.b16 %v1482
      %v2059 = vunpack.c.h.b16 %v1482
      %v2060 = vunpack.c.l.b16 %v1483
      %v2061 = vunpack.c.h.b16 %v1483
      %v2062 = vunpack.c.l.b16 %v1484
      %v2063 = vunpack.c.h.b16 %v1484
      %v2064 = vunpack.c.l.b16 %v1485
      %v2065 = vunpack.c.l.b16 %v1486
      %v2066 = vunpack.c.h.b16 %v1486
      %v2067 = vunpack.c.l.b16 %v1487
      %v2068 = vunpack.c.h.b16 %v1487
      %v2069 = vunpack.c.l.b16 %v1488
      %v2070 = vunpack.c.h.b16 %v1488
      %v2071 = vunpack.c.l.b16 %v1489
      %v2072 = vunpack.c.l.b16 %v1490
      %v2073 = vunpack.c.h.b16 %v1490
      %v2074 = vunpack.c.l.b16 %v1491
      %v2075 = vunpack.c.h.b16 %v1491
      %v2076 = vunpack.c.l.b16 %v1492
      %v2077 = vunpack.c.h.b16 %v1492
      %v2078 = vunpack.c.l.b16 %v1493
      %v2079 = vunpack.c.l.b16 %v1494
      %v2080 = vunpack.c.h.b16 %v1494
      %v2081 = vunpack.c.l.b16 %v1495
      %v2082 = vunpack.c.h.b16 %v1495
      %v2083 = vunpack.c.l.b16 %v1496
      %v2084 = vunpack.c.h.b16 %v1496
      %v2085 = vunpack.c.l.b16 %v1497
      %v2086 = vunpack.c.l.b16 %v1498
      %v2087 = vunpack.c.h.b16 %v1498
      %v2088 = vunpack.c.l.b16 %v1499
      %v2089 = vunpack.c.h.b16 %v1499
      %v2090 = vunpack.c.l.b16 %v1500
      %v2091 = vunpack.c.h.b16 %v1500
      %v2092 = vunpack.c.l.b16 %v1501
      %v2093 = vunpack.c.l.b16 %v1502
      %v2094 = vunpack.c.h.b16 %v1502
      %v2095 = vunpack.c.l.b16 %v1503
      %v2096 = vunpack.c.h.b16 %v1503
      %v2097 = vunpack.c.l.b16 %v1504
      %v2098 = vunpack.c.h.b16 %v1504
      %v2099 = vunpack.c.l.b16 %v1505
      %v2100 = vunpack.c.l.b16 %v1506
      %v2101 = vunpack.c.h.b16 %v1506
      %v2102 = vunpack.c.l.b16 %v1507
      %v2103 = vunpack.c.h.b16 %v1507
      %v2104 = vunpack.c.l.b16 %v1508
      %v2105 = vunpack.c.h.b16 %v1508
      %v2106 = vunpack.c.l.b16 %v1509
      %v2107 = vunpack.c.l.b16 %v1510
      %v2108 = vunpack.c.h.b16 %v1510
      %v2109 = vunpack.c.l.b16 %v1511
      %v2110 = vunpack.c.h.b16 %v1511
      %v2111 = vunpack.c.l.b16 %v1512
      %v2112 = vunpack.c.h.b16 %v1512
      %v2113 = vunpack.c.l.b16 %v1513
      %v2114 = vunpack.c.l.b16 %v1514
      %v2115 = vunpack.c.h.b16 %v1514
      %v2116 = vunpack.c.l.b16 %v1515
      %v2117 = vunpack.c.h.b16 %v1515
      %v2118 = vunpack.c.l.b16 %v1516
      %v2119 = vunpack.c.h.b16 %v1516
      %v2120 = vunpack.c.l.b16 %v1517
      %v2121 = vunpack.c.l.b16 %v1518
      %v2122 = vunpack.c.h.b16 %v1518
      %v2123 = vunpack.c.l.b16 %v1519
      %v2124 = vunpack.c.h.b16 %v1519
      %v2125 = vunpack.c.l.b16 %v1520
      %v2126 = vunpack.c.h.b16 %v1520
      %v2127 = vunpack.c.l.b16 %v1521
      %v2128 = vunpack.c.l.b16 %v1522
      %v2129 = vunpack.c.h.b16 %v1522
      %v2130 = vunpack.c.l.b16 %v1523
      %v2131 = vunpack.c.h.b16 %v1523
      %v2132 = vunpack.c.l.b16 %v1524
      %v2133 = vunpack.c.h.b16 %v1524
      %v2134 = vunpack.c.l.b16 %v1525
      %v2135 = vunpack.c.l.b16 %v1526
      %v2136 = vunpack.c.h.b16 %v1526
      %v2137 = vunpack.c.l.b16 %v1527
      %v2138 = vunpack.c.h.b16 %v1527
      %v2139 = vunpack.c.l.b16 %v1528
      %v2140 = vunpack.c.h.b16 %v1528
      %v2141 = vunpack.c.l.b16 %v1529
      %v2142 = vunpack.c.l.b16 %v1530
      %v2143 = vunpack.c.h.b16 %v1530
      %v2144 = vunpack.c.l.b16 %v1531
      %v2145 = vunpack.c.h.b16 %v1531
      %v2146 = vunpack.c.l.b16 %v1532
      %v2147 = vunpack.c.h.b16 %v1532
      %v2148 = vunpack.c.l.b16 %v1533
      %v2149 = vunpack.c.l.b16 %v1534
      %v2150 = vunpack.c.h.b16 %v1534
      %v2151 = vunpack.c.l.b16 %v1535
      %v2152 = vunpack.c.h.b16 %v1535
      %v2153 = vunpack.c.l.b16 %v1536
      %v2154 = vunpack.c.h.b16 %v1536
      %v2155 = vunpack.c.l.b16 %v1537
      %v2156 = vunpack.c.l.b16 %v1538
      %v2157 = vunpack.c.h.b16 %v1538
      %v2158 = vunpack.c.l.b16 %v1539
      %v2159 = vunpack.c.h.b16 %v1539
      %v2160 = vunpack.c.l.b16 %v1540
      %v2161 = vunpack.c.h.b16 %v1540
      %v2162 = vunpack.c.l.b16 %v1541
      %v2163 = vunpack.c.l.b16 %v1542
      %v2164 = vunpack.c.h.b16 %v1542
      %v2165 = vunpack.c.l.b16 %v1543
      %v2166 = vunpack.c.h.b16 %v1543
      %v2167 = vunpack.c.l.b16 %v1544
      %v2168 = vunpack.c.h.b16 %v1544
      %v2169 = vunpack.c.l.b16 %v1545
      %v2170 = vunpack.c.l.b16 %v1546
      %v2171 = vunpack.c.h.b16 %v1546
      %v2172 = vunpack.c.l.b16 %v1547
      %v2173 = vunpack.c.h.b16 %v1547
      %v2174 = vunpack.c.l.b16 %v1548
      %v2175 = vunpack.c.h.b16 %v1548
      %v2176 = vunpack.c.l.b16 %v1549
      %v2177 = vunpack.c.l.b16 %v1550
      %v2178 = vunpack.c.h.b16 %v1550
      %v2179 = vunpack.c.l.b16 %v1551
      %v2180 = vunpack.c.h.b16 %v1551
      %v2181 = vunpack.c.l.b16 %v1552
      %v2182 = vunpack.c.h.b16 %v1552
      %v2183 = vunpack.c.l.b16 %v1553
      %v2184 = vunpack.c.l.b16 %v1554
      %v2185 = vunpack.c.h.b16 %v1554
      %v2186 = vunpack.c.l.b16 %v1555
      %v2187 = vunpack.c.h.b16 %v1555
      %v2188 = vunpack.c.l.b16 %v1556
      %v2189 = vunpack.c.h.b16 %v1556
      %v2190 = vunpack.c.l.b16 %v1557
      %v2191 = vunpack.c.l.b16 %v1558
      %v2192 = vunpack.c.h.b16 %v1558
      %v2193 = vunpack.c.l.b16 %v1559
      %v2194 = vunpack.c.h.b16 %v1559
      %v2195 = vunpack.c.l.b16 %v1560
      %v2196 = vunpack.c.h.b16 %v1560
      %v2197 = vunpack.c.l.b16 %v1561
      %v2198 = vunpack.c.l.b16 %v1562
      %v2199 = vunpack.c.h.b16 %v1562
      %v2200 = vunpack.c.l.b16 %v1563
      %v2201 = vunpack.c.h.b16 %v1563
      %v2202 = vunpack.c.l.b16 %v1564
      %v2203 = vunpack.c.h.b16 %v1564
      %v2204 = vunpack.c.l.b16 %v1565
      %v2205 = vunpack.c.l.b16 %v1566
      %v2206 = vunpack.c.h.b16 %v1566
      %v2207 = vunpack.c.l.b16 %v1567
      %v2208 = vunpack.c.h.b16 %v1567
      %v2209 = vunpack.c.l.b16 %v1568
      %v2210 = vunpack.c.h.b16 %v1568
      %v2211 = vunpack.c.l.b16 %v1569
      %v2212 = vunpack.c.l.b16 %v1570
      %v2213 = vunpack.c.h.b16 %v1570
      %v2214 = vunpack.c.l.b16 %v1571
      %v2215 = vunpack.c.h.b16 %v1571
      %v2216 = vunpack.c.l.b16 %v1572
      %v2217 = vunpack.c.h.b16 %v1572
      %v2218 = vunpack.c.l.b16 %v1573
      %v2219 = vunpack.c.l.b16 %v1574
      %v2220 = vunpack.c.h.b16 %v1574
      %v2221 = vunpack.c.l.b16 %v1575
      %v2222 = vunpack.c.h.b16 %v1575
      %v2223 = vunpack.c.l.b16 %v1576
      %v2224 = vunpack.c.h.b16 %v1576
      %v2225 = vunpack.c.l.b16 %v1577
      %v2226 = vunpack.c.l.b16 %v1578
      %v2227 = vunpack.c.h.b16 %v1578
      %v2228 = vunpack.c.l.b16 %v1579
      %v2229 = vunpack.c.h.b16 %v1579
      %v2230 = vunpack.c.l.b16 %v1580
      %v2231 = vunpack.c.h.b16 %v1580
      %v2232 = vunpack.c.l.b16 %v1581
      %v2233 = vunpack.c.l.b16 %v1582
      %v2234 = vunpack.c.h.b16 %v1582
      %v2235 = vunpack.c.l.b16 %v1583
      %v2236 = vunpack.c.h.b16 %v1583
      %v2237 = vunpack.c.l.b16 %v1584
      %v2238 = vunpack.c.h.b16 %v1584
      %v2239 = vunpack.c.l.b16 %v1585
      %v2240 = vunpack.c.l.b16 %v1586
      %v2241 = vunpack.c.h.b16 %v1586
      %v2242 = vunpack.c.l.b16 %v1587
      %v2243 = vunpack.c.h.b16 %v1587
      %v2244 = vunpack.c.l.b16 %v1588
      %v2245 = vunpack.c.h.b16 %v1588
      %v2246 = vunpack.c.l.b16 %v1589
      %v2247 = vunpack.c.l.b16 %v1590
      %v2248 = vunpack.c.h.b16 %v1590
      %v2249 = vunpack.c.l.b16 %v1591
      %v2250 = vunpack.c.h.b16 %v1591
      %v2251 = vunpack.c.l.b16 %v1592
      %v2252 = vunpack.c.h.b16 %v1592
      %v2253 = vunpack.c.l.b16 %v1593
      %v2254 = vunpack.c.l.b16 %v1594
      %v2255 = vunpack.c.h.b16 %v1594
      %v2256 = vunpack.c.l.b16 %v1595
      %v2257 = vunpack.c.h.b16 %v1595
      %v2258 = vunpack.c.l.b16 %v1596
      %v2259 = vunpack.c.h.b16 %v1596
      %v2260 = vunpack.c.l.b16 %v1597
      %v2261 = vunpack.c.l.b16 %v1598
      %v2262 = vunpack.c.h.b16 %v1598
      %v2263 = vunpack.c.l.b16 %v1599
      %v2264 = vunpack.c.h.b16 %v1599
      %v2265 = vunpack.c.l.b16 %v1600
      %v2266 = vunpack.c.h.b16 %v1600
      %v2267 = vunpack.c.l.b16 %v1601
      %v2268 = vunpack.c.l.b16 %v1602
      %v2269 = vunpack.c.h.b16 %v1602
      %v2270 = vunpack.c.l.b16 %v1603
      %v2271 = vunpack.c.h.b16 %v1603
      %v2272 = vunpack.c.l.b16 %v1604
      %v2273 = vunpack.c.h.b16 %v1604
      %v2274 = vunpack.c.l.b16 %v1605
      %v2275 = vunpack.c.l.b16 %v1606
      %v2276 = vunpack.c.h.b16 %v1606
      %v2277 = vunpack.c.l.b16 %v1607
      %v2278 = vunpack.c.h.b16 %v1607
      %v2279 = vunpack.c.l.b16 %v1608
      %v2280 = vunpack.c.h.b16 %v1608
      %v2281 = vunpack.c.l.b16 %v1609
      %v2282 = vunpack.c.l.b16 %v1610
      %v2283 = vunpack.c.h.b16 %v1610
      %v2284 = vunpack.c.l.b16 %v1611
      %v2285 = vunpack.c.h.b16 %v1611
      %v2286 = vunpack.c.l.b16 %v1612
      %v2287 = vunpack.c.h.b16 %v1612
      %v2288 = vunpack.c.l.b16 %v1613
      %v2289 = vunpack.c.l.b16 %v1614
      %v2290 = vunpack.c.h.b16 %v1614
      %v2291 = vunpack.c.l.b16 %v1615
      %v2292 = vunpack.c.h.b16 %v1615
      %v2293 = vunpack.c.l.b16 %v1616
      %v2294 = vunpack.c.h.b16 %v1616
      %v2295 = vunpack.c.l.b16 %v1617
      %v2296 = vunpack.c.l.b16 %v1618
      %v2297 = vunpack.c.h.b16 %v1618
      %v2298 = vunpack.c.l.b16 %v1619
      %v2299 = vunpack.c.h.b16 %v1619
      %v2300 = vunpack.c.l.b16 %v1620
      %v2301 = vunpack.c.h.b16 %v1620
      %v2302 = vunpack.c.l.b16 %v1621
      %v2303 = vunpack.c.l.b16 %v1622
      %v2304 = vunpack.c.h.b16 %v1622
      %v2305 = vunpack.c.l.b16 %v1623
      %v2306 = vunpack.c.h.b16 %v1623
      %v2307 = vunpack.c.l.b16 %v1624
      %v2308 = vunpack.c.h.b16 %v1624
      %v2309 = vunpack.c.l.b16 %v1625
      %v2310 = vunpack.c.l.b16 %v1626
      %v2311 = vunpack.c.h.b16 %v1626
      %v2312 = vunpack.c.l.b16 %v1627
      %v2313 = vunpack.c.h.b16 %v1627
      %v2314 = vunpack.c.l.b16 %v1628
      %v2315 = vunpack.c.h.b16 %v1628
      %v2316 = vunpack.c.l.b16 %v1629
      %v2317 = vunpack.c.l.b16 %v1630
      %v2318 = vunpack.c.h.b16 %v1630
      %v2319 = vunpack.c.l.b16 %v1631
      %v2320 = vunpack.c.h.b16 %v1631
      %v2321 = vunpack.c.l.b16 %v1632
      %v2322 = vunpack.c.h.b16 %v1632
      %v2323 = vunpack.c.l.b16 %v1633
      %v2324 = vunpack.c.l.b16 %v1634
      %v2325 = vunpack.c.h.b16 %v1634
      %v2326 = vunpack.c.l.b16 %v1635
      %v2327 = vunpack.c.h.b16 %v1635
      %v2328 = vunpack.c.l.b16 %v1636
      %v2329 = vunpack.c.h.b16 %v1636
      %v2330 = vunpack.c.l.b16 %v1637
      %v2331 = vunpack.c.l.b16 %v1638
      %v2332 = vunpack.c.h.b16 %v1638
      %v2333 = vunpack.c.l.b16 %v1639
      %v2334 = vunpack.c.h.b16 %v1639
      %v2335 = vunpack.c.l.b16 %v1640
      %v2336 = vunpack.c.h.b16 %v1640
      %v2337 = vunpack.c.l.b16 %v1641
      %v2338 = vunpack.c.l.b16 %v1642
      %v2339 = vunpack.c.h.b16 %v1642
      %v2340 = vunpack.c.l.b16 %v1643
      %v2341 = vunpack.c.h.b16 %v1643
      %v2342 = vunpack.c.l.b16 %v1644
      %v2343 = vunpack.c.h.b16 %v1644
      %v2344 = vunpack.c.l.b16 %v1645
      %v2345 = vunpack.c.l.b16 %v1646
      %v2346 = vunpack.c.h.b16 %v1646
      %v2347 = vunpack.c.l.b16 %v1647
      %v2348 = vunpack.c.h.b16 %v1647
      %v2349 = vunpack.c.l.b16 %v1648
      %v2350 = vunpack.c.h.b16 %v1648
      %v2351 = vunpack.c.l.b16 %v1649
      %v2352 = vunpack.c.l.b16 %v1650
      %v2353 = vunpack.c.h.b16 %v1650
      %v2354 = vunpack.c.l.b16 %v1651
      %v2355 = vunpack.c.h.b16 %v1651
      %v2356 = vunpack.c.l.b16 %v1652
      %v2357 = vunpack.c.h.b16 %v1652
      %v2358 = vunpack.c.l.b16 %v1653
      %v2359 = vunpack.c.l.b16 %v1654
      %v2360 = vunpack.c.h.b16 %v1654
      %v2361 = vunpack.c.l.b16 %v1655
      %v2362 = vunpack.c.h.b16 %v1655
      %v2363 = vunpack.c.l.b16 %v1656
      %v2364 = vunpack.c.h.b16 %v1656
      %v2365 = vunpack.c.l.b16 %v1657
      %v2366 = vunpack.c.l.b16 %v1658
      %v2367 = vunpack.c.h.b16 %v1658
      %v2368 = vunpack.c.l.b16 %v1659
      %v2369 = vunpack.c.h.b16 %v1659
      %v2370 = vunpack.c.l.b16 %v1660
      %v2371 = vunpack.c.h.b16 %v1660
      %v2372 = vunpack.c.l.b16 %v1661
      %v2373 = vunpack.c.l.b16 %v1662
      %v2374 = vunpack.c.h.b16 %v1662
      %v2375 = vunpack.c.l.b16 %v1663
      %v2376 = vunpack.c.h.b16 %v1663
      %v2377 = vunpack.c.l.b16 %v1664
      %v2378 = vunpack.c.h.b16 %v1664
      %v2379 = vunpack.c.l.b16 %v1665
      %v2380 = vunpack.c.l.b16 %v1666
      %v2381 = vunpack.c.h.b16 %v1666
      %v2382 = vunpack.c.l.b16 %v1667
      %v2383 = vunpack.c.h.b16 %v1667
      %v2384 = vunpack.c.l.b16 %v1668
      %v2385 = vunpack.c.h.b16 %v1668
      %v2386 = vunpack.c.l.b16 %v1669
      %v2387 = vunpack.c.l.b16 %v1670
      %v2388 = vunpack.c.h.b16 %v1670
      %v2389 = vunpack.c.l.b16 %v1671
      %v2390 = vunpack.c.h.b16 %v1671
      %v2391 = vunpack.c.l.b16 %v1672
      %v2392 = vunpack.c.h.b16 %v1672
      %v2393 = vunpack.c.l.b16 %v1673
      %v2394 = vunpack.c.l.b16 %v1674
      %v2395 = vunpack.c.h.b16 %v1674
      %v2396 = vunpack.c.l.b16 %v1675
      %v2397 = vunpack.c.h.b16 %v1675
      %v2398 = vunpack.c.l.b16 %v1676
      %v2399 = vunpack.c.h.b16 %v1676
      %v2400 = vunpack.c.l.b16 %v1677
      %v2401 = vunpack.c.l.b16 %v1678
      %v2402 = vunpack.c.h.b16 %v1678
      %v2403 = vunpack.c.l.b16 %v1679
      %v2404 = vunpack.c.h.b16 %v1679
      %v2405 = vunpack.c.l.b16 %v1680
      %v2406 = vunpack.c.h.b16 %v1680
      %v2407 = vunpack.c.l.b16 %v1681
      %v2408 = vunpack.c.l.b16 %v1682
      %v2409 = vunpack.c.h.b16 %v1682
      %v2410 = vunpack.c.l.b16 %v1683
      %v2411 = vunpack.c.h.b16 %v1683
      %v2412 = vunpack.c.l.b16 %v1684
      %v2413 = vunpack.c.h.b16 %v1684
      %v2414 = vunpack.c.l.b16 %v1685
      %v2415 = vunpack.c.l.b16 %v1686
      %v2416 = vunpack.c.h.b16 %v1686
      %v2417 = vunpack.c.l.b16 %v1687
      %v2418 = vunpack.c.h.b16 %v1687
      %v2419 = vunpack.c.l.b16 %v1688
      %v2420 = vunpack.c.h.b16 %v1688
      %v2421 = vunpack.c.l.b16 %v1689
      %v2422 = vunpack.c.l.b16 %v1690
      %v2423 = vunpack.c.h.b16 %v1690
      %v2424 = vunpack.c.l.b16 %v1691
      %v2425 = vunpack.c.h.b16 %v1691
      %v2426 = vunpack.c.l.b16 %v1692
      %v2427 = vunpack.c.h.b16 %v1692
      %v2428 = vunpack.c.l.b16 %v1693
      %v2429 = vunpack.c.l.b16 %v1694
      %v2430 = vunpack.c.h.b16 %v1694
      %v2431 = vunpack.c.l.b16 %v1695
      %v2432 = vunpack.c.h.b16 %v1695
      %v2433 = vunpack.c.l.b16 %v1696
      %v2434 = vunpack.c.h.b16 %v1696
      %v2435 = vunpack.c.l.b16 %v1697
      %v2436 = vunpack.c.l.b16 %v1698
      %v2437 = vunpack.c.h.b16 %v1698
      %v2438 = vunpack.c.l.b16 %v1699
      %v2439 = vunpack.c.h.b16 %v1699
      %v2440 = vunpack.c.l.b16 %v1700
      %v2441 = vunpack.c.h.b16 %v1700
      %v2442 = vunpack.c.l.b16 %v1701
      %v2443 = vpack.c.b16 %v2002, %v1995
      %v2444 = vpack.c.b16 %v2003, %v1996
      %v2445 = vpack.c.b16 %v2004, %v1997
      %v2446 = vpack.c.b16 %v2005, %v1998
      %v2447 = vpack.c.b16 %v2006, %v1999
      %v2448 = vpack.c.b16 %v2007, %v2000
      %v2449 = vpack.c.b16 %v2008, %v2001
      %v2450 = vpack.c.b16 %v2016, %v2009
      %v2451 = vpack.c.b16 %v2017, %v2010
      %v2452 = vpack.c.b16 %v2018, %v2011
      %v2453 = vpack.c.b16 %v2019, %v2012
      %v2454 = vpack.c.b16 %v2020, %v2013
      %v2455 = vpack.c.b16 %v2021, %v2014
      %v2456 = vpack.c.b16 %v2022, %v2015
      %v2457 = vpack.c.b16 %v2030, %v2023
      %v2458 = vpack.c.b16 %v2031, %v2024
      %v2459 = vpack.c.b16 %v2032, %v2025
      %v2460 = vpack.c.b16 %v2033, %v2026
      %v2461 = vpack.c.b16 %v2034, %v2027
      %v2462 = vpack.c.b16 %v2035, %v2028
      %v2463 = vpack.c.b16 %v2036, %v2029
      %v2464 = vpack.c.b16 %v2044, %v2037
      %v2465 = vpack.c.b16 %v2045, %v2038
      %v2466 = vpack.c.b16 %v2046, %v2039
      %v2467 = vpack.c.b16 %v2047, %v2040
      %v2468 = vpack.c.b16 %v2048, %v2041
      %v2469 = vpack.c.b16 %v2049, %v2042
      %v2470 = vpack.c.b16 %v2050, %v2043
      %v2471 = vpack.c.b16 %v2058, %v2051
      %v2472 = vpack.c.b16 %v2059, %v2052
      %v2473 = vpack.c.b16 %v2060, %v2053
      %v2474 = vpack.c.b16 %v2061, %v2054
      %v2475 = vpack.c.b16 %v2062, %v2055
      %v2476 = vpack.c.b16 %v2063, %v2056
      %v2477 = vpack.c.b16 %v2064, %v2057
      %v2478 = vpack.c.b16 %v2072, %v2065
      %v2479 = vpack.c.b16 %v2073, %v2066
      %v2480 = vpack.c.b16 %v2074, %v2067
      %v2481 = vpack.c.b16 %v2075, %v2068
      %v2482 = vpack.c.b16 %v2076, %v2069
      %v2483 = vpack.c.b16 %v2077, %v2070
      %v2484 = vpack.c.b16 %v2078, %v2071
      %v2485 = vpack.c.b16 %v2086, %v2079
      %v2486 = vpack.c.b16 %v2087, %v2080
      %v2487 = vpack.c.b16 %v2088, %v2081
      %v2488 = vpack.c.b16 %v2089, %v2082
      %v2489 = vpack.c.b16 %v2090, %v2083
      %v2490 = vpack.c.b16 %v2091, %v2084
      %v2491 = vpack.c.b16 %v2092, %v2085
      %v2492 = vpack.c.b16 %v2100, %v2093
      %v2493 = vpack.c.b16 %v2101, %v2094
      %v2494 = vpack.c.b16 %v2102, %v2095
      %v2495 = vpack.c.b16 %v2103, %v2096
      %v2496 = vpack.c.b16 %v2104, %v2097
      %v2497 = vpack.c.b16 %v2105, %v2098
      %v2498 = vpack.c.b16 %v2106, %v2099
      %v2499 = vpack.c.b16 %v2114, %v2107
      %v2500 = vpack.c.b16 %v2115, %v2108
      %v2501 = vpack.c.b16 %v2116, %v2109
      %v2502 = vpack.c.b16 %v2117, %v2110
      %v2503 = vpack.c.b16 %v2118, %v2111
      %v2504 = vpack.c.b16 %v2119, %v2112
      %v2505 = vpack.c.b16 %v2120, %v2113
      %v2506 = vpack.c.b16 %v2128, %v2121
      %v2507 = vpack.c.b16 %v2129, %v2122
      %v2508 = vpack.c.b16 %v2130, %v2123
      %v2509 = vpack.c.b16 %v2131, %v2124
      %v2510 = vpack.c.b16 %v2132, %v2125
      %v2511 = vpack.c.b16 %v2133, %v2126
      %v2512 = vpack.c.b16 %v2134, %v2127
      %v2513 = vpack.c.b16 %v2142, %v2135
      %v2514 = vpack.c.b16 %v2143, %v2136
      %v2515 = vpack.c.b16 %v2144, %v2137
      %v2516 = vpack.c.b16 %v2145, %v2138
      %v2517 = vpack.c.b16 %v2146, %v2139
      %v2518 = vpack.c.b16 %v2147, %v2140
      %v2519 = vpack.c.b16 %v2148, %v2141
      %v2520 = vpack.c.b16 %v2156, %v2149
      %v2521 = vpack.c.b16 %v2157, %v2150
      %v2522 = vpack.c.b16 %v2158, %v2151
      %v2523 = vpack.c.b16 %v2159, %v2152
      %v2524 = vpack.c.b16 %v2160, %v2153
      %v2525 = vpack.c.b16 %v2161, %v2154
      %v2526 = vpack.c.b16 %v2162, %v2155
      %v2527 = vpack.c.b16 %v2170, %v2163
      %v2528 = vpack.c.b16 %v2171, %v2164
      %v2529 = vpack.c.b16 %v2172, %v2165
      %v2530 = vpack.c.b16 %v2173, %v2166
      %v2531 = vpack.c.b16 %v2174, %v2167
      %v2532 = vpack.c.b16 %v2175, %v2168
      %v2533 = vpack.c.b16 %v2176, %v2169
      %v2534 = vpack.c.b16 %v2184, %v2177
      %v2535 = vpack.c.b16 %v2185, %v2178
      %v2536 = vpack.c.b16 %v2186, %v2179
      %v2537 = vpack.c.b16 %v2187, %v2180
      %v2538 = vpack.c.b16 %v2188, %v2181
      %v2539 = vpack.c.b16 %v2189, %v2182
      %v2540 = vpack.c.b16 %v2190, %v2183
      %v2541 = vpack.c.b16 %v2198, %v2191
      %v2542 = vpack.c.b16 %v2199, %v2192
      %v2543 = vpack.c.b16 %v2200, %v2193
      %v2544 = vpack.c.b16 %v2201, %v2194
      %v2545 = vpack.c.b16 %v2202, %v2195
      %v2546 = vpack.c.b16 %v2203, %v2196
      %v2547 = vpack.c.b16 %v2204, %v2197
      %v2548 = vpack.c.b16 %v2212, %v2205
      %v2549 = vpack.c.b16 %v2213, %v2206
      %v2550 = vpack.c.b16 %v2214, %v2207
      %v2551 = vpack.c.b16 %v2215, %v2208
      %v2552 = vpack.c.b16 %v2216, %v2209
      %v2553 = vpack.c.b16 %v2217, %v2210
      %v2554 = vpack.c.b16 %v2218, %v2211
      %v2555 = vpack.c.b16 %v2226, %v2219
      %v2556 = vpack.c.b16 %v2227, %v2220
      %v2557 = vpack.c.b16 %v2228, %v2221
      %v2558 = vpack.c.b16 %v2229, %v2222
      %v2559 = vpack.c.b16 %v2230, %v2223
      %v2560 = vpack.c.b16 %v2231, %v2224
      %v2561 = vpack.c.b16 %v2232, %v2225
      %v2562 = vpack.c.b16 %v2240, %v2233
      %v2563 = vpack.c.b16 %v2241, %v2234
      %v2564 = vpack.c.b16 %v2242, %v2235
      %v2565 = vpack.c.b16 %v2243, %v2236
      %v2566 = vpack.c.b16 %v2244, %v2237
      %v2567 = vpack.c.b16 %v2245, %v2238
      %v2568 = vpack.c.b16 %v2246, %v2239
      %v2569 = vpack.c.b16 %v2254, %v2247
      %v2570 = vpack.c.b16 %v2255, %v2248
      %v2571 = vpack.c.b16 %v2256, %v2249
      %v2572 = vpack.c.b16 %v2257, %v2250
      %v2573 = vpack.c.b16 %v2258, %v2251
      %v2574 = vpack.c.b16 %v2259, %v2252
      %v2575 = vpack.c.b16 %v2260, %v2253
      %v2576 = vpack.c.b16 %v2268, %v2261
      %v2577 = vpack.c.b16 %v2269, %v2262
      %v2578 = vpack.c.b16 %v2270, %v2263
      %v2579 = vpack.c.b16 %v2271, %v2264
      %v2580 = vpack.c.b16 %v2272, %v2265
      %v2581 = vpack.c.b16 %v2273, %v2266
      %v2582 = vpack.c.b16 %v2274, %v2267
      %v2583 = vpack.c.b16 %v2282, %v2275
      %v2584 = vpack.c.b16 %v2283, %v2276
      %v2585 = vpack.c.b16 %v2284, %v2277
      %v2586 = vpack.c.b16 %v2285, %v2278
      %v2587 = vpack.c.b16 %v2286, %v2279
      %v2588 = vpack.c.b16 %v2287, %v2280
      %v2589 = vpack.c.b16 %v2288, %v2281
      %v2590 = vpack.c.b16 %v2296, %v2289
      %v2591 = vpack.c.b16 %v2297, %v2290
      %v2592 = vpack.c.b16 %v2298, %v2291
      %v2593 = vpack.c.b16 %v2299, %v2292
      %v2594 = vpack.c.b16 %v2300, %v2293
      %v2595 = vpack.c.b16 %v2301, %v2294
      %v2596 = vpack.c.b16 %v2302, %v2295
      %v2597 = vpack.c.b16 %v2310, %v2303
      %v2598 = vpack.c.b16 %v2311, %v2304
      %v2599 = vpack.c.b16 %v2312, %v2305
      %v2600 = vpack.c.b16 %v2313, %v2306
      %v2601 = vpack.c.b16 %v2314, %v2307
      %v2602 = vpack.c.b16 %v2315, %v2308
      %v2603 = vpack.c.b16 %v2316, %v2309
      %v2604 = vpack.c.b16 %v2324, %v2317
      %v2605 = vpack.c.b16 %v2325, %v2318
      %v2606 = vpack.c.b16 %v2326, %v2319
      %v2607 = vpack.c.b16 %v2327, %v2320
      %v2608 = vpack.c.b16 %v2328, %v2321
      %v2609 = vpack.c.b16 %v2329, %v2322
      %v2610 = vpack.c.b16 %v2330, %v2323
      %v2611 = vpack.c.b16 %v2338, %v2331
      %v2612 = vpack.c.b16 %v2339, %v2332
      %v2613 = vpack.c.b16 %v2340, %v2333
      %v2614 = vpack.c.b16 %v2341, %v2334
      %v2615 = vpack.c.b16 %v2342, %v2335
      %v2616 = vpack.c.b16 %v2343, %v2336
      %v2617 = vpack.c.b16 %v2344, %v2337
      %v2618 = vpack.c.b16 %v2352, %v2345
      %v2619 = vpack.c.b16 %v2353, %v2346
      %v2620 = vpack.c.b16 %v2354, %v2347
      %v2621 = vpack.c.b16 %v2355, %v2348
      %v2622 = vpack.c.b16 %v2356, %v2349
      %v2623 = vpack.c.b16 %v2357, %v2350
      %v2624 = vpack.c.b16 %v2358, %v2351
      %v2625 = vpack.c.b16 %v2366, %v2359
      %v2626 = vpack.c.b16 %v2367, %v2360
      %v2627 = vpack.c.b16 %v2368, %v2361
      %v2628 = vpack.c.b16 %v2369, %v2362
      %v2629 = vpack.c.b16 %v2370, %v2363
      %v2630 = vpack.c.b16 %v2371, %v2364
      %v2631 = vpack.c.b16 %v2372, %v2365
      %v2632 = vpack.c.b16 %v2380, %v2373
      %v2633 = vpack.c.b16 %v2381, %v2374
      %v2634 = vpack.c.b16 %v2382, %v2375
      %v2635 = vpack.c.b16 %v2383, %v2376
      %v2636 = vpack.c.b16 %v2384, %v2377
      %v2637 = vpack.c.b16 %v2385, %v2378
      %v2638 = vpack.c.b16 %v2386, %v2379
      %v2639 = vpack.c.b16 %v2394, %v2387
      %v2640 = vpack.c.b16 %v2395, %v2388
      %v2641 = vpack.c.b16 %v2396, %v2389
      %v2642 = vpack.c.b16 %v2397, %v2390
      %v2643 = vpack.c.b16 %v2398, %v2391
      %v2644 = vpack.c.b16 %v2399, %v2392
      %v2645 = vpack.c.b16 %v2400, %v2393
      %v2646 = vpack.c.b16 %v2408, %v2401
      %v2647 = vpack.c.b16 %v2409, %v2402
      %v2648 = vpack.c.b16 %v2410, %v2403
      %v2649 = vpack.c.b16 %v2411, %v2404
      %v2650 = vpack.c.b16 %v2412, %v2405
      %v2651 = vpack.c.b16 %v2413, %v2406
      %v2652 = vpack.c.b16 %v2414, %v2407
      %v2653 = vpack.c.b16 %v2422, %v2415
      %v2654 = vpack.c.b16 %v2423, %v2416
      %v2655 = vpack.c.b16 %v2424, %v2417
      %v2656 = vpack.c.b16 %v2425, %v2418
      %v2657 = vpack.c.b16 %v2426, %v2419
      %v2658 = vpack.c.b16 %v2427, %v2420
      %v2659 = vpack.c.b16 %v2428, %v2421
      %v2660 = vpack.c.b16 %v2436, %v2429
      %v2661 = vpack.c.b16 %v2437, %v2430
      %v2662 = vpack.c.b16 %v2438, %v2431
      %v2663 = vpack.c.b16 %v2439, %v2432
      %v2664 = vpack.c.b16 %v2440, %v2433
      %v2665 = vpack.c.b16 %v2441, %v2434
      %v2666 = vpack.c.b16 %v2442, %v2435
      %2891 = vmatprep.subr.bf16.mxu0 %v2444
      %2892 = vmatpush1.bf16.msra.mxu0 %v2443
      %2893 = vmatprep.subr.bf16.mxu0 %v2451
      %2894 = vmatpush1.bf16.msra.mxu0 %v2450
      %2895 = vmatprep.subr.bf16.mxu0 %v2458
      %2896 = vmatpush1.bf16.msra.mxu0 %v2457
      %2897 = vmatprep.subr.bf16.mxu0 %v2465
      %2898 = vmatpush1.bf16.msra.mxu0 %v2464
      %2899 = vmatprep.subr.bf16.mxu0 %v2472
      %2900 = vmatpush1.bf16.msra.mxu0 %v2471
      %2901 = vmatprep.subr.bf16.mxu0 %v2479
      %2902 = vmatpush1.bf16.msra.mxu0 %v2478
      %2903 = vmatprep.subr.bf16.mxu0 %v2486
      %2904 = vmatpush1.bf16.msra.mxu0 %v2485
      %2905 = vmatprep.subr.bf16.mxu0 %v2493
      %2906 = vmatpush1.bf16.msra.mxu0 %v2492
      %2907 = vmatprep.subr.bf16.mxu0 %v2500
      %2908 = vmatpush1.bf16.msra.mxu0 %v2499
      %2909 = vmatprep.subr.bf16.mxu0 %v2507
      %2910 = vmatpush1.bf16.msra.mxu0 %v2506
      %2911 = vmatprep.subr.bf16.mxu0 %v2514
      %2912 = vmatpush1.bf16.msra.mxu0 %v2513
      %2913 = vmatprep.subr.bf16.mxu0 %v2521
      %2914 = vmatpush1.bf16.msra.mxu0 %v2520
      %2915 = vmatprep.subr.bf16.mxu0 %v2528
      %2916 = vmatpush1.bf16.msra.mxu0 %v2527
      %2917 = vmatprep.subr.bf16.mxu0 %v2535
      %2918 = vmatpush1.bf16.msra.mxu0 %v2534
      %2919 = vmatprep.subr.bf16.mxu0 %v2542
      %2920 = vmatpush1.bf16.msra.mxu0 %v2541
      %2921 = vmatprep.subr.bf16.mxu0 %v2549
      %2922 = vmatpush1.bf16.msra.mxu0 %v2548
      %2923 = vmatprep.mubr.bf16.mxu0 %v1415
      %2924 = vmatmul.mubr.bf16.gmra.mrb[0].mxu0 %v1414
      %v2925 = vpop.f32.mrb[0].mxu0
      %v2926 = vadd.f32 %v1707, %v2925
      %v2927 = vpop.f32.mrb[0].mxu0
      %v2928 = vadd.f32 %v1711, %v2927
      %v2929 = vpop.f32.mrb[0].mxu0
      %v2930 = vadd.f32 %v1707, %v2929
      %v2931 = vpop.f32.mrb[0].mxu0
      %v2932 = vadd.f32 %v1711, %v2931
      %2933 = vmatprep.mubr.bf16.mxu0 %v1419
      %2934 = vmatmul.mubr.bf16.gmra.mrb[0].mxu0 %v1418
      %v2935 = vpop.f32.mrb[0].mxu0
      %v2936 = vadd.f32 %v1707, %v2935
      %v2937 = vpop.f32.mrb[0].mxu0
      %v2938 = vadd.f32 %v1711, %v2937
      %v2939 = vpop.f32.mrb[0].mxu0
      %v2940 = vadd.f32 %v1707, %v2939
      %v2941 = vpop.f32.mrb[0].mxu0
      %v2942 = vadd.f32 %v1711, %v2941
      %2943 = vmatprep.mubr.bf16.mxu0 %v1423
      %2944 = vmatmul.mubr.bf16.gmra.mrb[0].mxu0 %v1422
      %v2945 = vpop.f32.mrb[0].mxu0
      %v2946 = vadd.f32 %v1707, %v2945
      %v2947 = vpop.f32.mrb[0].mxu0
      %v2948 = vadd.f32 %v1711, %v2947
      %v2949 = vpop.f32.mrb[0].mxu0
      %v2950 = vadd.f32 %v1707, %v2949
      %v2951 = vpop.f32.mrb[0].mxu0
      %v2952 = vadd.f32 %v1711, %v2951
      %2953 = vmatprep.mubr.bf16.mxu0 %v1427
      %2954 = vmatmul.mubr.bf16.gmra.mrb[0].mxu0 %v1426
      %v2955 = vpop.f32.mrb[0].mxu0
      %v2956 = vadd.f32 %v1707, %v2955
      %v2957 = vpop.f32.mrb[0].mxu0
      %v2958 = vadd.f32 %v1711, %v2957
      %v2959 = vpop.f32.mrb[0].mxu0
      %v2960 = vadd.f32 %v1707, %v2959
      %v2961 = vpop.f32.mrb[0].mxu0
      %v2962 = vadd.f32 %v1711, %v2961
      %2963 = vmatprep.mubr.bf16.mxu0 %v1431
      %2964 = vmatmul.mubr.bf16.gmra.mrb[0].mxu0 %v1430
      %v2965 = vpop.f32.mrb[0].mxu0
      %v2966 = vadd.f32 %v1707, %v2965
      %v2967 = vpop.f32.mrb[0].mxu0
      %v2968 = vadd.f32 %v1711, %v2967
      %v2969 = vpop.f32.mrb[0].mxu0
      %v2970 = vadd.f32 %v1707, %v2969
      %v2971 = vpop.f32.mrb[0].mxu0
      %v2972 = vadd.f32 %v1711, %v2971
      %2973 = vmatprep.mubr.bf16.mxu0 %v1435
      %2974 = vmatmul.mubr.bf16.gmra.mrb[0].mxu0 %v1434
      %v2975 = vpop.f32.mrb[0].mxu0
      %v2976 = vadd.f32 %v1707, %v2975
      %v2977 = vpop.f32.mrb[0].mxu0
      %v2978 = vadd.f32 %v1711, %v2977
      %v2979 = vpop.f32.mrb[0].mxu0
      %v2980 = vadd.f32 %v1707, %v2979
      %v2981 = vpop.f32.mrb[0].mxu0
      %v2982 = vadd.f32 %v1711, %v2981
      %2983 = vmatprep.mubr.bf16.mxu0 %v1439
      %2984 = vmatmul.mubr.bf16.gmra.mrb[0].mxu0 %v1438
      %v2985 = vpop.f32.mrb[0].mxu0
      %v2986 = vadd.f32 %v1707, %v2985
      %v2987 = vpop.f32.mrb[0].mxu0
      %v2988 = vadd.f32 %v1711, %v2987
      %v2989 = vpop.f32.mrb[0].mxu0
      %v2990 = vadd.f32 %v1707, %v2989
      %v2991 = vpop.f32.mrb[0].mxu0
      %v2992 = vadd.f32 %v1711, %v2991
      %2993 = vmatprep.mubr.bf16.mxu0 %v1443
      %2994 = vmatmul.mubr.bf16.gmra.mrb[0].mxu0 %v1442
      %v2995 = vpop.f32.mrb[0].mxu0
      %v2996 = vadd.f32 %v1707, %v2995
      %v2997 = vpop.f32.mrb[0].mxu0
      %v2998 = vadd.f32 %v1711, %v2997
      %v2999 = vpop.f32.mrb[0].mxu0
      %v3000 = vadd.f32 %v1707, %v2999
      %v3001 = vpop.f32.mrb[0].mxu0
      %v3002 = vadd.f32 %v1711, %v3001
      %3003 = vdwg.mxu0
      %3004 = vmatprep.subr.bf16.mxu0 %v2556
      %3005 = vmatpush1.bf16.msra.mxu0 %v2555
      %3006 = vmatprep.subr.bf16.mxu0 %v2563
      %3007 = vmatpush1.bf16.msra.mxu0 %v2562
      %3008 = vmatprep.subr.bf16.mxu0 %v2570
      %3009 = vmatpush1.bf16.msra.mxu0 %v2569
      %3010 = vmatprep.subr.bf16.mxu0 %v2577
      %3011 = vmatpush1.bf16.msra.mxu0 %v2576
      %3012 = vmatprep.subr.bf16.mxu0 %v2584
      %3013 = vmatpush1.bf16.msra.mxu0 %v2583
      %3014 = vmatprep.subr.bf16.mxu0 %v2591
      %3015 = vmatpush1.bf16.msra.mxu0 %v2590
      %3016 = vmatprep.subr.bf16.mxu0 %v2598
      %3017 = vmatpush1.bf16.msra.mxu0 %v2597
      %3018 = vmatprep.subr.bf16.mxu0 %v2605
      %3019 = vmatpush1.bf16.msra.mxu0 %v2604
      %3020 = vmatprep.subr.bf16.mxu0 %v2612
      %3021 = vmatpush1.bf16.msra.mxu0 %v2611
      %3022 = vmatprep.subr.bf16.mxu0 %v2619
      %3023 = vmatpush1.bf16.msra.mxu0 %v2618
      %3024 = vmatprep.subr.bf16.mxu0 %v2626
      %3025 = vmatpush1.bf16.msra.mxu0 %v2625
      %3026 = vmatprep.subr.bf16.mxu0 %v2633
      %3027 = vmatpush1.bf16.msra.mxu0 %v2632
      %3028 = vmatprep.subr.bf16.mxu0 %v2640
      %3029 = vmatpush1.bf16.msra.mxu0 %v2639
      %3030 = vmatprep.subr.bf16.mxu0 %v2647
      %3031 = vmatpush1.bf16.msra.mxu0 %v2646
      %3032 = vmatprep.subr.bf16.mxu0 %v2654
      %3033 = vmatpush1.bf16.msra.mxu0 %v2653
      %3034 = vmatprep.subr.bf16.mxu0 %v2661
      %3035 = vmatpush1.bf16.msra.mxu0 %v2660
      %3036 = vmatprep.mubr.bf16.mxu0 %v1417
      %3037 = vmatmul.mubr.bf16.gmra.mrb[0].mxu0 %v1416
      %v3038 = vpop.f32.mrb[0].mxu0
      %v3039 = vadd.f32 %v2926, %v3038
      %v3040 = vpop.f32.mrb[0].mxu0
      %v3041 = vadd.f32 %v2928, %v3040
      %v3042 = vpop.f32.mrb[0].mxu0
      %v3043 = vadd.f32 %v2930, %v3042
      %v3044 = vpop.f32.mrb[0].mxu0
      %v3045 = vadd.f32 %v2932, %v3044
      %3046 = vmatprep.mubr.bf16.mxu0 %v1421
      %3047 = vmatmul.mubr.bf16.gmra.mrb[0].mxu0 %v1420
      %v3048 = vpop.f32.mrb[0].mxu0
      %v3049 = vadd.f32 %v2936, %v3048
      %v3050 = vpop.f32.mrb[0].mxu0
      %v3051 = vadd.f32 %v2938, %v3050
      %v3052 = vpop.f32.mrb[0].mxu0
      %v3053 = vadd.f32 %v2940, %v3052
      %v3054 = vpop.f32.mrb[0].mxu0
      %v3055 = vadd.f32 %v2942, %v3054
      %3056 = vmatprep.mubr.bf16.mxu0 %v1425
      %3057 = vmatmul.mubr.bf16.gmra.mrb[0].mxu0 %v1424
      %v3058 = vpop.f32.mrb[0].mxu0
      %v3059 = vadd.f32 %v2946, %v3058
      %v3060 = vpop.f32.mrb[0].mxu0
      %v3061 = vadd.f32 %v2948, %v3060
      %v3062 = vpop.f32.mrb[0].mxu0
      %v3063 = vadd.f32 %v2950, %v3062
      %v3064 = vpop.f32.mrb[0].mxu0
      %v3065 = vadd.f32 %v2952, %v3064
      %3066 = vmatprep.mubr.bf16.mxu0 %v1429
      %3067 = vmatmul.mubr.bf16.gmra.mrb[0].mxu0 %v1428
      %v3068 = vpop.f32.mrb[0].mxu0
      %v3069 = vadd.f32 %v2956, %v3068
      %v3070 = vpop.f32.mrb[0].mxu0
      %v3071 = vadd.f32 %v2958, %v3070
      %v3072 = vpop.f32.mrb[0].mxu0
      %v3073 = vadd.f32 %v2960, %v3072
      %v3074 = vpop.f32.mrb[0].mxu0
      %v3075 = vadd.f32 %v2962, %v3074
      %3076 = vmatprep.mubr.bf16.mxu0 %v1433
      %3077 = vmatmul.mubr.bf16.gmra.mrb[0].mxu0 %v1432
      %v3078 = vpop.f32.mrb[0].mxu0
      %v3079 = vadd.f32 %v2966, %v3078
      %v3080 = vpop.f32.mrb[0].mxu0
      %v3081 = vadd.f32 %v2968, %v3080
      %v3082 = vpop.f32.mrb[0].mxu0
      %v3083 = vadd.f32 %v2970, %v3082
      %v3084 = vpop.f32.mrb[0].mxu0
      %v3085 = vadd.f32 %v2972, %v3084
      %3086 = vmatprep.mubr.bf16.mxu0 %v1437
      %3087 = vmatmul.mubr.bf16.gmra.mrb[0].mxu0 %v1436
      %v3088 = vpop.f32.mrb[0].mxu0
      %v3089 = vadd.f32 %v2976, %v3088
      %v3090 = vpop.f32.mrb[0].mxu0
      %v3091 = vadd.f32 %v2978, %v3090
      %v3092 = vpop.f32.mrb[0].mxu0
      %v3093 = vadd.f32 %v2980, %v3092
      %v3094 = vpop.f32.mrb[0].mxu0
      %v3095 = vadd.f32 %v2982, %v3094
      %3096 = vmatprep.mubr.bf16.mxu0 %v1441
      %3097 = vmatmul.mubr.bf16.gmra.mrb[0].mxu0 %v1440
      %v3098 = vpop.f32.mrb[0].mxu0
      %v3099 = vadd.f32 %v2986, %v3098
      %v3100 = vpop.f32.mrb[0].mxu0
      %v3101 = vadd.f32 %v2988, %v3100
      %v3102 = vpop.f32.mrb[0].mxu0
      %v3103 = vadd.f32 %v2990, %v3102
      %v3104 = vpop.f32.mrb[0].mxu0
      %v3105 = vadd.f32 %v2992, %v3104
      %3106 = vmatprep.mubr.bf16.mxu0 %v1445
      %3107 = vmatmul.mubr.bf16.gmra.mrb[0].mxu0 %v1444
      %v3108 = vpop.f32.mrb[0].mxu0
      %v3109 = vadd.f32 %v2996, %v3108
      %v3110 = vpop.f32.mrb[0].mxu0
      %v3111 = vadd.f32 %v2998, %v3110
      %v3112 = vpop.f32.mrb[0].mxu0
      %v3113 = vadd.f32 %v3000, %v3112
      %v3114 = vpop.f32.mrb[0].mxu0
      %v3115 = vadd.f32 %v3002, %v3114
      %3116 = vdwg.mxu0
      %3117 = vmatprep.subr.bf16.mxu0 %v2446
      %3118 = vmatpush1.bf16.msra.mxu0 %v2445
      %3119 = vmatprep.subr.bf16.mxu0 %v2453
      %3120 = vmatpush1.bf16.msra.mxu0 %v2452
      %3121 = vmatprep.subr.bf16.mxu0 %v2460
      %3122 = vmatpush1.bf16.msra.mxu0 %v2459
      %3123 = vmatprep.subr.bf16.mxu0 %v2467
      %3124 = vmatpush1.bf16.msra.mxu0 %v2466
      %3125 = vmatprep.subr.bf16.mxu0 %v2474
      %3126 = vmatpush1.bf16.msra.mxu0 %v2473
      %3127 = vmatprep.subr.bf16.mxu0 %v2481
      %3128 = vmatpush1.bf16.msra.mxu0 %v2480
      %3129 = vmatprep.subr.bf16.mxu0 %v2488
      %3130 = vmatpush1.bf16.msra.mxu0 %v2487
      %3131 = vmatprep.subr.bf16.mxu0 %v2495
      %3132 = vmatpush1.bf16.msra.mxu0 %v2494
      %3133 = vmatprep.subr.bf16.mxu0 %v2502
      %3134 = vmatpush1.bf16.msra.mxu0 %v2501
      %3135 = vmatprep.subr.bf16.mxu0 %v2509
      %3136 = vmatpush1.bf16.msra.mxu0 %v2508
      %3137 = vmatprep.subr.bf16.mxu0 %v2516
      %3138 = vmatpush1.bf16.msra.mxu0 %v2515
      %3139 = vmatprep.subr.bf16.mxu0 %v2523
      %3140 = vmatpush1.bf16.msra.mxu0 %v2522
      %3141 = vmatprep.subr.bf16.mxu0 %v2530
      %3142 = vmatpush1.bf16.msra.mxu0 %v2529
      %3143 = vmatprep.subr.bf16.mxu0 %v2537
      %3144 = vmatpush1.bf16.msra.mxu0 %v2536
      %3145 = vmatprep.subr.bf16.mxu0 %v2544
      %3146 = vmatpush1.bf16.msra.mxu0 %v2543
      %3147 = vmatprep.subr.bf16.mxu0 %v2551
      %3148 = vmatpush1.bf16.msra.mxu0 %v2550
      %3149 = vmatprep.mubr.bf16.mxu0 %v1415
      %3150 = vmatmul.mubr.bf16.gmra.mrb[0].mxu0 %v1414
      %v3151 = vpop.f32.mrb[0].mxu0
      %v3152 = vadd.f32 %v1715, %v3151
      %v3153 = vpop.f32.mrb[0].mxu0
      %v3154 = vadd.f32 %v1719, %v3153
      %v3155 = vpop.f32.mrb[0].mxu0
      %v3156 = vadd.f32 %v1715, %v3155
      %v3157 = vpop.f32.mrb[0].mxu0
      %v3158 = vadd.f32 %v1719, %v3157
      %3159 = vmatprep.mubr.bf16.mxu0 %v1419
      %3160 = vmatmul.mubr.bf16.gmra.mrb[0].mxu0 %v1418
      %v3161 = vpop.f32.mrb[0].mxu0
      %v3162 = vadd.f32 %v1715, %v3161
      %v3163 = vpop.f32.mrb[0].mxu0
      %v3164 = vadd.f32 %v1719, %v3163
      %v3165 = vpop.f32.mrb[0].mxu0
      %v3166 = vadd.f32 %v1715, %v3165
      %v3167 = vpop.f32.mrb[0].mxu0
      %v3168 = vadd.f32 %v1719, %v3167
      %3169 = vmatprep.mubr.bf16.mxu0 %v1423
      %3170 = vmatmul.mubr.bf16.gmra.mrb[0].mxu0 %v1422
      %v3171 = vpop.f32.mrb[0].mxu0
      %v3172 = vadd.f32 %v1715, %v3171
      %v3173 = vpop.f32.mrb[0].mxu0
      %v3174 = vadd.f32 %v1719, %v3173
      %v3175 = vpop.f32.mrb[0].mxu0
      %v3176 = vadd.f32 %v1715, %v3175
      %v3177 = vpop.f32.mrb[0].mxu0
      %v3178 = vadd.f32 %v1719, %v3177
      %3179 = vmatprep.mubr.bf16.mxu0 %v1427
      %3180 = vmatmul.mubr.bf16.gmra.mrb[0].mxu0 %v1426
      %v3181 = vpop.f32.mrb[0].mxu0
      %v3182 = vadd.f32 %v1715, %v3181
      %v3183 = vpop.f32.mrb[0].mxu0
      %v3184 = vadd.f32 %v1719, %v3183
      %v3185 = vpop.f32.mrb[0].mxu0
      %v3186 = vadd.f32 %v1715, %v3185
      %v3187 = vpop.f32.mrb[0].mxu0
      %v3188 = vadd.f32 %v1719, %v3187
      %3189 = vmatprep.mubr.bf16.mxu0 %v1431
      %3190 = vmatmul.mubr.bf16.gmra.mrb[0].mxu0 %v1430
      %v3191 = vpop.f32.mrb[0].mxu0
      %v3192 = vadd.f32 %v1715, %v3191
      %v3193 = vpop.f32.mrb[0].mxu0
      %v3194 = vadd.f32 %v1719, %v3193
      %v3195 = vpop.f32.mrb[0].mxu0
      %v3196 = vadd.f32 %v1715, %v3195
      %v3197 = vpop.f32.mrb[0].mxu0
      %v3198 = vadd.f32 %v1719, %v3197
      %3199 = vmatprep.mubr.bf16.mxu0 %v1435
      %3200 = vmatmul.mubr.bf16.gmra.mrb[0].mxu0 %v1434
      %v3201 = vpop.f32.mrb[0].mxu0
      %v3202 = vadd.f32 %v1715, %v3201
      %v3203 = vpop.f32.mrb[0].mxu0
      %v3204 = vadd.f32 %v1719, %v3203
      %v3205 = vpop.f32.mrb[0].mxu0
      %v3206 = vadd.f32 %v1715, %v3205
      %v3207 = vpop.f32.mrb[0].mxu0
      %v3208 = vadd.f32 %v1719, %v3207
      %3209 = vmatprep.mubr.bf16.mxu0 %v1439
      %3210 = vmatmul.mubr.bf16.gmra.mrb[0].mxu0 %v1438
      %v3211 = vpop.f32.mrb[0].mxu0
      %v3212 = vadd.f32 %v1715, %v3211
      %v3213 = vpop.f32.mrb[0].mxu0
      %v3214 = vadd.f32 %v1719, %v3213
      %v3215 = vpop.f32.mrb[0].mxu0
      %v3216 = vadd.f32 %v1715, %v3215
      %v3217 = vpop.f32.mrb[0].mxu0
      %v3218 = vadd.f32 %v1719, %v3217
      %3219 = vmatprep.mubr.bf16.mxu0 %v1443
      %3220 = vmatmul.mubr.bf16.gmra.mrb[0].mxu0 %v1442
      %v3221 = vpop.f32.mrb[0].mxu0
      %v3222 = vadd.f32 %v1715, %v3221
      %v3223 = vpop.f32.mrb[0].mxu0
      %v3224 = vadd.f32 %v1719, %v3223
      %v3225 = vpop.f32.mrb[0].mxu0
      %v3226 = vadd.f32 %v1715, %v3225
      %v3227 = vpop.f32.mrb[0].mxu0
      %v3228 = vadd.f32 %v1719, %v3227
      %3229 = vdwg.mxu0
      %3230 = vmatprep.subr.bf16.mxu0 %v2558
      %3231 = vmatpush1.bf16.msra.mxu0 %v2557
      %3232 = vmatprep.subr.bf16.mxu0 %v2565
      %3233 = vmatpush1.bf16.msra.mxu0 %v2564
      %3234 = vmatprep.subr.bf16.mxu0 %v2572
      %3235 = vmatpush1.bf16.msra.mxu0 %v2571
      %3236 = vmatprep.subr.bf16.mxu0 %v2579
      %3237 = vmatpush1.bf16.msra.mxu0 %v2578
      %3238 = vmatprep.subr.bf16.mxu0 %v2586
      %3239 = vmatpush1.bf16.msra.mxu0 %v2585
      %3240 = vmatprep.subr.bf16.mxu0 %v2593
      %3241 = vmatpush1.bf16.msra.mxu0 %v2592
      %3242 = vmatprep.subr.bf16.mxu0 %v2600
      %3243 = vmatpush1.bf16.msra.mxu0 %v2599
      %3244 = vmatprep.subr.bf16.mxu0 %v2607
      %3245 = vmatpush1.bf16.msra.mxu0 %v2606
      %3246 = vmatprep.subr.bf16.mxu0 %v2614
      %3247 = vmatpush1.bf16.msra.mxu0 %v2613
      %3248 = vmatprep.subr.bf16.mxu0 %v2621
      %3249 = vmatpush1.bf16.msra.mxu0 %v2620
      %3250 = vmatprep.subr.bf16.mxu0 %v2628
      %3251 = vmatpush1.bf16.msra.mxu0 %v2627
      %3252 = vmatprep.subr.bf16.mxu0 %v2635
      %3253 = vmatpush1.bf16.msra.mxu0 %v2634
      %3254 = vmatprep.subr.bf16.mxu0 %v2642
      %3255 = vmatpush1.bf16.msra.mxu0 %v2641
      %3256 = vmatprep.subr.bf16.mxu0 %v2649
      %3257 = vmatpush1.bf16.msra.mxu0 %v2648
      %3258 = vmatprep.subr.bf16.mxu0 %v2656
      %3259 = vmatpush1.bf16.msra.mxu0 %v2655
      %3260 = vmatprep.subr.bf16.mxu0 %v2663
      %3261 = vmatpush1.bf16.msra.mxu0 %v2662
      %3262 = vmatprep.mubr.bf16.mxu0 %v1417
      %3263 = vmatmul.mubr.bf16.gmra.mrb[0].mxu0 %v1416
      %v3264 = vpop.f32.mrb[0].mxu0
      %v3265 = vadd.f32 %v3152, %v3264
      %v3266 = vpop.f32.mrb[0].mxu0
      %v3267 = vadd.f32 %v3154, %v3266
      %v3268 = vpop.f32.mrb[0].mxu0
      %v3269 = vadd.f32 %v3156, %v3268
      %v3270 = vpop.f32.mrb[0].mxu0
      %v3271 = vadd.f32 %v3158, %v3270
      %3272 = vmatprep.mubr.bf16.mxu0 %v1421
      %3273 = vmatmul.mubr.bf16.gmra.mrb[0].mxu0 %v1420
      %v3274 = vpop.f32.mrb[0].mxu0
      %v3275 = vadd.f32 %v3162, %v3274
      %v3276 = vpop.f32.mrb[0].mxu0
      %v3277 = vadd.f32 %v3164, %v3276
      %v3278 = vpop.f32.mrb[0].mxu0
      %v3279 = vadd.f32 %v3166, %v3278
      %v3280 = vpop.f32.mrb[0].mxu0
      %v3281 = vadd.f32 %v3168, %v3280
      %3282 = vmatprep.mubr.bf16.mxu0 %v1425
      %3283 = vmatmul.mubr.bf16.gmra.mrb[0].mxu0 %v1424
      %v3284 = vpop.f32.mrb[0].mxu0
      %v3285 = vadd.f32 %v3172, %v3284
      %v3286 = vpop.f32.mrb[0].mxu0
      %v3287 = vadd.f32 %v3174, %v3286
      %v3288 = vpop.f32.mrb[0].mxu0
      %v3289 = vadd.f32 %v3176, %v3288
      %v3290 = vpop.f32.mrb[0].mxu0
      %v3291 = vadd.f32 %v3178, %v3290
      %3292 = vmatprep.mubr.bf16.mxu0 %v1429
      %3293 = vmatmul.mubr.bf16.gmra.mrb[0].mxu0 %v1428
      %v3294 = vpop.f32.mrb[0].mxu0
      %v3295 = vadd.f32 %v3182, %v3294
      %v3296 = vpop.f32.mrb[0].mxu0
      %v3297 = vadd.f32 %v3184, %v3296
      %v3298 = vpop.f32.mrb[0].mxu0
      %v3299 = vadd.f32 %v3186, %v3298
      %v3300 = vpop.f32.mrb[0].mxu0
      %v3301 = vadd.f32 %v3188, %v3300
      %3302 = vmatprep.mubr.bf16.mxu0 %v1433
      %3303 = vmatmul.mubr.bf16.gmra.mrb[0].mxu0 %v1432
      %v3304 = vpop.f32.mrb[0].mxu0
      %v3305 = vadd.f32 %v3192, %v3304
      %v3306 = vpop.f32.mrb[0].mxu0
      %v3307 = vadd.f32 %v3194, %v3306
      %v3308 = vpop.f32.mrb[0].mxu0
      %v3309 = vadd.f32 %v3196, %v3308
      %v3310 = vpop.f32.mrb[0].mxu0
      %v3311 = vadd.f32 %v3198, %v3310
      %3312 = vmatprep.mubr.bf16.mxu0 %v1437
      %3313 = vmatmul.mubr.bf16.gmra.mrb[0].mxu0 %v1436
      %v3314 = vpop.f32.mrb[0].mxu0
      %v3315 = vadd.f32 %v3202, %v3314
      %v3316 = vpop.f32.mrb[0].mxu0
      %v3317 = vadd.f32 %v3204, %v3316
      %v3318 = vpop.f32.mrb[0].mxu0
      %v3319 = vadd.f32 %v3206, %v3318
      %v3320 = vpop.f32.mrb[0].mxu0
      %v3321 = vadd.f32 %v3208, %v3320
      %3322 = vmatprep.mubr.bf16.mxu0 %v1441
      %3323 = vmatmul.mubr.bf16.gmra.mrb[0].mxu0 %v1440
      %v3324 = vpop.f32.mrb[0].mxu0
      %v3325 = vadd.f32 %v3212, %v3324
      %v3326 = vpop.f32.mrb[0].mxu0
      %v3327 = vadd.f32 %v3214, %v3326
      %v3328 = vpop.f32.mrb[0].mxu0
      %v3329 = vadd.f32 %v3216, %v3328
      %v3330 = vpop.f32.mrb[0].mxu0
      %v3331 = vadd.f32 %v3218, %v3330
      %3332 = vmatprep.mubr.bf16.mxu0 %v1445
      %3333 = vmatmul.mubr.bf16.gmra.mrb[0].mxu0 %v1444
      %v3334 = vpop.f32.mrb[0].mxu0
      %v3335 = vadd.f32 %v3222, %v3334
      %v3336 = vpop.f32.mrb[0].mxu0
      %v3337 = vadd.f32 %v3224, %v3336
      %v3338 = vpop.f32.mrb[0].mxu0
      %v3339 = vadd.f32 %v3226, %v3338
      %v3340 = vpop.f32.mrb[0].mxu0
      %v3341 = vadd.f32 %v3228, %v3340
      %3342 = vdwg.mxu0
      %3343 = vmatprep.subr.bf16.mxu0 %v2448
      %3344 = vmatpush1.bf16.msra.mxu0 %v2447
      %3345 = vmatprep.subr.bf16.mxu0 %v2455
      %3346 = vmatpush1.bf16.msra.mxu0 %v2454
      %3347 = vmatprep.subr.bf16.mxu0 %v2462
      %3348 = vmatpush1.bf16.msra.mxu0 %v2461
      %3349 = vmatprep.subr.bf16.mxu0 %v2469
      %3350 = vmatpush1.bf16.msra.mxu0 %v2468
      %3351 = vmatprep.subr.bf16.mxu0 %v2476
      %3352 = vmatpush1.bf16.msra.mxu0 %v2475
      %3353 = vmatprep.subr.bf16.mxu0 %v2483
      %3354 = vmatpush1.bf16.msra.mxu0 %v2482
      %3355 = vmatprep.subr.bf16.mxu0 %v2490
      %3356 = vmatpush1.bf16.msra.mxu0 %v2489
      %3357 = vmatprep.subr.bf16.mxu0 %v2497
      %3358 = vmatpush1.bf16.msra.mxu0 %v2496
      %3359 = vmatprep.subr.bf16.mxu0 %v2504
      %3360 = vmatpush1.bf16.msra.mxu0 %v2503
      %3361 = vmatprep.subr.bf16.mxu0 %v2511
      %3362 = vmatpush1.bf16.msra.mxu0 %v2510
      %3363 = vmatprep.subr.bf16.mxu0 %v2518
      %3364 = vmatpush1.bf16.msra.mxu0 %v2517
      %3365 = vmatprep.subr.bf16.mxu0 %v2525
      %3366 = vmatpush1.bf16.msra.mxu0 %v2524
      %3367 = vmatprep.subr.bf16.mxu0 %v2532
      %3368 = vmatpush1.bf16.msra.mxu0 %v2531
      %3369 = vmatprep.subr.bf16.mxu0 %v2539
      %3370 = vmatpush1.bf16.msra.mxu0 %v2538
      %3371 = vmatprep.subr.bf16.mxu0 %v2546
      %3372 = vmatpush1.bf16.msra.mxu0 %v2545
      %3373 = vmatprep.subr.bf16.mxu0 %v2553
      %3374 = vmatpush1.bf16.msra.mxu0 %v2552
      %3375 = vmatprep.mubr.bf16.mxu0 %v1415
      %3376 = vmatmul.mubr.bf16.gmra.mrb[0].mxu0 %v1414
      %v3377 = vpop.f32.mrb[0].mxu0
      %v3378 = vadd.f32 %v1723, %v3377
      %v3379 = vpop.f32.mrb[0].mxu0
      %v3380 = vadd.f32 %v1727, %v3379
      %v3381 = vpop.f32.mrb[0].mxu0
      %v3382 = vadd.f32 %v1723, %v3381
      %v3383 = vpop.f32.mrb[0].mxu0
      %v3384 = vadd.f32 %v1727, %v3383
      %3385 = vmatprep.mubr.bf16.mxu0 %v1419
      %3386 = vmatmul.mubr.bf16.gmra.mrb[0].mxu0 %v1418
      %v3387 = vpop.f32.mrb[0].mxu0
      %v3388 = vadd.f32 %v1723, %v3387
      %v3389 = vpop.f32.mrb[0].mxu0
      %v3390 = vadd.f32 %v1727, %v3389
      %v3391 = vpop.f32.mrb[0].mxu0
      %v3392 = vadd.f32 %v1723, %v3391
      %v3393 = vpop.f32.mrb[0].mxu0
      %v3394 = vadd.f32 %v1727, %v3393
      %3395 = vmatprep.mubr.bf16.mxu0 %v1423
      %3396 = vmatmul.mubr.bf16.gmra.mrb[0].mxu0 %v1422
      %v3397 = vpop.f32.mrb[0].mxu0
      %v3398 = vadd.f32 %v1723, %v3397
      %v3399 = vpop.f32.mrb[0].mxu0
      %v3400 = vadd.f32 %v1727, %v3399
      %v3401 = vpop.f32.mrb[0].mxu0
      %v3402 = vadd.f32 %v1723, %v3401
      %v3403 = vpop.f32.mrb[0].mxu0
      %v3404 = vadd.f32 %v1727, %v3403
      %3405 = vmatprep.mubr.bf16.mxu0 %v1427
      %3406 = vmatmul.mubr.bf16.gmra.mrb[0].mxu0 %v1426
      %v3407 = vpop.f32.mrb[0].mxu0
      %v3408 = vadd.f32 %v1723, %v3407
      %v3409 = vpop.f32.mrb[0].mxu0
      %v3410 = vadd.f32 %v1727, %v3409
      %v3411 = vpop.f32.mrb[0].mxu0
      %v3412 = vadd.f32 %v1723, %v3411
      %v3413 = vpop.f32.mrb[0].mxu0
      %v3414 = vadd.f32 %v1727, %v3413
      %3415 = vmatprep.mubr.bf16.mxu0 %v1431
      %3416 = vmatmul.mubr.bf16.gmra.mrb[0].mxu0 %v1430
      %v3417 = vpop.f32.mrb[0].mxu0
      %v3418 = vadd.f32 %v1723, %v3417
      %v3419 = vpop.f32.mrb[0].mxu0
      %v3420 = vadd.f32 %v1727, %v3419
      %v3421 = vpop.f32.mrb[0].mxu0
      %v3422 = vadd.f32 %v1723, %v3421
      %v3423 = vpop.f32.mrb[0].mxu0
      %v3424 = vadd.f32 %v1727, %v3423
      %3425 = vmatprep.mubr.bf16.mxu0 %v1435
      %3426 = vmatmul.mubr.bf16.gmra.mrb[0].mxu0 %v1434
      %v3427 = vpop.f32.mrb[0].mxu0
      %v3428 = vadd.f32 %v1723, %v3427
      %v3429 = vpop.f32.mrb[0].mxu0
      %v3430 = vadd.f32 %v1727, %v3429
      %v3431 = vpop.f32.mrb[0].mxu0
      %v3432 = vadd.f32 %v1723, %v3431
      %v3433 = vpop.f32.mrb[0].mxu0
      %v3434 = vadd.f32 %v1727, %v3433
      %3435 = vmatprep.mubr.bf16.mxu0 %v1439
      %3436 = vmatmul.mubr.bf16.gmra.mrb[0].mxu0 %v1438
      %v3437 = vpop.f32.mrb[0].mxu0
      %v3438 = vadd.f32 %v1723, %v3437
      %v3439 = vpop.f32.mrb[0].mxu0
      %v3440 = vadd.f32 %v1727, %v3439
      %v3441 = vpop.f32.mrb[0].mxu0
      %v3442 = vadd.f32 %v1723, %v3441
      %v3443 = vpop.f32.mrb[0].mxu0
      %v3444 = vadd.f32 %v1727, %v3443
      %3445 = vmatprep.mubr.bf16.mxu0 %v1443
      %3446 = vmatmul.mubr.bf16.gmra.mrb[0].mxu0 %v1442
      %v3447 = vpop.f32.mrb[0].mxu0
      %v3448 = vadd.f32 %v1723, %v3447
      %v3449 = vpop.f32.mrb[0].mxu0
      %v3450 = vadd.f32 %v1727, %v3449
      %v3451 = vpop.f32.mrb[0].mxu0
      %v3452 = vadd.f32 %v1723, %v3451
      %v3453 = vpop.f32.mrb[0].mxu0
      %v3454 = vadd.f32 %v1727, %v3453
      %3455 = vdwg.mxu0
      %3456 = vmatprep.subr.bf16.mxu0 %v2560
      %3457 = vmatpush1.bf16.msra.mxu0 %v2559
      %3458 = vmatprep.subr.bf16.mxu0 %v2567
      %3459 = vmatpush1.bf16.msra.mxu0 %v2566
      %3460 = vmatprep.subr.bf16.mxu0 %v2574
      %3461 = vmatpush1.bf16.msra.mxu0 %v2573
      %3462 = vmatprep.subr.bf16.mxu0 %v2581
      %3463 = vmatpush1.bf16.msra.mxu0 %v2580
      %3464 = vmatprep.subr.bf16.mxu0 %v2588
      %3465 = vmatpush1.bf16.msra.mxu0 %v2587
      %3466 = vmatprep.subr.bf16.mxu0 %v2595
      %3467 = vmatpush1.bf16.msra.mxu0 %v2594
      %3468 = vmatprep.subr.bf16.mxu0 %v2602
      %3469 = vmatpush1.bf16.msra.mxu0 %v2601
      %3470 = vmatprep.subr.bf16.mxu0 %v2609
      %3471 = vmatpush1.bf16.msra.mxu0 %v2608
      %3472 = vmatprep.subr.bf16.mxu0 %v2616
      %3473 = vmatpush1.bf16.msra.mxu0 %v2615
      %3474 = vmatprep.subr.bf16.mxu0 %v2623
      %3475 = vmatpush1.bf16.msra.mxu0 %v2622
      %3476 = vmatprep.subr.bf16.mxu0 %v2630
      %3477 = vmatpush1.bf16.msra.mxu0 %v2629
      %3478 = vmatprep.subr.bf16.mxu0 %v2637
      %3479 = vmatpush1.bf16.msra.mxu0 %v2636
      %3480 = vmatprep.subr.bf16.mxu0 %v2644
      %3481 = vmatpush1.bf16.msra.mxu0 %v2643
      %3482 = vmatprep.subr.bf16.mxu0 %v2651
      %3483 = vmatpush1.bf16.msra.mxu0 %v2650
      %3484 = vmatprep.subr.bf16.mxu0 %v2658
      %3485 = vmatpush1.bf16.msra.mxu0 %v2657
      %3486 = vmatprep.subr.bf16.mxu0 %v2665
      %3487 = vmatpush1.bf16.msra.mxu0 %v2664
      %3488 = vmatprep.mubr.bf16.mxu0 %v1417
      %3489 = vmatmul.mubr.bf16.gmra.mrb[0].mxu0 %v1416
      %v3490 = vpop.f32.mrb[0].mxu0
      %v3491 = vadd.f32 %v3378, %v3490
      %v3492 = vpop.f32.mrb[0].mxu0
      %v3493 = vadd.f32 %v3380, %v3492
      %v3494 = vpop.f32.mrb[0].mxu0
      %v3495 = vadd.f32 %v3382, %v3494
      %v3496 = vpop.f32.mrb[0].mxu0
      %v3497 = vadd.f32 %v3384, %v3496
      %3498 = vmatprep.mubr.bf16.mxu0 %v1421
      %3499 = vmatmul.mubr.bf16.gmra.mrb[0].mxu0 %v1420
      %v3500 = vpop.f32.mrb[0].mxu0
      %v3501 = vadd.f32 %v3388, %v3500
      %v3502 = vpop.f32.mrb[0].mxu0
      %v3503 = vadd.f32 %v3390, %v3502
      %v3504 = vpop.f32.mrb[0].mxu0
      %v3505 = vadd.f32 %v3392, %v3504
      %v3506 = vpop.f32.mrb[0].mxu0
      %v3507 = vadd.f32 %v3394, %v3506
      %3508 = vmatprep.mubr.bf16.mxu0 %v1425
      %3509 = vmatmul.mubr.bf16.gmra.mrb[0].mxu0 %v1424
      %v3510 = vpop.f32.mrb[0].mxu0
      %v3511 = vadd.f32 %v3398, %v3510
      %v3512 = vpop.f32.mrb[0].mxu0
      %v3513 = vadd.f32 %v3400, %v3512
      %v3514 = vpop.f32.mrb[0].mxu0
      %v3515 = vadd.f32 %v3402, %v3514
      %v3516 = vpop.f32.mrb[0].mxu0
      %v3517 = vadd.f32 %v3404, %v3516
      %3518 = vmatprep.mubr.bf16.mxu0 %v1429
      %3519 = vmatmul.mubr.bf16.gmra.mrb[0].mxu0 %v1428
      %v3520 = vpop.f32.mrb[0].mxu0
      %v3521 = vadd.f32 %v3408, %v3520
      %v3522 = vpop.f32.mrb[0].mxu0
      %v3523 = vadd.f32 %v3410, %v3522
      %v3524 = vpop.f32.mrb[0].mxu0
      %v3525 = vadd.f32 %v3412, %v3524
      %v3526 = vpop.f32.mrb[0].mxu0
      %v3527 = vadd.f32 %v3414, %v3526
      %3528 = vmatprep.mubr.bf16.mxu0 %v1433
      %3529 = vmatmul.mubr.bf16.gmra.mrb[0].mxu0 %v1432
      %v3530 = vpop.f32.mrb[0].mxu0
      %v3531 = vadd.f32 %v3418, %v3530
      %v3532 = vpop.f32.mrb[0].mxu0
      %v3533 = vadd.f32 %v3420, %v3532
      %v3534 = vpop.f32.mrb[0].mxu0
      %v3535 = vadd.f32 %v3422, %v3534
      %v3536 = vpop.f32.mrb[0].mxu0
      %v3537 = vadd.f32 %v3424, %v3536
      %3538 = vmatprep.mubr.bf16.mxu0 %v1437
      %3539 = vmatmul.mubr.bf16.gmra.mrb[0].mxu0 %v1436
      %v3540 = vpop.f32.mrb[0].mxu0
      %v3541 = vadd.f32 %v3428, %v3540
      %v3542 = vpop.f32.mrb[0].mxu0
      %v3543 = vadd.f32 %v3430, %v3542
      %v3544 = vpop.f32.mrb[0].mxu0
      %v3545 = vadd.f32 %v3432, %v3544
      %v3546 = vpop.f32.mrb[0].mxu0
      %v3547 = vadd.f32 %v3434, %v3546
      %3548 = vmatprep.mubr.bf16.mxu0 %v1441
      %3549 = vmatmul.mubr.bf16.gmra.mrb[0].mxu0 %v1440
      %v3550 = vpop.f32.mrb[0].mxu0
      %v3551 = vadd.f32 %v3438, %v3550
      %v3552 = vpop.f32.mrb[0].mxu0
      %v3553 = vadd.f32 %v3440, %v3552
      %v3554 = vpop.f32.mrb[0].mxu0
      %v3555 = vadd.f32 %v3442, %v3554
      %v3556 = vpop.f32.mrb[0].mxu0
      %v3557 = vadd.f32 %v3444, %v3556
      %3558 = vmatprep.mubr.bf16.mxu0 %v1445
      %3559 = vmatmul.mubr.bf16.gmra.mrb[0].mxu0 %v1444
      %v3560 = vpop.f32.mrb[0].mxu0
      %v3561 = vadd.f32 %v3448, %v3560
      %v3562 = vpop.f32.mrb[0].mxu0
      %v3563 = vadd.f32 %v3450, %v3562
      %v3564 = vpop.f32.mrb[0].mxu0
      %v3565 = vadd.f32 %v3452, %v3564
      %v3566 = vpop.f32.mrb[0].mxu0
      %v3567 = vadd.f32 %v3454, %v3566
      %3568 = vdwg.mxu0
      %3569 = vmatprep.subr.bf16.mxu0 0
      %3570 = vmatpush1.bf16.msra.mxu0 %v2449
      %3571 = vmatprep.subr.bf16.mxu0 0
      %3572 = vmatpush1.bf16.msra.mxu0 %v2456
      %3573 = vmatprep.subr.bf16.mxu0 0
      %3574 = vmatpush1.bf16.msra.mxu0 %v2463
      %3575 = vmatprep.subr.bf16.mxu0 0
      %3576 = vmatpush1.bf16.msra.mxu0 %v2470
      %3577 = vmatprep.subr.bf16.mxu0 0
      %3578 = vmatpush1.bf16.msra.mxu0 %v2477
      %3579 = vmatprep.subr.bf16.mxu0 0
      %3580 = vmatpush1.bf16.msra.mxu0 %v2484
      %3581 = vmatprep.subr.bf16.mxu0 0
      %3582 = vmatpush1.bf16.msra.mxu0 %v2491
      %3583 = vmatprep.subr.bf16.mxu0 0
      %3584 = vmatpush1.bf16.msra.mxu0 %v2498
      %3585 = vmatprep.subr.bf16.mxu0 0
      %3586 = vmatpush1.bf16.msra.mxu0 %v2505
      %3587 = vmatprep.subr.bf16.mxu0 0
      %3588 = vmatpush1.bf16.msra.mxu0 %v2512
      %3589 = vmatprep.subr.bf16.mxu0 0
      %3590 = vmatpush1.bf16.msra.mxu0 %v2519
      %3591 = vmatprep.subr.bf16.mxu0 0
      %3592 = vmatpush1.bf16.msra.mxu0 %v2526
      %3593 = vmatprep.subr.bf16.mxu0 0
      %3594 = vmatpush1.bf16.msra.mxu0 %v2533
      %3595 = vmatprep.subr.bf16.mxu0 0
      %3596 = vmatpush1.bf16.msra.mxu0 %v2540
      %3597 = vmatprep.subr.bf16.mxu0 0
      %3598 = vmatpush1.bf16.msra.mxu0 %v2547
      %3599 = vmatprep.subr.bf16.mxu0 0
      %3600 = vmatpush1.bf16.msra.mxu0 %v2554
      %3601 = vmatprep.mubr.bf16.mxu0 %v1415
      %3602 = vmatmul.mubr.bf16.gmra.mrb[0].mxu0 %v1414
      %v3603 = vpop.f32.mrb[0].mxu0
      %v3604 = vadd.f32 %v1731, %v3603
      %v3605 = vpop.f32.mrb[0].mxu0
      %v3606 = vpop.f32.mrb[0].mxu0
      %v3607 = vadd.f32 %v1731, %v3606
      %v3608 = vpop.f32.mrb[0].mxu0
      %3609 = vmatprep.mubr.bf16.mxu0 %v1419
      %3610 = vmatmul.mubr.bf16.gmra.mrb[0].mxu0 %v1418
      %v3611 = vpop.f32.mrb[0].mxu0
      %v3612 = vadd.f32 %v1731, %v3611
      %v3613 = vpop.f32.mrb[0].mxu0
      %v3614 = vpop.f32.mrb[0].mxu0
      %v3615 = vadd.f32 %v1731, %v3614
      %v3616 = vpop.f32.mrb[0].mxu0
      %3617 = vmatprep.mubr.bf16.mxu0 %v1423
      %3618 = vmatmul.mubr.bf16.gmra.mrb[0].mxu0 %v1422
      %v3619 = vpop.f32.mrb[0].mxu0
      %v3620 = vadd.f32 %v1731, %v3619
      %v3621 = vpop.f32.mrb[0].mxu0
      %v3622 = vpop.f32.mrb[0].mxu0
      %v3623 = vadd.f32 %v1731, %v3622
      %v3624 = vpop.f32.mrb[0].mxu0
      %3625 = vmatprep.mubr.bf16.mxu0 %v1427
      %3626 = vmatmul.mubr.bf16.gmra.mrb[0].mxu0 %v1426
      %v3627 = vpop.f32.mrb[0].mxu0
      %v3628 = vadd.f32 %v1731, %v3627
      %v3629 = vpop.f32.mrb[0].mxu0
      %v3630 = vpop.f32.mrb[0].mxu0
      %v3631 = vadd.f32 %v1731, %v3630
      %v3632 = vpop.f32.mrb[0].mxu0
      %3633 = vmatprep.mubr.bf16.mxu0 %v1431
      %3634 = vmatmul.mubr.bf16.gmra.mrb[0].mxu0 %v1430
      %v3635 = vpop.f32.mrb[0].mxu0
      %v3636 = vadd.f32 %v1731, %v3635
      %v3637 = vpop.f32.mrb[0].mxu0
      %v3638 = vpop.f32.mrb[0].mxu0
      %v3639 = vadd.f32 %v1731, %v3638
      %v3640 = vpop.f32.mrb[0].mxu0
      %3641 = vmatprep.mubr.bf16.mxu0 %v1435
      %3642 = vmatmul.mubr.bf16.gmra.mrb[0].mxu0 %v1434
      %v3643 = vpop.f32.mrb[0].mxu0
      %v3644 = vadd.f32 %v1731, %v3643
      %v3645 = vpop.f32.mrb[0].mxu0
      %v3646 = vpop.f32.mrb[0].mxu0
      %v3647 = vadd.f32 %v1731, %v3646
      %v3648 = vpop.f32.mrb[0].mxu0
      %3649 = vmatprep.mubr.bf16.mxu0 %v1439
      %3650 = vmatmul.mubr.bf16.gmra.mrb[0].mxu0 %v1438
      %v3651 = vpop.f32.mrb[0].mxu0
      %v3652 = vadd.f32 %v1731, %v3651
      %v3653 = vpop.f32.mrb[0].mxu0
      %v3654 = vpop.f32.mrb[0].mxu0
      %v3655 = vadd.f32 %v1731, %v3654
      %v3656 = vpop.f32.mrb[0].mxu0
      %3657 = vmatprep.mubr.bf16.mxu0 %v1443
      %3658 = vmatmul.mubr.bf16.gmra.mrb[0].mxu0 %v1442
      %v3659 = vpop.f32.mrb[0].mxu0
      %v3660 = vadd.f32 %v1731, %v3659
      %v3661 = vpop.f32.mrb[0].mxu0
      %v3662 = vpop.f32.mrb[0].mxu0
      %v3663 = vadd.f32 %v1731, %v3662
      %v3664 = vpop.f32.mrb[0].mxu0
      %3665 = vdwg.mxu0
      %3666 = vmatprep.subr.bf16.mxu0 0
      %3667 = vmatpush1.bf16.msra.mxu0 %v2561
      %3668 = vmatprep.subr.bf16.mxu0 0
      %3669 = vmatpush1.bf16.msra.mxu0 %v2568
      %3670 = vmatprep.subr.bf16.mxu0 0
      %3671 = vmatpush1.bf16.msra.mxu0 %v2575
      %3672 = vmatprep.subr.bf16.mxu0 0
      %3673 = vmatpush1.bf16.msra.mxu0 %v2582
      %3674 = vmatprep.subr.bf16.mxu0 0
      %3675 = vmatpush1.bf16.msra.mxu0 %v2589
      %3676 = vmatprep.subr.bf16.mxu0 0
      %3677 = vmatpush1.bf16.msra.mxu0 %v2596
      %3678 = vmatprep.subr.bf16.mxu0 0
      %3679 = vmatpush1.bf16.msra.mxu0 %v2603
      %3680 = vmatprep.subr.bf16.mxu0 0
      %3681 = vmatpush1.bf16.msra.mxu0 %v2610
      %3682 = vmatprep.subr.bf16.mxu0 0
      %3683 = vmatpush1.bf16.msra.mxu0 %v2617
      %3684 = vmatprep.subr.bf16.mxu0 0
      %3685 = vmatpush1.bf16.msra.mxu0 %v2624
      %3686 = vmatprep.subr.bf16.mxu0 0
      %3687 = vmatpush1.bf16.msra.mxu0 %v2631
      %3688 = vmatprep.subr.bf16.mxu0 0
      %3689 = vmatpush1.bf16.msra.mxu0 %v2638
      %3690 = vmatprep.subr.bf16.mxu0 0
      %3691 = vmatpush1.bf16.msra.mxu0 %v2645
      %3692 = vmatprep.subr.bf16.mxu0 0
      %3693 = vmatpush1.bf16.msra.mxu0 %v2652
      %3694 = vmatprep.subr.bf16.mxu0 0
      %3695 = vmatpush1.bf16.msra.mxu0 %v2659
      %3696 = vmatprep.subr.bf16.mxu0 0
      %3697 = vmatpush1.bf16.msra.mxu0 %v2666
      %3698 = vmatprep.mubr.bf16.mxu0 %v1417
      %3699 = vmatmul.mubr.bf16.gmra.mrb[0].mxu0 %v1416
      %v3700 = vpop.f32.mrb[0].mxu0
      %v3701 = vadd.f32 %v3604, %v3700
      %v3702 = vpop.f32.mrb[0].mxu0
      %v3703 = vpop.f32.mrb[0].mxu0
      %v3704 = vadd.f32 %v3607, %v3703
      %v3705 = vpop.f32.mrb[0].mxu0
      %3706 = vmatprep.mubr.bf16.mxu0 %v1421
      %3707 = vmatmul.mubr.bf16.gmra.mrb[0].mxu0 %v1420
      %v3708 = vpop.f32.mrb[0].mxu0
      %v3709 = vadd.f32 %v3612, %v3708
      %v3710 = vpop.f32.mrb[0].mxu0
      %v3711 = vpop.f32.mrb[0].mxu0
      %v3712 = vadd.f32 %v3615, %v3711
      %v3713 = vpop.f32.mrb[0].mxu0
      %3714 = vmatprep.mubr.bf16.mxu0 %v1425
      %3715 = vmatmul.mubr.bf16.gmra.mrb[0].mxu0 %v1424
      %v3716 = vpop.f32.mrb[0].mxu0
      %v3717 = vadd.f32 %v3620, %v3716
      %v3718 = vpop.f32.mrb[0].mxu0
      %v3719 = vpop.f32.mrb[0].mxu0
      %v3720 = vadd.f32 %v3623, %v3719
      %v3721 = vpop.f32.mrb[0].mxu0
      %3722 = vmatprep.mubr.bf16.mxu0 %v1429
      %3723 = vmatmul.mubr.bf16.gmra.mrb[0].mxu0 %v1428
      %v3724 = vpop.f32.mrb[0].mxu0
      %v3725 = vadd.f32 %v3628, %v3724
      %v3726 = vpop.f32.mrb[0].mxu0
      %v3727 = vpop.f32.mrb[0].mxu0
      %v3728 = vadd.f32 %v3631, %v3727
      %v3729 = vpop.f32.mrb[0].mxu0
      %3730 = vmatprep.mubr.bf16.mxu0 %v1433
      %3731 = vmatmul.mubr.bf16.gmra.mrb[0].mxu0 %v1432
      %v3732 = vpop.f32.mrb[0].mxu0
      %v3733 = vadd.f32 %v3636, %v3732
      %v3734 = vpop.f32.mrb[0].mxu0
      %v3735 = vpop.f32.mrb[0].mxu0
      %v3736 = vadd.f32 %v3639, %v3735
      %v3737 = vpop.f32.mrb[0].mxu0
      %3738 = vmatprep.mubr.bf16.mxu0 %v1437
      %3739 = vmatmul.mubr.bf16.gmra.mrb[0].mxu0 %v1436
      %v3740 = vpop.f32.mrb[0].mxu0
      %v3741 = vadd.f32 %v3644, %v3740
      %v3742 = vpop.f32.mrb[0].mxu0
      %v3743 = vpop.f32.mrb[0].mxu0
      %v3744 = vadd.f32 %v3647, %v3743
      %v3745 = vpop.f32.mrb[0].mxu0
      %3746 = vmatprep.mubr.bf16.mxu0 %v1441
      %3747 = vmatmul.mubr.bf16.gmra.mrb[0].mxu0 %v1440
      %v3748 = vpop.f32.mrb[0].mxu0
      %v3749 = vadd.f32 %v3652, %v3748
      %v3750 = vpop.f32.mrb[0].mxu0
      %v3751 = vpop.f32.mrb[0].mxu0
      %v3752 = vadd.f32 %v3655, %v3751
      %v3753 = vpop.f32.mrb[0].mxu0
      %3754 = vmatprep.mubr.bf16.mxu0 %v1445
      %3755 = vmatmul.mubr.bf16.gmra.mrb[0].mxu0 %v1444
      %v3756 = vpop.f32.mrb[0].mxu0
      %v3757 = vadd.f32 %v3660, %v3756
      %v3758 = vpop.f32.mrb[0].mxu0
      %v3759 = vpop.f32.mrb[0].mxu0
      %v3760 = vadd.f32 %v3663, %v3759
      %v3761 = vpop.f32.mrb[0].mxu0
      %3762 = vdwg.mxu0
      %v3763 = vxor.u32 %v3039, 2147483648
      %v3764 = vxor.u32 %v3041, 2147483648
      %v3765 = vxor.u32 %v3265, 2147483648
      %v3766 = vxor.u32 %v3267, 2147483648
      %v3767 = vxor.u32 %v3491, 2147483648
      %v3768 = vxor.u32 %v3493, 2147483648
      %v3769 = vxor.u32 %v3701, 2147483648
      %v3770 = vxor.u32 %v3043, 2147483648
      %v3771 = vxor.u32 %v3045, 2147483648
      %v3772 = vxor.u32 %v3269, 2147483648
      %v3773 = vxor.u32 %v3271, 2147483648
      %v3774 = vxor.u32 %v3495, 2147483648
      %v3775 = vxor.u32 %v3497, 2147483648
      %v3776 = vxor.u32 %v3704, 2147483648
      %v3777 = vxor.u32 %v3049, 2147483648
      %v3778 = vxor.u32 %v3051, 2147483648
      %v3779 = vxor.u32 %v3275, 2147483648
      %v3780 = vxor.u32 %v3277, 2147483648
      %v3781 = vxor.u32 %v3501, 2147483648
      %v3782 = vxor.u32 %v3503, 2147483648
      %v3783 = vxor.u32 %v3709, 2147483648
      %v3784 = vxor.u32 %v3053, 2147483648
      %v3785 = vxor.u32 %v3055, 2147483648
      %v3786 = vxor.u32 %v3279, 2147483648
      %v3787 = vxor.u32 %v3281, 2147483648
      %v3788 = vxor.u32 %v3505, 2147483648
      %v3789 = vxor.u32 %v3507, 2147483648
      %v3790 = vxor.u32 %v3712, 2147483648
      %v3791 = vxor.u32 %v3059, 2147483648
      %v3792 = vxor.u32 %v3061, 2147483648
      %v3793 = vxor.u32 %v3285, 2147483648
      %v3794 = vxor.u32 %v3287, 2147483648
      %v3795 = vxor.u32 %v3511, 2147483648
      %v3796 = vxor.u32 %v3513, 2147483648
      %v3797 = vxor.u32 %v3717, 2147483648
      %v3798 = vxor.u32 %v3063, 2147483648
      %v3799 = vxor.u32 %v3065, 2147483648
      %v3800 = vxor.u32 %v3289, 2147483648
      %v3801 = vxor.u32 %v3291, 2147483648
      %v3802 = vxor.u32 %v3515, 2147483648
      %v3803 = vxor.u32 %v3517, 2147483648
      %v3804 = vxor.u32 %v3720, 2147483648
      %v3805 = vxor.u32 %v3069, 2147483648
      %v3806 = vxor.u32 %v3071, 2147483648
      %v3807 = vxor.u32 %v3295, 2147483648
      %v3808 = vxor.u32 %v3297, 2147483648
      %v3809 = vxor.u32 %v3521, 2147483648
      %v3810 = vxor.u32 %v3523, 2147483648
      %v3811 = vxor.u32 %v3725, 2147483648
      %v3812 = vxor.u32 %v3073, 2147483648
      %v3813 = vxor.u32 %v3075, 2147483648
      %v3814 = vxor.u32 %v3299, 2147483648
      %v3815 = vxor.u32 %v3301, 2147483648
      %v3816 = vxor.u32 %v3525, 2147483648
      %v3817 = vxor.u32 %v3527, 2147483648
      %v3818 = vxor.u32 %v3728, 2147483648
      %v3819 = vxor.u32 %v3079, 2147483648
      %v3820 = vxor.u32 %v3081, 2147483648
      %v3821 = vxor.u32 %v3305, 2147483648
      %v3822 = vxor.u32 %v3307, 2147483648
      %v3823 = vxor.u32 %v3531, 2147483648
      %v3824 = vxor.u32 %v3533, 2147483648
      %v3825 = vxor.u32 %v3733, 2147483648
      %v3826 = vxor.u32 %v3083, 2147483648
      %v3827 = vxor.u32 %v3085, 2147483648
      %v3828 = vxor.u32 %v3309, 2147483648
      %v3829 = vxor.u32 %v3311, 2147483648
      %v3830 = vxor.u32 %v3535, 2147483648
      %v3831 = vxor.u32 %v3537, 2147483648
      %v3832 = vxor.u32 %v3736, 2147483648
      %v3833 = vxor.u32 %v3089, 2147483648
      %v3834 = vxor.u32 %v3091, 2147483648
      %v3835 = vxor.u32 %v3315, 2147483648
      %v3836 = vxor.u32 %v3317, 2147483648
      %v3837 = vxor.u32 %v3541, 2147483648
      %v3838 = vxor.u32 %v3543, 2147483648
      %v3839 = vxor.u32 %v3741, 2147483648
      %v3840 = vxor.u32 %v3093, 2147483648
      %v3841 = vxor.u32 %v3095, 2147483648
      %v3842 = vxor.u32 %v3319, 2147483648
      %v3843 = vxor.u32 %v3321, 2147483648
      %v3844 = vxor.u32 %v3545, 2147483648
      %v3845 = vxor.u32 %v3547, 2147483648
      %v3846 = vxor.u32 %v3744, 2147483648
      %v3847 = vxor.u32 %v3099, 2147483648
      %v3848 = vxor.u32 %v3101, 2147483648
      %v3849 = vxor.u32 %v3325, 2147483648
      %v3850 = vxor.u32 %v3327, 2147483648
      %v3851 = vxor.u32 %v3551, 2147483648
      %v3852 = vxor.u32 %v3553, 2147483648
      %v3853 = vxor.u32 %v3749, 2147483648
      %v3854 = vxor.u32 %v3103, 2147483648
      %v3855 = vxor.u32 %v3105, 2147483648
      %v3856 = vxor.u32 %v3329, 2147483648
      %v3857 = vxor.u32 %v3331, 2147483648
      %v3858 = vxor.u32 %v3555, 2147483648
      %v3859 = vxor.u32 %v3557, 2147483648
      %v3860 = vxor.u32 %v3752, 2147483648
      %v3861 = vxor.u32 %v3109, 2147483648
      %v3862 = vxor.u32 %v3111, 2147483648
      %v3863 = vxor.u32 %v3335, 2147483648
      %v3864 = vxor.u32 %v3337, 2147483648
      %v3865 = vxor.u32 %v3561, 2147483648
      %v3866 = vxor.u32 %v3563, 2147483648
      %v3867 = vxor.u32 %v3757, 2147483648
      %v3868 = vxor.u32 %v3113, 2147483648
      %v3869 = vxor.u32 %v3115, 2147483648
      %v3870 = vxor.u32 %v3339, 2147483648
      %v3871 = vxor.u32 %v3341, 2147483648
      %v3872 = vxor.u32 %v3565, 2147483648
      %v3873 = vxor.u32 %v3567, 2147483648
      %v3874 = vxor.u32 %v3760, 2147483648
      %v3875 = vmul.f32 %v3763, 1.442695
      %v3876 = vpow.pop %v3875
      %v3877 = vmul.f32 %v3764, 1.442695
      %v3878 = vpow.pop %v3877
      %v3879 = vmul.f32 %v3765, 1.442695
      %v3880 = vpow.pop %v3879
      %v3881 = vmul.f32 %v3766, 1.442695
      %v3882 = vpow.pop %v3881
      %v3883 = vmul.f32 %v3767, 1.442695
      %v3884 = vpow.pop %v3883
      %v3885 = vmul.f32 %v3768, 1.442695
      %v3886 = vpow.pop %v3885
      %v3887 = vmul.f32 %v3769, 1.442695
      %v3888 = vpow.pop %v3887
      %v3889 = vmul.f32 %v3770, 1.442695
      %v3890 = vpow.pop %v3889
      %v3891 = vmul.f32 %v3771, 1.442695
      %v3892 = vpow.pop %v3891
      %v3893 = vmul.f32 %v3772, 1.442695
      %v3894 = vpow.pop %v3893
      %v3895 = vmul.f32 %v3773, 1.442695
      %v3896 = vpow.pop %v3895
      %v3897 = vmul.f32 %v3774, 1.442695
      %v3898 = vpow.pop %v3897
      %v3899 = vmul.f32 %v3775, 1.442695
      %v3900 = vpow.pop %v3899
      %v3901 = vmul.f32 %v3776, 1.442695
      %v3902 = vpow.pop %v3901
      %v3903 = vmul.f32 %v3777, 1.442695
      %v3904 = vpow.pop %v3903
      %v3905 = vmul.f32 %v3778, 1.442695
      %v3906 = vpow.pop %v3905
      %v3907 = vmul.f32 %v3779, 1.442695
      %v3908 = vpow.pop %v3907
      %v3909 = vmul.f32 %v3780, 1.442695
      %v3910 = vpow.pop %v3909
      %v3911 = vmul.f32 %v3781, 1.442695
      %v3912 = vpow.pop %v3911
      %v3913 = vmul.f32 %v3782, 1.442695
      %v3914 = vpow.pop %v3913
      %v3915 = vmul.f32 %v3783, 1.442695
      %v3916 = vpow.pop %v3915
      %v3917 = vmul.f32 %v3784, 1.442695
      %v3918 = vpow.pop %v3917
      %v3919 = vmul.f32 %v3785, 1.442695
      %v3920 = vpow.pop %v3919
      %v3921 = vmul.f32 %v3786, 1.442695
      %v3922 = vpow.pop %v3921
      %v3923 = vmul.f32 %v3787, 1.442695
      %v3924 = vpow.pop %v3923
      %v3925 = vmul.f32 %v3788, 1.442695
      %v3926 = vpow.pop %v3925
      %v3927 = vmul.f32 %v3789, 1.442695
      %v3928 = vpow.pop %v3927
      %v3929 = vmul.f32 %v3790, 1.442695
      %v3930 = vpow.pop %v3929
      %v3931 = vmul.f32 %v3791, 1.442695
      %v3932 = vpow.pop %v3931
      %v3933 = vmul.f32 %v3792, 1.442695
      %v3934 = vpow.pop %v3933
      %v3935 = vmul.f32 %v3793, 1.442695
      %v3936 = vpow.pop %v3935
      %v3937 = vmul.f32 %v3794, 1.442695
      %v3938 = vpow.pop %v3937
      %v3939 = vmul.f32 %v3795, 1.442695
      %v3940 = vpow.pop %v3939
      %v3941 = vmul.f32 %v3796, 1.442695
      %v3942 = vpow.pop %v3941
      %v3943 = vmul.f32 %v3797, 1.442695
      %v3944 = vpow.pop %v3943
      %v3945 = vmul.f32 %v3798, 1.442695
      %v3946 = vpow.pop %v3945
      %v3947 = vmul.f32 %v3799, 1.442695
      %v3948 = vpow.pop %v3947
      %v3949 = vmul.f32 %v3800, 1.442695
      %v3950 = vpow.pop %v3949
      %v3951 = vmul.f32 %v3801, 1.442695
      %v3952 = vpow.pop %v3951
      %v3953 = vmul.f32 %v3802, 1.442695
      %v3954 = vpow.pop %v3953
      %v3955 = vmul.f32 %v3803, 1.442695
      %v3956 = vpow.pop %v3955
      %v3957 = vmul.f32 %v3804, 1.442695
      %v3958 = vpow.pop %v3957
      %v3959 = vmul.f32 %v3805, 1.442695
      %v3960 = vpow.pop %v3959
      %v3961 = vmul.f32 %v3806, 1.442695
      %v3962 = vpow.pop %v3961
      %v3963 = vmul.f32 %v3807, 1.442695
      %v3964 = vpow.pop %v3963
      %v3965 = vmul.f32 %v3808, 1.442695
      %v3966 = vpow.pop %v3965
      %v3967 = vmul.f32 %v3809, 1.442695
      %v3968 = vpow.pop %v3967
      %v3969 = vmul.f32 %v3810, 1.442695
      %v3970 = vpow.pop %v3969
      %v3971 = vmul.f32 %v3811, 1.442695
      %v3972 = vpow.pop %v3971
      %v3973 = vmul.f32 %v3812, 1.442695
      %v3974 = vpow.pop %v3973
      %v3975 = vmul.f32 %v3813, 1.442695
      %v3976 = vpow.pop %v3975
      %v3977 = vmul.f32 %v3814, 1.442695
      %v3978 = vpow.pop %v3977
      %v3979 = vmul.f32 %v3815, 1.442695
      %v3980 = vpow.pop %v3979
      %v3981 = vmul.f32 %v3816, 1.442695
      %v3982 = vpow.pop %v3981
      %v3983 = vmul.f32 %v3817, 1.442695
      %v3984 = vpow.pop %v3983
      %v3985 = vmul.f32 %v3818, 1.442695
      %v3986 = vpow.pop %v3985
      %v3987 = vmul.f32 %v3819, 1.442695
      %v3988 = vpow.pop %v3987
      %v3989 = vmul.f32 %v3820, 1.442695
      %v3990 = vpow.pop %v3989
      %v3991 = vmul.f32 %v3821, 1.442695
      %v3992 = vpow.pop %v3991
      %v3993 = vmul.f32 %v3822, 1.442695
      %v3994 = vpow.pop %v3993
      %v3995 = vmul.f32 %v3823, 1.442695
      %v3996 = vpow.pop %v3995
      %v3997 = vmul.f32 %v3824, 1.442695
      %v3998 = vpow.pop %v3997
      %v3999 = vmul.f32 %v3825, 1.442695
      %v4000 = vpow.pop %v3999
      %v4001 = vmul.f32 %v3826, 1.442695
      %v4002 = vpow.pop %v4001
      %v4003 = vmul.f32 %v3827, 1.442695
      %v4004 = vpow.pop %v4003
      %v4005 = vmul.f32 %v3828, 1.442695
      %v4006 = vpow.pop %v4005
      %v4007 = vmul.f32 %v3829, 1.442695
      %v4008 = vpow.pop %v4007
      %v4009 = vmul.f32 %v3830, 1.442695
      %v4010 = vpow.pop %v4009
      %v4011 = vmul.f32 %v3831, 1.442695
      %v4012 = vpow.pop %v4011
      %v4013 = vmul.f32 %v3832, 1.442695
      %v4014 = vpow.pop %v4013
      %v4015 = vmul.f32 %v3833, 1.442695
      %v4016 = vpow.pop %v4015
      %v4017 = vmul.f32 %v3834, 1.442695
      %v4018 = vpow.pop %v4017
      %v4019 = vmul.f32 %v3835, 1.442695
      %v4020 = vpow.pop %v4019
      %v4021 = vmul.f32 %v3836, 1.442695
      %v4022 = vpow.pop %v4021
      %v4023 = vmul.f32 %v3837, 1.442695
      %v4024 = vpow.pop %v4023
      %v4025 = vmul.f32 %v3838, 1.442695
      %v4026 = vpow.pop %v4025
      %v4027 = vmul.f32 %v3839, 1.442695
      %v4028 = vpow.pop %v4027
      %v4029 = vmul.f32 %v3840, 1.442695
      %v4030 = vpow.pop %v4029
      %v4031 = vmul.f32 %v3841, 1.442695
      %v4032 = vpow.pop %v4031
      %v4033 = vmul.f32 %v3842, 1.442695
      %v4034 = vpow.pop %v4033
      %v4035 = vmul.f32 %v3843, 1.442695
      %v4036 = vpow.pop %v4035
      %v4037 = vmul.f32 %v3844, 1.442695
      %v4038 = vpow.pop %v4037
      %v4039 = vmul.f32 %v3845, 1.442695
      %v4040 = vpow.pop %v4039
      %v4041 = vmul.f32 %v3846, 1.442695
      %v4042 = vpow.pop %v4041
      %v4043 = vmul.f32 %v3847, 1.442695
      %v4044 = vpow.pop %v4043
      %v4045 = vmul.f32 %v3848, 1.442695
      %v4046 = vpow.pop %v4045
      %v4047 = vmul.f32 %v3849, 1.442695
      %v4048 = vpow.pop %v4047
      %v4049 = vmul.f32 %v3850, 1.442695
      %v4050 = vpow.pop %v4049
      %v4051 = vmul.f32 %v3851, 1.442695
      %v4052 = vpow.pop %v4051
      %v4053 = vmul.f32 %v3852, 1.442695
      %v4054 = vpow.pop %v4053
      %v4055 = vmul.f32 %v3853, 1.442695
      %v4056 = vpow.pop %v4055
      %v4057 = vmul.f32 %v3854, 1.442695
      %v4058 = vpow.pop %v4057
      %v4059 = vmul.f32 %v3855, 1.442695
      %v4060 = vpow.pop %v4059
      %v4061 = vmul.f32 %v3856, 1.442695
      %v4062 = vpow.pop %v4061
      %v4063 = vmul.f32 %v3857, 1.442695
      %v4064 = vpow.pop %v4063
      %v4065 = vmul.f32 %v3858, 1.442695
      %v4066 = vpow.pop %v4065
      %v4067 = vmul.f32 %v3859, 1.442695
      %v4068 = vpow.pop %v4067
      %v4069 = vmul.f32 %v3860, 1.442695
      %v4070 = vpow.pop %v4069
      %v4071 = vmul.f32 %v3861, 1.442695
      %v4072 = vpow.pop %v4071
      %v4073 = vmul.f32 %v3862, 1.442695
      %v4074 = vpow.pop %v4073
      %v4075 = vmul.f32 %v3863, 1.442695
      %v4076 = vpow.pop %v4075
      %v4077 = vmul.f32 %v3864, 1.442695
      %v4078 = vpow.pop %v4077
      %v4079 = vmul.f32 %v3865, 1.442695
      %v4080 = vpow.pop %v4079
      %v4081 = vmul.f32 %v3866, 1.442695
      %v4082 = vpow.pop %v4081
      %v4083 = vmul.f32 %v3867, 1.442695
      %v4084 = vpow.pop %v4083
      %v4085 = vmul.f32 %v3868, 1.442695
      %v4086 = vpow.pop %v4085
      %v4087 = vmul.f32 %v3869, 1.442695
      %v4088 = vpow.pop %v4087
      %v4089 = vmul.f32 %v3870, 1.442695
      %v4090 = vpow.pop %v4089
      %v4091 = vmul.f32 %v3871, 1.442695
      %v4092 = vpow.pop %v4091
      %v4093 = vmul.f32 %v3872, 1.442695
      %v4094 = vpow.pop %v4093
      %v4095 = vmul.f32 %v3873, 1.442695
      %v4096 = vpow.pop %v4095
      %v4097 = vmul.f32 %v3874, 1.442695
      %v4098 = vpow.pop %v4097
      %v4099 = vadd.f32 %v3876, 1.0
      %v4100 = vadd.f32 %v3878, 1.0
      %v4101 = vadd.f32 %v3880, 1.0
      %v4102 = vadd.f32 %v3882, 1.0
      %v4103 = vadd.f32 %v3884, 1.0
      %v4104 = vadd.f32 %v3886, 1.0
      %v4105 = vadd.f32 %v3888, 1.0
      %v4106 = vadd.f32 %v3890, 1.0
      %v4107 = vadd.f32 %v3892, 1.0
      %v4108 = vadd.f32 %v3894, 1.0
      %v4109 = vadd.f32 %v3896, 1.0
      %v4110 = vadd.f32 %v3898, 1.0
      %v4111 = vadd.f32 %v3900, 1.0
      %v4112 = vadd.f32 %v3902, 1.0
      %v4113 = vadd.f32 %v3904, 1.0
      %v4114 = vadd.f32 %v3906, 1.0
      %v4115 = vadd.f32 %v3908, 1.0
      %v4116 = vadd.f32 %v3910, 1.0
      %v4117 = vadd.f32 %v3912, 1.0
      %v4118 = vadd.f32 %v3914, 1.0
      %v4119 = vadd.f32 %v3916, 1.0
      %v4120 = vadd.f32 %v3918, 1.0
      %v4121 = vadd.f32 %v3920, 1.0
      %v4122 = vadd.f32 %v3922, 1.0
      %v4123 = vadd.f32 %v3924, 1.0
      %v4124 = vadd.f32 %v3926, 1.0
      %v4125 = vadd.f32 %v3928, 1.0
      %v4126 = vadd.f32 %v3930, 1.0
      %v4127 = vadd.f32 %v3932, 1.0
      %v4128 = vadd.f32 %v3934, 1.0
      %v4129 = vadd.f32 %v3936, 1.0
      %v4130 = vadd.f32 %v3938, 1.0
      %v4131 = vadd.f32 %v3940, 1.0
      %v4132 = vadd.f32 %v3942, 1.0
      %v4133 = vadd.f32 %v3944, 1.0
      %v4134 = vadd.f32 %v3946, 1.0
      %v4135 = vadd.f32 %v3948, 1.0
      %v4136 = vadd.f32 %v3950, 1.0
      %v4137 = vadd.f32 %v3952, 1.0
      %v4138 = vadd.f32 %v3954, 1.0
      %v4139 = vadd.f32 %v3956, 1.0
      %v4140 = vadd.f32 %v3958, 1.0
      %v4141 = vadd.f32 %v3960, 1.0
      %v4142 = vadd.f32 %v3962, 1.0
      %v4143 = vadd.f32 %v3964, 1.0
      %v4144 = vadd.f32 %v3966, 1.0
      %v4145 = vadd.f32 %v3968, 1.0
      %v4146 = vadd.f32 %v3970, 1.0
      %v4147 = vadd.f32 %v3972, 1.0
      %v4148 = vadd.f32 %v3974, 1.0
      %v4149 = vadd.f32 %v3976, 1.0
      %v4150 = vadd.f32 %v3978, 1.0
      %v4151 = vadd.f32 %v3980, 1.0
      %v4152 = vadd.f32 %v3982, 1.0
      %v4153 = vadd.f32 %v3984, 1.0
      %v4154 = vadd.f32 %v3986, 1.0
      %v4155 = vadd.f32 %v3988, 1.0
      %v4156 = vadd.f32 %v3990, 1.0
      %v4157 = vadd.f32 %v3992, 1.0
      %v4158 = vadd.f32 %v3994, 1.0
      %v4159 = vadd.f32 %v3996, 1.0
      %v4160 = vadd.f32 %v3998, 1.0
      %v4161 = vadd.f32 %v4000, 1.0
      %v4162 = vadd.f32 %v4002, 1.0
      %v4163 = vadd.f32 %v4004, 1.0
      %v4164 = vadd.f32 %v4006, 1.0
      %v4165 = vadd.f32 %v4008, 1.0
      %v4166 = vadd.f32 %v4010, 1.0
      %v4167 = vadd.f32 %v4012, 1.0
      %v4168 = vadd.f32 %v4014, 1.0
      %v4169 = vadd.f32 %v4016, 1.0
      %v4170 = vadd.f32 %v4018, 1.0
      %v4171 = vadd.f32 %v4020, 1.0
      %v4172 = vadd.f32 %v4022, 1.0
      %v4173 = vadd.f32 %v4024, 1.0
      %v4174 = vadd.f32 %v4026, 1.0
      %v4175 = vadd.f32 %v4028, 1.0
      %v4176 = vadd.f32 %v4030, 1.0
      %v4177 = vadd.f32 %v4032, 1.0
      %v4178 = vadd.f32 %v4034, 1.0
      %v4179 = vadd.f32 %v4036, 1.0
      %v4180 = vadd.f32 %v4038, 1.0
      %v4181 = vadd.f32 %v4040, 1.0
      %v4182 = vadd.f32 %v4042, 1.0
      %v4183 = vadd.f32 %v4044, 1.0
      %v4184 = vadd.f32 %v4046, 1.0
      %v4185 = vadd.f32 %v4048, 1.0
      %v4186 = vadd.f32 %v4050, 1.0
      %v4187 = vadd.f32 %v4052, 1.0
      %v4188 = vadd.f32 %v4054, 1.0
      %v4189 = vadd.f32 %v4056, 1.0
      %v4190 = vadd.f32 %v4058, 1.0
      %v4191 = vadd.f32 %v4060, 1.0
      %v4192 = vadd.f32 %v4062, 1.0
      %v4193 = vadd.f32 %v4064, 1.0
      %v4194 = vadd.f32 %v4066, 1.0
      %v4195 = vadd.f32 %v4068, 1.0
      %v4196 = vadd.f32 %v4070, 1.0
      %v4197 = vadd.f32 %v4072, 1.0
      %v4198 = vadd.f32 %v4074, 1.0
      %v4199 = vadd.f32 %v4076, 1.0
      %v4200 = vadd.f32 %v4078, 1.0
      %v4201 = vadd.f32 %v4080, 1.0
      %v4202 = vadd.f32 %v4082, 1.0
      %v4203 = vadd.f32 %v4084, 1.0
      %v4204 = vadd.f32 %v4086, 1.0
      %v4205 = vadd.f32 %v4088, 1.0
      %v4206 = vadd.f32 %v4090, 1.0
      %v4207 = vadd.f32 %v4092, 1.0
      %v4208 = vadd.f32 %v4094, 1.0
      %v4209 = vadd.f32 %v4096, 1.0
      %v4210 = vadd.f32 %v4098, 1.0
      %v4211 = vrcp.pop %v4099
      %v4212 = vmul.f32 1.0, %v4211
      %v4213 = vrcp.pop %v4100
      %v4214 = vmul.f32 1.0, %v4213
      %v4215 = vrcp.pop %v4101
      %v4216 = vmul.f32 1.0, %v4215
      %v4217 = vrcp.pop %v4102
      %v4218 = vmul.f32 1.0, %v4217
      %v4219 = vrcp.pop %v4103
      %v4220 = vmul.f32 1.0, %v4219
      %v4221 = vrcp.pop %v4104
      %v4222 = vmul.f32 1.0, %v4221
      %v4223 = vrcp.pop %v4105
      %v4224 = vmul.f32 1.0, %v4223
      %v4225 = vrcp.pop %v4106
      %v4226 = vmul.f32 1.0, %v4225
      %v4227 = vrcp.pop %v4107
      %v4228 = vmul.f32 1.0, %v4227
      %v4229 = vrcp.pop %v4108
      %v4230 = vmul.f32 1.0, %v4229
      %v4231 = vrcp.pop %v4109
      %v4232 = vmul.f32 1.0, %v4231
      %v4233 = vrcp.pop %v4110
      %v4234 = vmul.f32 1.0, %v4233
      %v4235 = vrcp.pop %v4111
      %v4236 = vmul.f32 1.0, %v4235
      %v4237 = vrcp.pop %v4112
      %v4238 = vmul.f32 1.0, %v4237
      %v4239 = vrcp.pop %v4113
      %v4240 = vmul.f32 1.0, %v4239
      %v4241 = vrcp.pop %v4114
      %v4242 = vmul.f32 1.0, %v4241
      %v4243 = vrcp.pop %v4115
      %v4244 = vmul.f32 1.0, %v4243
      %v4245 = vrcp.pop %v4116
      %v4246 = vmul.f32 1.0, %v4245
      %v4247 = vrcp.pop %v4117
      %v4248 = vmul.f32 1.0, %v4247
      %v4249 = vrcp.pop %v4118
      %v4250 = vmul.f32 1.0, %v4249
      %v4251 = vrcp.pop %v4119
      %v4252 = vmul.f32 1.0, %v4251
      %v4253 = vrcp.pop %v4120
      %v4254 = vmul.f32 1.0, %v4253
      %v4255 = vrcp.pop %v4121
      %v4256 = vmul.f32 1.0, %v4255
      %v4257 = vrcp.pop %v4122
      %v4258 = vmul.f32 1.0, %v4257
      %v4259 = vrcp.pop %v4123
      %v4260 = vmul.f32 1.0, %v4259
      %v4261 = vrcp.pop %v4124
      %v4262 = vmul.f32 1.0, %v4261
      %v4263 = vrcp.pop %v4125
      %v4264 = vmul.f32 1.0, %v4263
      %v4265 = vrcp.pop %v4126
      %v4266 = vmul.f32 1.0, %v4265
      %v4267 = vrcp.pop %v4127
      %v4268 = vmul.f32 1.0, %v4267
      %v4269 = vrcp.pop %v4128
      %v4270 = vmul.f32 1.0, %v4269
      %v4271 = vrcp.pop %v4129
      %v4272 = vmul.f32 1.0, %v4271
      %v4273 = vrcp.pop %v4130
      %v4274 = vmul.f32 1.0, %v4273
      %v4275 = vrcp.pop %v4131
      %v4276 = vmul.f32 1.0, %v4275
      %v4277 = vrcp.pop %v4132
      %v4278 = vmul.f32 1.0, %v4277
      %v4279 = vrcp.pop %v4133
      %v4280 = vmul.f32 1.0, %v4279
      %v4281 = vrcp.pop %v4134
      %v4282 = vmul.f32 1.0, %v4281
      %v4283 = vrcp.pop %v4135
      %v4284 = vmul.f32 1.0, %v4283
      %v4285 = vrcp.pop %v4136
      %v4286 = vmul.f32 1.0, %v4285
      %v4287 = vrcp.pop %v4137
      %v4288 = vmul.f32 1.0, %v4287
      %v4289 = vrcp.pop %v4138
      %v4290 = vmul.f32 1.0, %v4289
      %v4291 = vrcp.pop %v4139
      %v4292 = vmul.f32 1.0, %v4291
      %v4293 = vrcp.pop %v4140
      %v4294 = vmul.f32 1.0, %v4293
      %v4295 = vrcp.pop %v4141
      %v4296 = vmul.f32 1.0, %v4295
      %v4297 = vrcp.pop %v4142
      %v4298 = vmul.f32 1.0, %v4297
      %v4299 = vrcp.pop %v4143
      %v4300 = vmul.f32 1.0, %v4299
      %v4301 = vrcp.pop %v4144
      %v4302 = vmul.f32 1.0, %v4301
      %v4303 = vrcp.pop %v4145
      %v4304 = vmul.f32 1.0, %v4303
      %v4305 = vrcp.pop %v4146
      %v4306 = vmul.f32 1.0, %v4305
      %v4307 = vrcp.pop %v4147
      %v4308 = vmul.f32 1.0, %v4307
      %v4309 = vrcp.pop %v4148
      %v4310 = vmul.f32 1.0, %v4309
      %v4311 = vrcp.pop %v4149
      %v4312 = vmul.f32 1.0, %v4311
      %v4313 = vrcp.pop %v4150
      %v4314 = vmul.f32 1.0, %v4313
      %v4315 = vrcp.pop %v4151
      %v4316 = vmul.f32 1.0, %v4315
      %v4317 = vrcp.pop %v4152
      %v4318 = vmul.f32 1.0, %v4317
      %v4319 = vrcp.pop %v4153
      %v4320 = vmul.f32 1.0, %v4319
      %v4321 = vrcp.pop %v4154
      %v4322 = vmul.f32 1.0, %v4321
      %v4323 = vrcp.pop %v4155
      %v4324 = vmul.f32 1.0, %v4323
      %v4325 = vrcp.pop %v4156
      %v4326 = vmul.f32 1.0, %v4325
      %v4327 = vrcp.pop %v4157
      %v4328 = vmul.f32 1.0, %v4327
      %v4329 = vrcp.pop %v4158
      %v4330 = vmul.f32 1.0, %v4329
      %v4331 = vrcp.pop %v4159
      %v4332 = vmul.f32 1.0, %v4331
      %v4333 = vrcp.pop %v4160
      %v4334 = vmul.f32 1.0, %v4333
      %v4335 = vrcp.pop %v4161
      %v4336 = vmul.f32 1.0, %v4335
      %v4337 = vrcp.pop %v4162
      %v4338 = vmul.f32 1.0, %v4337
      %v4339 = vrcp.pop %v4163
      %v4340 = vmul.f32 1.0, %v4339
      %v4341 = vrcp.pop %v4164
      %v4342 = vmul.f32 1.0, %v4341
      %v4343 = vrcp.pop %v4165
      %v4344 = vmul.f32 1.0, %v4343
      %v4345 = vrcp.pop %v4166
      %v4346 = vmul.f32 1.0, %v4345
      %v4347 = vrcp.pop %v4167
      %v4348 = vmul.f32 1.0, %v4347
      %v4349 = vrcp.pop %v4168
      %v4350 = vmul.f32 1.0, %v4349
      %v4351 = vrcp.pop %v4169
      %v4352 = vmul.f32 1.0, %v4351
      %v4353 = vrcp.pop %v4170
      %v4354 = vmul.f32 1.0, %v4353
      %v4355 = vrcp.pop %v4171
      %v4356 = vmul.f32 1.0, %v4355
      %v4357 = vrcp.pop %v4172
      %v4358 = vmul.f32 1.0, %v4357
      %v4359 = vrcp.pop %v4173
      %v4360 = vmul.f32 1.0, %v4359
      %v4361 = vrcp.pop %v4174
      %v4362 = vmul.f32 1.0, %v4361
      %v4363 = vrcp.pop %v4175
      %v4364 = vmul.f32 1.0, %v4363
      %v4365 = vrcp.pop %v4176
      %v4366 = vmul.f32 1.0, %v4365
      %v4367 = vrcp.pop %v4177
      %v4368 = vmul.f32 1.0, %v4367
      %v4369 = vrcp.pop %v4178
      %v4370 = vmul.f32 1.0, %v4369
      %v4371 = vrcp.pop %v4179
      %v4372 = vmul.f32 1.0, %v4371
      %v4373 = vrcp.pop %v4180
      %v4374 = vmul.f32 1.0, %v4373
      %v4375 = vrcp.pop %v4181
      %v4376 = vmul.f32 1.0, %v4375
      %v4377 = vrcp.pop %v4182
      %v4378 = vmul.f32 1.0, %v4377
      %v4379 = vrcp.pop %v4183
      %v4380 = vmul.f32 1.0, %v4379
      %v4381 = vrcp.pop %v4184
      %v4382 = vmul.f32 1.0, %v4381
      %v4383 = vrcp.pop %v4185
      %v4384 = vmul.f32 1.0, %v4383
      %v4385 = vrcp.pop %v4186
      %v4386 = vmul.f32 1.0, %v4385
      %v4387 = vrcp.pop %v4187
      %v4388 = vmul.f32 1.0, %v4387
      %v4389 = vrcp.pop %v4188
      %v4390 = vmul.f32 1.0, %v4389
      %v4391 = vrcp.pop %v4189
      %v4392 = vmul.f32 1.0, %v4391
      %v4393 = vrcp.pop %v4190
      %v4394 = vmul.f32 1.0, %v4393
      %v4395 = vrcp.pop %v4191
      %v4396 = vmul.f32 1.0, %v4395
      %v4397 = vrcp.pop %v4192
      %v4398 = vmul.f32 1.0, %v4397
      %v4399 = vrcp.pop %v4193
      %v4400 = vmul.f32 1.0, %v4399
      %v4401 = vrcp.pop %v4194
      %v4402 = vmul.f32 1.0, %v4401
      %v4403 = vrcp.pop %v4195
      %v4404 = vmul.f32 1.0, %v4403
      %v4405 = vrcp.pop %v4196
      %v4406 = vmul.f32 1.0, %v4405
      %v4407 = vrcp.pop %v4197
      %v4408 = vmul.f32 1.0, %v4407
      %v4409 = vrcp.pop %v4198
      %v4410 = vmul.f32 1.0, %v4409
      %v4411 = vrcp.pop %v4199
      %v4412 = vmul.f32 1.0, %v4411
      %v4413 = vrcp.pop %v4200
      %v4414 = vmul.f32 1.0, %v4413
      %v4415 = vrcp.pop %v4201
      %v4416 = vmul.f32 1.0, %v4415
      %v4417 = vrcp.pop %v4202
      %v4418 = vmul.f32 1.0, %v4417
      %v4419 = vrcp.pop %v4203
      %v4420 = vmul.f32 1.0, %v4419
      %v4421 = vrcp.pop %v4204
      %v4422 = vmul.f32 1.0, %v4421
      %v4423 = vrcp.pop %v4205
      %v4424 = vmul.f32 1.0, %v4423
      %v4425 = vrcp.pop %v4206
      %v4426 = vmul.f32 1.0, %v4425
      %v4427 = vrcp.pop %v4207
      %v4428 = vmul.f32 1.0, %v4427
      %v4429 = vrcp.pop %v4208
      %v4430 = vmul.f32 1.0, %v4429
      %v4431 = vrcp.pop %v4209
      %v4432 = vmul.f32 1.0, %v4431
      %v4433 = vrcp.pop %v4210
      %v4434 = vmul.f32 1.0, %v4433
      %4435 = vst [vmem:[%s231] sm:$0xff] %v4212
      %4436 = vst [vmem:[%s231 + $0x8] sm:$0xff] %v4214
      %4437 = vst [vmem:[%s231 + $0x10] sm:$0xff] %v4216
      %4438 = vst [vmem:[%s231 + $0x18] sm:$0xff] %v4218
      %4439 = vst [vmem:[%s231 + $0x20] sm:$0xff] %v4220
      %4440 = vst [vmem:[%s231 + $0x28] sm:$0xff] %v4222
      %vm4441 = vcmask 130048
      %4442 = vst.msk [vmem:[%s231 + $0x30] sm:$0xff] %vm4441, %v4224
      %4443 = vst [vmem:[%s231 + $0x38] sm:$0xff] %v4226
      %4444 = vst [vmem:[%s231 + $0x40] sm:$0xff] %v4228
      %4445 = vst [vmem:[%s231 + $0x48] sm:$0xff] %v4230
      %4446 = vst [vmem:[%s231 + $0x50] sm:$0xff] %v4232
      %4447 = vst [vmem:[%s231 + $0x58] sm:$0xff] %v4234
      %4448 = vst [vmem:[%s231 + $0x60] sm:$0xff] %v4236
      %4449 = vst.msk [vmem:[%s231 + $0x68] sm:$0xff] %vm4441, %v4238
      %4450 = vst [vmem:[%s231 + $0x70] sm:$0xff] %v4240
      %4451 = vst [vmem:[%s231 + $0x78] sm:$0xff] %v4242
      %4452 = vst [vmem:[%s231 + $0x80] sm:$0xff] %v4244
      %4453 = vst [vmem:[%s231 + $0x88] sm:$0xff] %v4246
      %4454 = vst [vmem:[%s231 + $0x90] sm:$0xff] %v4248
      %4455 = vst [vmem:[%s231 + $0x98] sm:$0xff] %v4250
      %4456 = vst.msk [vmem:[%s231 + $0xa0] sm:$0xff] %vm4441, %v4252
      %4457 = vst [vmem:[%s231 + $0xa8] sm:$0xff] %v4254
      %4458 = vst [vmem:[%s231 + $0xb0] sm:$0xff] %v4256
      %4459 = vst [vmem:[%s231 + $0xb8] sm:$0xff] %v4258
      %4460 = vst [vmem:[%s231 + $0xc0] sm:$0xff] %v4260
      %4461 = vst [vmem:[%s231 + $0xc8] sm:$0xff] %v4262
      %4462 = vst [vmem:[%s231 + $0xd0] sm:$0xff] %v4264
      %4463 = vst.msk [vmem:[%s231 + $0xd8] sm:$0xff] %vm4441, %v4266
      %4464 = vst [vmem:[%s231 + $0xe0] sm:$0xff] %v4268
      %4465 = vst [vmem:[%s231 + $0xe8] sm:$0xff] %v4270
      %4466 = vst [vmem:[%s231 + $0xf0] sm:$0xff] %v4272
      %4467 = vst [vmem:[%s231 + $0xf8] sm:$0xff] %v4274
      %4468 = vst [vmem:[%s231 + $0x100] sm:$0xff] %v4276
      %4469 = vst [vmem:[%s231 + $0x108] sm:$0xff] %v4278
      %4470 = vst.msk [vmem:[%s231 + $0x110] sm:$0xff] %vm4441, %v4280
      %4471 = vst [vmem:[%s231 + $0x118] sm:$0xff] %v4282
      %4472 = vst [vmem:[%s231 + $0x120] sm:$0xff] %v4284
      %4473 = vst [vmem:[%s231 + $0x128] sm:$0xff] %v4286
      %4474 = vst [vmem:[%s231 + $0x130] sm:$0xff] %v4288
      %4475 = vst [vmem:[%s231 + $0x138] sm:$0xff] %v4290
      %4476 = vst [vmem:[%s231 + $0x140] sm:$0xff] %v4292
      %4477 = vst.msk [vmem:[%s231 + $0x148] sm:$0xff] %vm4441, %v4294
      %4478 = vst [vmem:[%s231 + $0x150] sm:$0xff] %v4296
      %4479 = vst [vmem:[%s231 + $0x158] sm:$0xff] %v4298
      %4480 = vst [vmem:[%s231 + $0x160] sm:$0xff] %v4300
      %4481 = vst [vmem:[%s231 + $0x168] sm:$0xff] %v4302
      %4482 = vst [vmem:[%s231 + $0x170] sm:$0xff] %v4304
      %4483 = vst [vmem:[%s231 + $0x178] sm:$0xff] %v4306
      %4484 = vst.msk [vmem:[%s231 + $0x180] sm:$0xff] %vm4441, %v4308
      %4485 = vst [vmem:[%s231 + $0x188] sm:$0xff] %v4310
      %4486 = vst [vmem:[%s231 + $0x190] sm:$0xff] %v4312
      %4487 = vst [vmem:[%s231 + $0x198] sm:$0xff] %v4314
      %4488 = vst [vmem:[%s231 + $0x1a0] sm:$0xff] %v4316
      %4489 = vst [vmem:[%s231 + $0x1a8] sm:$0xff] %v4318
      %4490 = vst [vmem:[%s231 + $0x1b0] sm:$0xff] %v4320
      %4491 = vst.msk [vmem:[%s231 + $0x1b8] sm:$0xff] %vm4441, %v4322
      %4492 = vst [vmem:[%s231 + $0x1c0] sm:$0xff] %v4324
      %4493 = vst [vmem:[%s231 + $0x1c8] sm:$0xff] %v4326
      %4494 = vst [vmem:[%s231 + $0x1d0] sm:$0xff] %v4328
      %4495 = vst [vmem:[%s231 + $0x1d8] sm:$0xff] %v4330
      %4496 = vst [vmem:[%s231 + $0x1e0] sm:$0xff] %v4332
      %4497 = vst [vmem:[%s231 + $0x1e8] sm:$0xff] %v4334
      %4498 = vst.msk [vmem:[%s231 + $0x1f0] sm:$0xff] %vm4441, %v4336
      %4499 = vst [vmem:[%s231 + $0x1f8] sm:$0xff] %v4338
      %4500 = vst [vmem:[%s231 + $0x200] sm:$0xff] %v4340
      %4501 = vst [vmem:[%s231 + $0x208] sm:$0xff] %v4342
      %4502 = vst [vmem:[%s231 + $0x210] sm:$0xff] %v4344
      %4503 = vst [vmem:[%s231 + $0x218] sm:$0xff] %v4346
      %4504 = vst [vmem:[%s231 + $0x220] sm:$0xff] %v4348
      %4505 = vst.msk [vmem:[%s231 + $0x228] sm:$0xff] %vm4441, %v4350
      %4506 = vst [vmem:[%s231 + $0x230] sm:$0xff] %v4352
      %4507 = vst [vmem:[%s231 + $0x238] sm:$0xff] %v4354
      %4508 = vst [vmem:[%s231 + $0x240] sm:$0xff] %v4356
      %4509 = vst [vmem:[%s231 + $0x248] sm:$0xff] %v4358
      %4510 = vst [vmem:[%s231 + $0x250] sm:$0xff] %v4360
      %4511 = vst [vmem:[%s231 + $0x258] sm:$0xff] %v4362
      %4512 = vst.msk [vmem:[%s231 + $0x260] sm:$0xff] %vm4441, %v4364
      %4513 = vst [vmem:[%s231 + $0x268] sm:$0xff] %v4366
      %4514 = vst [vmem:[%s231 + $0x270] sm:$0xff] %v4368
      %4515 = vst [vmem:[%s231 + $0x278] sm:$0xff] %v4370
      %4516 = vst [vmem:[%s231 + $0x280] sm:$0xff] %v4372
      %4517 = vst [vmem:[%s231 + $0x288] sm:$0xff] %v4374
      %4518 = vst [vmem:[%s231 + $0x290] sm:$0xff] %v4376
      %4519 = vst.msk [vmem:[%s231 + $0x298] sm:$0xff] %vm4441, %v4378
      %4520 = vst [vmem:[%s231 + $0x2a0] sm:$0xff] %v4380
      %4521 = vst [vmem:[%s231 + $0x2a8] sm:$0xff] %v4382
      %4522 = vst [vmem:[%s231 + $0x2b0] sm:$0xff] %v4384
      %4523 = vst [vmem:[%s231 + $0x2b8] sm:$0xff] %v4386
      %4524 = vst [vmem:[%s231 + $0x2c0] sm:$0xff] %v4388
      %4525 = vst [vmem:[%s231 + $0x2c8] sm:$0xff] %v4390
      %4526 = vst.msk [vmem:[%s231 + $0x2d0] sm:$0xff] %vm4441, %v4392
      %4527 = vst [vmem:[%s231 + $0x2d8] sm:$0xff] %v4394
      %4528 = vst [vmem:[%s231 + $0x2e0] sm:$0xff] %v4396
      %4529 = vst [vmem:[%s231 + $0x2e8] sm:$0xff] %v4398
      %4530 = vst [vmem:[%s231 + $0x2f0] sm:$0xff] %v4400
      %4531 = vst [vmem:[%s231 + $0x2f8] sm:$0xff] %v4402
      %4532 = vst [vmem:[%s231 + $0x300] sm:$0xff] %v4404
      %4533 = vst.msk [vmem:[%s231 + $0x308] sm:$0xff] %vm4441, %v4406
      %4534 = vst [vmem:[%s231 + $0x310] sm:$0xff] %v4408
      %4535 = vst [vmem:[%s231 + $0x318] sm:$0xff] %v4410
      %4536 = vst [vmem:[%s231 + $0x320] sm:$0xff] %v4412
      %4537 = vst [vmem:[%s231 + $0x328] sm:$0xff] %v4414
      %4538 = vst [vmem:[%s231 + $0x330] sm:$0xff] %v4416
      %4539 = vst [vmem:[%s231 + $0x338] sm:$0xff] %v4418
      %4540 = vst.msk [vmem:[%s231 + $0x340] sm:$0xff] %vm4441, %v4420
      %4541 = vst [vmem:[%s231 + $0x348] sm:$0xff] %v4422
      %4542 = vst [vmem:[%s231 + $0x350] sm:$0xff] %v4424
      %4543 = vst [vmem:[%s231 + $0x358] sm:$0xff] %v4426
      %4544 = vst [vmem:[%s231 + $0x360] sm:$0xff] %v4428
      %4545 = vst [vmem:[%s231 + $0x368] sm:$0xff] %v4430
      %4546 = vst [vmem:[%s231 + $0x370] sm:$0xff] %v4432
      %4547 = vst.msk [vmem:[%s231 + $0x378] sm:$0xff] %vm4441, %v4434
      %s4548 = smul.u32 16, %s16
      %p4549 = scmp.lt.s32.totalorder %s4548, 31
      %s4550 = scalar_select %p4549, %s4548, 31
      %s4551 = smul.addr %s4550, 7
      %s4552 = smul.addr %s4551, 8
      %s4553 = scalar_lea.vmem %s5, %s4552
      // Predicated region
      $region41: #{tpu_custom_call.1} parent=39 // pred_check
        %p4554 = pneg %p144
      $region42: #{tpu_custom_call.1} parent=39 // pred_check_branch
        %4556 = sbr.rel (%p4554) target = $region44
      $region43: #{tpu_custom_call.1} parent=39 // pred_region
        %s4557 = smul.u32 16, %s16
      $region44: #{tpu_custom_call.1} parent=39 // pred_fallthru
        _
    $region40: #{tpu_custom_call.1} parent=5 // pred_fallthru
      _
    %p4558 = scmp.le.s32.totalorder 2, %s11
    // Predicated region
    $region45: #{tpu_custom_call.1} parent=5 // pred_check
      %p4559 = pneg %p4558
    $region46: #{tpu_custom_call.1} parent=5 // pred_check_branch
      %4561 = sbr.rel (%p4559) target = $region48
    $region47: #{tpu_custom_call.1} parent=5 // pred_region
      %s4562 = ssub.s32 %s11, 2
      // Predicated region
      $region49: #{tpu_custom_call.1} parent=47 // pred_check
        %p4563 = pneg %p150
      $region50: #{tpu_custom_call.1} parent=47 // pred_check_branch
        %4565 = sbr.rel (%p4563) target = $region52
      $region51: #{tpu_custom_call.1} parent=47 // pred_region
        %s4566 = smul.u32 16, %s17
        %p4567 = scmp.lt.s32.totalorder %s4566, 31
        %s4568 = scalar_select %p4567, %s4566, 31
        %s4569 = smul.addr %s4568, 7
        %s4570 = smul.addr %s4569, 8
        %s4571 = scalar_lea.vmem %s5, %s4570
      $region52: #{tpu_custom_call.1} parent=47 // pred_fallthru
        _
    $region48: #{tpu_custom_call.1} parent=5 // pred_fallthru
      _
  $region6: #{tpu_custom_call.1} parent=0 // loop_footer
    %s15 = sadd.s32 1, %s11
  $region7: #{tpu_custom_call.1} parent=0 // loop_footer_branch
    %10 = sbr.rel target = $region3
  $region8: #{tpu_custom_call.1} parent=0 // loop_exit
    _

</llo_original>
